<compile_context>
chip_gen: v6e
topology: v6e:2x2x1
jax: 0.10.0
libtpu: 0.0.40
codegen_flags: <defaults>
</compile_context>

<pallas_src>
import numpy as np
import jax
import jax.numpy as jnp
from jax.experimental import pallas as pl
from jax.experimental.pallas import tpu as pltpu

EMBED = 16
HEADS = 2
HEAD_DIM = EMBED // HEADS
NUM_LAYERS = 2
FEATURE_POINT_RADIUS = 0.02      # self.feature_point_radius

ET = 2 * EMBED                   # fused (pos+ori) embedding width = 32
HT = 2 * HEADS                   # fused head count = 4


# ----------------------------- kernel helpers -----------------------------

def _dot(a, b):   # a @ b, f32 accumulation on the MXU
    return jax.lax.dot_general(a, b, (((1,), (0,)), ((), ())),
                               preferred_element_type=jnp.float32)


def _dot_t(a, b):  # a @ b.T (contract last dim of both)
    return jax.lax.dot_general(a, b, (((1,), (1,)), ((), ())),
                               preferred_element_type=jnp.float32)


# -------------------------------- kernel ----------------------------------

def _make_kernel(N):
    R2 = FEATURE_POINT_RADIUS ** 2

    def kernel(pts_ref, w_in_ref, w_qkv_ref, w_opT_ref, w_out_ref, out_ref):
        pts = pts_ref[...]                         # (7, N) channel-major
        xyz_cm = pts[0:3, :]                       # (3, N)
        rgb1 = pts[3:7, :]                         # (4, N) rgb rows + ones row

        # ---- fused input linear, bias folded via the ones row (f32, tiny) --
        x_cm = _dot(w_in_ref[...], rgb1)           # (32, N)

        for l in range(NUM_LAYERS):
            w_l = w_qkv_ref[l * 8 * ET:(l + 1) * 8 * ET, :]       # (256,32) bf16
            # one packed QKV projection, bf16 operands / f32 accumulation
            proj = _dot(w_l, x_cm.astype(jnp.bfloat16))           # (256, N) f32
            # queries to point-major once per layer (amp & 1/sqrt(D) already
            # folded into the q weight rows host-side).
            q_pm = proj[0:2 * ET, :].T.astype(jnp.bfloat16)       # (N, 64)

            xt = jnp.zeros((N, ET), jnp.float32)                  # (N, 32) acc
            for h in range(HT):
                r = 2 * HEAD_DIM * h                              # 16*h
                k1 = proj[2 * ET + r:2 * ET + r + 2 * HEAD_DIM, :]   # [kr; ki]
                k2 = proj[4 * ET + r:4 * ET + r + 2 * HEAD_DIM, :]   # [-ki; kr]
                # fused real/imag score RHS: one (N,16)@(16,2N) matmul
                k12 = jnp.concatenate([k1, k2], axis=-1).astype(jnp.bfloat16)
                # small transposed operand for attn@V (instead of attn.T)
                vvT = (proj[6 * ET + r:6 * ET + r + 2 * HEAD_DIM, :]
                       .T.astype(jnp.bfloat16))                   # (N, 16)

                qs = q_pm[:, r:r + 2 * HEAD_DIM]                  # (N, 16)
                srsi = _dot(qs, k12)                              # (N, 2N) f32
                sr = srsi[:, :N]
                si = srsi[:, N:]
                mag = jnp.sqrt(sr * sr + si * si)                 # f32
                m = jnp.max(mag, axis=-1, keepdims=True)
                e = jnp.exp(mag - m)
                attn = e * pl.reciprocal(
                    jnp.sum(e, axis=-1, keepdims=True), approx=True)
                ov = _dot(attn.astype(jnp.bfloat16), vvT)         # (N, 16) f32
                w_oph = w_opT_ref[(l * HT + h) * 2 * HEAD_DIM:
                                  (l * HT + h + 1) * 2 * HEAD_DIM, :]  # (16,32)
                # output projection (phase gate + real+0.1*imag folded in)
                xt = xt + _dot(ov.astype(jnp.bfloat16), w_oph)    # (N, 32)

            x_cm = xt.T                                           # (32, N) f32

        # ---- fused output linear: row 0 = heat, rows 1:10 = ori feats ------
        w_out_b = w_out_ref[...]
        y = _dot(w_out_b[:, 0:ET], x_cm) + w_out_b[:, ET:ET + 1]  # (10, N)

        # ---- pos head: softmax over the N points of this batch -------------
        heat = y[0:1, :]                                          # (1, N)
        m = jnp.max(heat, axis=-1, keepdims=True)
        e = jnp.exp(heat - m)
        w = e / jnp.sum(e, axis=-1, keepdims=True)                # exact recip
        pos = _dot_t(w, xyz_cm)                                   # (1, 3)

        # ---- ori head: masked mean of features around predicted position ---
        feats_ori = y[1:10, :]                                    # (9, N)
        d2 = jnp.zeros((1, N), jnp.float32)
        for c in range(3):
            dc = xyz_cm[c:c + 1, :] - pos[:, c:c + 1]
            d2 = d2 + dc * dc
        maskf = (d2 < R2).astype(jnp.float32)                     # (1, N)
        count = jnp.sum(maskf, axis=-1, keepdims=True)            # (1, 1)
        msum = _dot_t(maskf, feats_ori)                           # (1, 9)
        mean_all = _dot_t(jnp.ones((1, N), jnp.float32), feats_ori) * (1.0 / N)
        masked_mean = msum / jnp.maximum(count, 1.0)              # exact recip
        out_ori = jnp.where(count > 0.0, masked_mean, mean_all)   # (1, 9)

        # ---- direct slice stores of pos + row-normalized 3x3 ---------------
        out_ref[:, 0:3] = pos
        for r_ in range(3):
            rowv = out_ori[:, 3 * r_:3 * (r_ + 1)]                # (1, 3)
            nrm = jnp.sqrt(jnp.sum(rowv * rowv, axis=-1, keepdims=True)) + 1e-8
            out_ref[:, 3 + 3 * r_:6 + 3 * r_] = rowv / nrm
        out_ref[:, 12:16] = jnp.zeros((1, 4), jnp.float32)

    return kernel


# ----------------------------- host-side setup -----------------------------

def make_backbone_params(rng, out_dim):
    k_in = 1.0 / np.sqrt(3.0)
    k_out = 1.0 / np.sqrt(EMBED)
    p = {
        "W_in": rng.uniform(-k_in, k_in, size=(EMBED, 3)).astype(np.float32),
        "b_in": rng.uniform(-k_in, k_in, size=(EMBED,)).astype(np.float32),
        "W_out": rng.uniform(-k_out, k_out, size=(out_dim, EMBED)).astype(np.float32),
        "b_out": rng.uniform(-k_out, k_out, size=(out_dim,)).astype(np.float32),
        "layers": [],
    }
    for _ in range(NUM_LAYERS):
        layer = {}
        for role in ("q", "k", "v", "out"):
            wr = rng.standard_normal((EMBED, EMBED))
            wi = rng.standard_normal((EMBED, EMBED))
            # torch.linalg.qr on the complex weight -> unitary Q (host-side
            # parameter setup, not part of the kernel hot path).
            Q, _ = np.linalg.qr(wr + 1j * wi)
            layer[role] = Q.astype(np.complex64)
        layer["amp"] = np.float32(1.0)                   # nn.Parameter(1.0)
        layer["theta"] = np.zeros((EMBED,), np.float32)  # QuantumPhaseGate init
        p["layers"].append(layer)
    return p


def _blockdiag(a, b):
    m = np.zeros((ET, ET), np.float32)
    m[:EMBED, :EMBED] = a
    m[EMBED:, EMBED:] = b
    return m


def pack_combined(pos_p, ori_p):
    """Fuse pos_net + ori_net into block-diagonal, per-head-packed weights."""
    # input linear: (32, 3) weight | (32, 1) bias -> (32, 4); the kernel folds
    # the bias via a constant ones row appended to the rgb slab.
    w_in = np.concatenate([pos_p["W_in"], ori_p["W_in"]], axis=0)
    b_in = np.concatenate([pos_p["b_in"], ori_p["b_in"]])[:, None]
    w_in_b = np.concatenate([w_in, b_in], axis=1).astype(np.float32)

    s = np.float32(1.0 / np.sqrt(HEAD_DIM))   # score scale folded into q rows
    qkv_blocks, opT_blocks = [], []
    for l in range(NUM_LAYERS):
        lp, lo = pos_p["layers"][l], ori_p["layers"][l]
        amp = np.array([lp["amp"]] * HEADS + [lo["amp"]] * HEADS, np.float32)
        # amp is applied to |scores| in the reference; folding it into the q
        # rows is only exactly equivalent for amp >= 0 (true at init).
        assert np.all(amp >= 0.0), "amp folding into q rows assumes amp >= 0"

        Aq_r = _blockdiag(lp["q"].real, lo["q"].real)
        Aq_i = _blockdiag(lp["q"].imag, lo["q"].imag)
        Ak_r = _blockdiag(lp["k"].real, lo["k"].real)
        Ak_i = _blockdiag(lp["k"].imag, lo["k"].imag)
        Av_r = _blockdiag(lp["v"].real, lo["v"].real)
        Av_i = _blockdiag(lp["v"].imag, lo["v"].imag)

        q_rows, k1_rows, k2_rows, v_rows = [], [], [], []
        for h in range(HT):
            sl = slice(HEAD_DIM * h, HEAD_DIM * (h + 1))
            c = s * amp[h]
            # activations: qr = Ar@X, qi = -Ai@X  (x @ conj(Q).T, real algebra)
            q_rows += [c * Aq_r[sl], -c * Aq_i[sl]]   # -> [s*a*qr ; s*a*qi]
            k1_rows += [Ak_r[sl], -Ak_i[sl]]          # -> [kr ; ki]
            k2_rows += [Ak_i[sl], Ak_r[sl]]           # -> [-ki ; kr]
            v_rows += [Av_r[sl], -Av_i[sl]]           # -> [vr ; vi]
        qkv_blocks.append(
            np.concatenate(q_rows + k1_rows + k2_rows + v_rows, axis=0))  # (256,32)

        # Output projection: fold phase gate exp(i*theta) and real+0.1*imag.
        theta = np.concatenate([lp["theta"], lo["theta"]])
        Qo_r = _blockdiag(lp["out"].real, lo["out"].real)
        Qo_i = _blockdiag(lp["out"].imag, lo["out"].imag)
        co, sn = np.cos(theta)[None, :], np.sin(theta)[None, :]
        M_r = Qo_r * co + Qo_i * sn
        M_i = Qo_r * sn - Qo_i * co
        P1 = M_r + 0.1 * M_i        # multiplies out_real
        P2 = 0.1 * M_r - M_i        # multiplies out_imag
        for h in range(HT):
            cols = slice(HEAD_DIM * h, HEAD_DIM * (h + 1))
            # per-head transposed block so the kernel accumulates
            # x += ov_h @ w_opT_h with ov_h columns = [out_r(8) | out_i(8)]
            blk = np.concatenate([P1[:, cols].T, P2[:, cols].T], axis=0)  # (16,32)
            opT_blocks.append(blk)

    w_qkv = np.concatenate(qkv_blocks, axis=0)          # (512, 32)
    w_opT = np.concatenate(opT_blocks, axis=0)          # (128, 32)

    # final linear: (10, 32) block weight | (10, 1) bias -> (10, 33)
    w_out = np.zeros((1 + 9, ET), np.float32)
    w_out[0, :EMBED] = pos_p["W_out"][0]
    w_out[1:, EMBED:] = ori_p["W_out"]
    b_out = np.concatenate([pos_p["b_out"], ori_p["b_out"]])[:, None]
    w_out_b = np.concatenate([w_out, b_out], axis=1).astype(np.float32)

    # bf16 for the big per-layer matmul weights (f32 MXU accumulation in-kernel),
    # f32 for the tiny input/output linears that feed the sensitive heads.
    return (jnp.asarray(w_in_b, jnp.float32),
            jnp.asarray(w_qkv, jnp.bfloat16),
            jnp.asarray(w_opT, jnp.bfloat16),
            jnp.asarray(w_out_b, jnp.float32))


def quantum_mani_forward(xyz, rgb, packed):
    w_in_b, w_qkv, w_opT, w_out_b = packed
    B, N, _ = xyz.shape
    # per-batch channel-major slab: rows 0:3 xyz, 3:6 rgb, 6 ones (bias row)
    pts = jnp.concatenate(
        [jnp.transpose(xyz, (0, 2, 1)),
         jnp.transpose(rgb, (0, 2, 1)),
         jnp.ones((B, 1, N), jnp.float32)], axis=1)               # (B, 7, N)

    out = pl.pallas_call(
        _make_kernel(N),
        grid=(B,),
        in_specs=[
            pl.BlockSpec((None, 7, N), lambda b: (b, 0, 0)),      # points (per batch)
            pl.BlockSpec(w_in_b.shape, lambda b: (0, 0)),         # weights stay resident
            pl.BlockSpec(w_qkv.shape, lambda b: (0, 0)),
            pl.BlockSpec(w_opT.shape, lambda b: (0, 0)),
            pl.BlockSpec(w_out_b.shape, lambda b: (0, 0)),
        ],
        out_specs=pl.BlockSpec((None, 1, 16), lambda b: (b, 0, 0)),
        out_shape=jax.ShapeDtypeStruct((B, 1, 16), jnp.float32),
        compiler_params=pltpu.CompilerParams(
            dimension_semantics=("parallel",)),   # batches -> both TCs on v7x
    )(pts, w_in_b, w_qkv, w_opT, w_out_b)

    out = out.reshape(B, 16)
    return out[:, 0:3], out[:, 3:12]


# ----------------------------- numpy reference -----------------------------

def _np_softmax(x, axis):
    e = np.exp(x - x.max(axis=axis, keepdims=True))
    return e / e.sum(axis=axis, keepdims=True)


def ref_backbone(feats, p):
    x = feats @ p["W_in"].T + p["b_in"]
    N = x.shape[0]
    for l in range(NUM_LAYERS):
        lay = p["layers"][l]
        xc = x.astype(np.complex64)
        q = xc @ np.conj(lay["q"]).T
        k = xc @ np.conj(lay["k"]).T
        v = xc @ np.conj(lay["v"]).T
        q = q.reshape(N, HEADS, HEAD_DIM).transpose(1, 0, 2)
        k = k.reshape(N, HEADS, HEAD_DIM).transpose(1, 0, 2)
        v = v.reshape(N, HEADS, HEAD_DIM).transpose(1, 0, 2)
        scores = q @ np.conj(k).transpose(0, 2, 1) / np.sqrt(HEAD_DIM)
        attn = _np_softmax(np.abs(scores) * lay["amp"], axis=-1)
        out = attn.astype(np.complex64) @ v
        out = out.transpose(1, 0, 2).reshape(N, EMBED)
        out = out * np.exp(1j * lay["theta"])
        oc = out @ np.conj(lay["out"]).T
        x = (oc.real + 0.1 * oc.imag).astype(np.float32)
    return x @ p["W_out"].T + p["b_out"]


def ref_model(xyz, rgb, pos_p, ori_p):
    B = xyz.shape[0]
    pos_list, ori_list = [], []
    for i in range(B):
        heat = ref_backbone(rgb[i], pos_p)[:, 0]
        w = _np_softmax(heat, axis=-1)
        pos = (xyz[i] * w[:, None]).sum(0)
        fo = ref_backbone(rgb[i], ori_p)
        d = np.linalg.norm(xyz[i] - pos, axis=1)
        m = d < FEATURE_POINT_RADIUS
        oo = fo.mean(0) if m.sum() == 0 else fo[m].mean(0)
        mm = oo.reshape(3, 3)
        mm = mm / (np.linalg.norm(mm, axis=-1, keepdims=True) + 1e-8)
        pos_list.append(pos)
        ori_list.append(mm.reshape(9))
    return np.stack(pos_list), np.stack(ori_list)


# ---------------------------------- main -----------------------------------

if __name__ == "__main__":
    B, N = 2, 64

    key = jax.random.PRNGKey(0)
    k1, k2 = jax.random.split(key)
    xyz = jax.random.uniform(k1, (B, N, 3), jnp.float32, minval=-0.5, maxval=0.5)
    rgb = jax.random.uniform(k2, (B, N, 3), jnp.float32)

    rng = np.random.default_rng(0)
    pos_params = make_backbone_params(rng, out_dim=1)
    ori_params = make_backbone_params(rng, out_dim=9)
    packed = pack_combined(pos_params, ori_params)

    pos_pred, new_ori = quantum_mani_forward(xyz, rgb, packed)
    pos_pred = jax.block_until_ready(pos_pred)
    new_ori = jax.block_until_ready(new_ori)

    ref_pos, ref_ori = ref_model(np.asarray(xyz), np.asarray(rgb),
                                 pos_params, ori_params)
    # pos barely feels the bf16 rounding; the normalized orientation features
    # accumulate ~1-2% relative error from the bf16 matmul operands, so its
    # tolerance is set accordingly (f32 reference).
    assert np.allclose(np.asarray(pos_pred), ref_pos, rtol=2e-2, atol=2e-2), \
        "pos_pred mismatch"
    assert np.allclose(np.asarray(new_ori), ref_ori, rtol=5e-2, atol=5e-2), \
        "new_ori mismatch"

    print("KERNEL_OK")
</pallas_src>

<mosaic_0001>
module attributes {stable_mosaic.version = 11 : i64} {
  func.func @kernel(%arg0: i32, %arg1: memref<1x7x64xf32, #tpu.memory_space<vmem>>, %arg2: memref<32x4xf32, #tpu.memory_space<vmem>>, %arg3: memref<512x32xbf16, #tpu.memory_space<vmem>>, %arg4: memref<128x32xbf16, #tpu.memory_space<vmem>>, %arg5: memref<10x33xf32, #tpu.memory_space<vmem>>, %arg6: memref<1x1x16xf32, #tpu.memory_space<vmem>>) attributes {dimension_semantics = [#tpu.dimension_semantics<parallel>], iteration_bounds = array<i64: 2>, scalar_prefetch = 0 : i64, scratch_operands = 0 : i64, tpu.core_type = #tpu.core_type<tc>, window_params = [{transform_indices = @transform_0, window_bounds = array<i64: 1, 7, 64>}, {pipeline_mode = #tpu.pipeline_mode<synchronous>, transform_indices = @transform_1, window_bounds = array<i64: 32, 4>}, {pipeline_mode = #tpu.pipeline_mode<synchronous>, transform_indices = @transform_2, window_bounds = array<i64: 512, 32>}, {pipeline_mode = #tpu.pipeline_mode<synchronous>, transform_indices = @transform_3, window_bounds = array<i64: 128, 32>}, {pipeline_mode = #tpu.pipeline_mode<synchronous>, transform_indices = @transform_4, window_bounds = array<i64: 10, 33>}, {transform_indices = @transform_5, window_bounds = array<i64: 1, 1, 16>}]} {
    %c0 = arith.constant 0 : index
    %c0_0 = arith.constant 0 : index
    %c0_1 = arith.constant 0 : index
    %0 = vector.load %arg1[%c0, %c0_0, %c0_1] : memref<1x7x64xf32, #tpu.memory_space<vmem>>, vector<1x7x64xf32>
    %1 = vector.shape_cast %0 : vector<1x7x64xf32> to vector<7x64xf32>
    %2 = vector.extract_strided_slice %1 {offsets = [0, 0], sizes = [3, 64], strides = [1, 1]} : vector<7x64xf32> to vector<3x64xf32>
    %3 = vector.extract_strided_slice %1 {offsets = [3, 0], sizes = [4, 64], strides = [1, 1]} : vector<7x64xf32> to vector<4x64xf32>
    %c0_2 = arith.constant 0 : index
    %c0_3 = arith.constant 0 : index
    %4 = vector.load %arg2[%c0_2, %c0_3] : memref<32x4xf32, #tpu.memory_space<vmem>>, vector<32x4xf32>
    %cst = arith.constant dense<0.000000e+00> : vector<32x64xf32>
    %5 = tpu.matmul %4, %3, %cst {dimension_numbers = #tpu.dot_dimension_numbers<[1], [0], [0], [1], [0, 0, 1, 1], [], []>} : vector<32x4xf32>, vector<4x64xf32>, vector<32x64xf32> -> vector<32x64xf32>
    %c0_4 = arith.constant 0 : index
    %c0_5 = arith.constant 0 : index
    %6 = vector.load %arg3[%c0_4, %c0_5] : memref<512x32xbf16, #tpu.memory_space<vmem>>, vector<256x32xbf16>
    %7 = arith.truncf %5 : vector<32x64xf32> to vector<32x64xbf16>
    %cst_6 = arith.constant dense<0.000000e+00> : vector<256x64xf32>
    %8 = tpu.matmul %6, %7, %cst_6 {dimension_numbers = #tpu.dot_dimension_numbers<[1], [0], [0], [1], [0, 0, 1, 1], [], []>} : vector<256x32xbf16>, vector<32x64xbf16>, vector<256x64xf32> -> vector<256x64xf32>
    %9 = vector.extract_strided_slice %8 {offsets = [0, 0], sizes = [64, 64], strides = [1, 1]} : vector<256x64xf32> to vector<64x64xf32>
    %10 = tpu.transpose %9, [1, 0] : vector<64x64xf32> -> vector<64x64xf32>
    %11 = arith.truncf %10 : vector<64x64xf32> to vector<64x64xbf16>
    %cst_7 = arith.constant 0.000000e+00 : f32
    %12 = vector.broadcast %cst_7 : f32 to vector<64x32xf32>
    %13 = vector.extract_strided_slice %8 {offsets = [64, 0], sizes = [16, 64], strides = [1, 1]} : vector<256x64xf32> to vector<16x64xf32>
    %14 = vector.extract_strided_slice %8 {offsets = [128, 0], sizes = [16, 64], strides = [1, 1]} : vector<256x64xf32> to vector<16x64xf32>
    %15 = tpu.concatenate %13, %14 in 1 : vector<16x64xf32>, vector<16x64xf32> -> vector<16x128xf32>
    %16 = arith.truncf %15 : vector<16x128xf32> to vector<16x128xbf16>
    %17 = vector.extract_strided_slice %8 {offsets = [192, 0], sizes = [16, 64], strides = [1, 1]} : vector<256x64xf32> to vector<16x64xf32>
    %18 = tpu.transpose %17, [1, 0] : vector<16x64xf32> -> vector<64x16xf32>
    %19 = arith.truncf %18 : vector<64x16xf32> to vector<64x16xbf16>
    %20 = vector.extract_strided_slice %11 {offsets = [0, 0], sizes = [64, 16], strides = [1, 1]} : vector<64x64xbf16> to vector<64x16xbf16>
    %cst_8 = arith.constant dense<0.000000e+00> : vector<64x128xf32>
    %21 = tpu.matmul %20, %16, %cst_8 {dimension_numbers = #tpu.dot_dimension_numbers<[1], [0], [0], [1], [0, 0, 1, 1], [], []>} : vector<64x16xbf16>, vector<16x128xbf16>, vector<64x128xf32> -> vector<64x128xf32>
    %22 = vector.extract_strided_slice %21 {offsets = [0, 0], sizes = [64, 64], strides = [1, 1]} : vector<64x128xf32> to vector<64x64xf32>
    %23 = vector.extract_strided_slice %21 {offsets = [0, 64], sizes = [64, 64], strides = [1, 1]} : vector<64x128xf32> to vector<64x64xf32>
    %24 = arith.mulf %22, %22 : vector<64x64xf32>
    %25 = arith.mulf %23, %23 : vector<64x64xf32>
    %26 = arith.addf %24, %25 : vector<64x64xf32>
    %27 = math.sqrt %26 : vector<64x64xf32>
    %cst_9 = arith.constant dense<0xFF800000> : vector<64xf32>
    %28 = vector.multi_reduction <maximumf>, %27, %cst_9 [1] : vector<64x64xf32> to vector<64xf32>
    %29 = vector.shape_cast %28 : vector<64xf32> to vector<64x1xf32>
    %30 = vector.broadcast %29 : vector<64x1xf32> to vector<64x64xf32>
    %31 = arith.subf %27, %30 : vector<64x64xf32>
    %32 = math.exp %31 : vector<64x64xf32>
    %cst_10 = arith.constant dense<0.000000e+00> : vector<64xf32>
    %33 = vector.multi_reduction <add>, %32, %cst_10 [1] : vector<64x64xf32> to vector<64xf32>
    %34 = vector.shape_cast %33 : vector<64xf32> to vector<64x1xf32>
    %35 = tpu.reciprocal %34 {approx = true} : vector<64x1xf32> -> vector<64x1xf32>
    %36 = vector.broadcast %35 : vector<64x1xf32> to vector<64x64xf32>
    %37 = arith.mulf %32, %36 : vector<64x64xf32>
    %38 = arith.truncf %37 : vector<64x64xf32> to vector<64x64xbf16>
    %cst_11 = arith.constant dense<0.000000e+00> : vector<64x16xf32>
    %39 = tpu.matmul %38, %19, %cst_11 {dimension_numbers = #tpu.dot_dimension_numbers<[1], [0], [0], [1], [0, 0, 1, 1], [], []>} : vector<64x64xbf16>, vector<64x16xbf16>, vector<64x16xf32> -> vector<64x16xf32>
    %c0_12 = arith.constant 0 : index
    %c0_13 = arith.constant 0 : index
    %40 = vector.load %arg4[%c0_12, %c0_13] : memref<128x32xbf16, #tpu.memory_space<vmem>>, vector<16x32xbf16>
    %41 = arith.truncf %39 : vector<64x16xf32> to vector<64x16xbf16>
    %cst_14 = arith.constant dense<0.000000e+00> : vector<64x32xf32>
    %42 = tpu.matmul %41, %40, %cst_14 {dimension_numbers = #tpu.dot_dimension_numbers<[1], [0], [0], [1], [0, 0, 1, 1], [], []>} : vector<64x16xbf16>, vector<16x32xbf16>, vector<64x32xf32> -> vector<64x32xf32>
    %43 = arith.addf %12, %42 : vector<64x32xf32>
    %44 = vector.extract_strided_slice %8 {offsets = [80, 0], sizes = [16, 64], strides = [1, 1]} : vector<256x64xf32> to vector<16x64xf32>
    %45 = vector.extract_strided_slice %8 {offsets = [144, 0], sizes = [16, 64], strides = [1, 1]} : vector<256x64xf32> to vector<16x64xf32>
    %46 = tpu.concatenate %44, %45 in 1 : vector<16x64xf32>, vector<16x64xf32> -> vector<16x128xf32>
    %47 = arith.truncf %46 : vector<16x128xf32> to vector<16x128xbf16>
    %48 = vector.extract_strided_slice %8 {offsets = [208, 0], sizes = [16, 64], strides = [1, 1]} : vector<256x64xf32> to vector<16x64xf32>
    %49 = tpu.transpose %48, [1, 0] : vector<16x64xf32> -> vector<64x16xf32>
    %50 = arith.truncf %49 : vector<64x16xf32> to vector<64x16xbf16>
    %51 = vector.extract_strided_slice %11 {offsets = [0, 16], sizes = [64, 16], strides = [1, 1]} : vector<64x64xbf16> to vector<64x16xbf16>
    %cst_15 = arith.constant dense<0.000000e+00> : vector<64x128xf32>
    %52 = tpu.matmul %51, %47, %cst_15 {dimension_numbers = #tpu.dot_dimension_numbers<[1], [0], [0], [1], [0, 0, 1, 1], [], []>} : vector<64x16xbf16>, vector<16x128xbf16>, vector<64x128xf32> -> vector<64x128xf32>
    %53 = vector.extract_strided_slice %52 {offsets = [0, 0], sizes = [64, 64], strides = [1, 1]} : vector<64x128xf32> to vector<64x64xf32>
    %54 = vector.extract_strided_slice %52 {offsets = [0, 64], sizes = [64, 64], strides = [1, 1]} : vector<64x128xf32> to vector<64x64xf32>
    %55 = arith.mulf %53, %53 : vector<64x64xf32>
    %56 = arith.mulf %54, %54 : vector<64x64xf32>
    %57 = arith.addf %55, %56 : vector<64x64xf32>
    %58 = math.sqrt %57 : vector<64x64xf32>
    %cst_16 = arith.constant dense<0xFF800000> : vector<64xf32>
    %59 = vector.multi_reduction <maximumf>, %58, %cst_16 [1] : vector<64x64xf32> to vector<64xf32>
    %60 = vector.shape_cast %59 : vector<64xf32> to vector<64x1xf32>
    %61 = vector.broadcast %60 : vector<64x1xf32> to vector<64x64xf32>
    %62 = arith.subf %58, %61 : vector<64x64xf32>
    %63 = math.exp %62 : vector<64x64xf32>
    %cst_17 = arith.constant dense<0.000000e+00> : vector<64xf32>
    %64 = vector.multi_reduction <add>, %63, %cst_17 [1] : vector<64x64xf32> to vector<64xf32>
    %65 = vector.shape_cast %64 : vector<64xf32> to vector<64x1xf32>
    %66 = tpu.reciprocal %65 {approx = true} : vector<64x1xf32> -> vector<64x1xf32>
    %67 = vector.broadcast %66 : vector<64x1xf32> to vector<64x64xf32>
    %68 = arith.mulf %63, %67 : vector<64x64xf32>
    %69 = arith.truncf %68 : vector<64x64xf32> to vector<64x64xbf16>
    %cst_18 = arith.constant dense<0.000000e+00> : vector<64x16xf32>
    %70 = tpu.matmul %69, %50, %cst_18 {dimension_numbers = #tpu.dot_dimension_numbers<[1], [0], [0], [1], [0, 0, 1, 1], [], []>} : vector<64x64xbf16>, vector<64x16xbf16>, vector<64x16xf32> -> vector<64x16xf32>
    %c16 = arith.constant 16 : index
    %c0_19 = arith.constant 0 : index
    %71 = vector.load %arg4[%c16, %c0_19] : memref<128x32xbf16, #tpu.memory_space<vmem>>, vector<16x32xbf16>
    %72 = arith.truncf %70 : vector<64x16xf32> to vector<64x16xbf16>
    %cst_20 = arith.constant dense<0.000000e+00> : vector<64x32xf32>
    %73 = tpu.matmul %72, %71, %cst_20 {dimension_numbers = #tpu.dot_dimension_numbers<[1], [0], [0], [1], [0, 0, 1, 1], [], []>} : vector<64x16xbf16>, vector<16x32xbf16>, vector<64x32xf32> -> vector<64x32xf32>
    %74 = arith.addf %43, %73 : vector<64x32xf32>
    %75 = vector.extract_strided_slice %8 {offsets = [96, 0], sizes = [16, 64], strides = [1, 1]} : vector<256x64xf32> to vector<16x64xf32>
    %76 = vector.extract_strided_slice %8 {offsets = [160, 0], sizes = [16, 64], strides = [1, 1]} : vector<256x64xf32> to vector<16x64xf32>
    %77 = tpu.concatenate %75, %76 in 1 : vector<16x64xf32>, vector<16x64xf32> -> vector<16x128xf32>
    %78 = arith.truncf %77 : vector<16x128xf32> to vector<16x128xbf16>
    %79 = vector.extract_strided_slice %8 {offsets = [224, 0], sizes = [16, 64], strides = [1, 1]} : vector<256x64xf32> to vector<16x64xf32>
    %80 = tpu.transpose %79, [1, 0] : vector<16x64xf32> -> vector<64x16xf32>
    %81 = arith.truncf %80 : vector<64x16xf32> to vector<64x16xbf16>
    %82 = vector.extract_strided_slice %11 {offsets = [0, 32], sizes = [64, 16], strides = [1, 1]} : vector<64x64xbf16> to vector<64x16xbf16>
    %cst_21 = arith.constant dense<0.000000e+00> : vector<64x128xf32>
    %83 = tpu.matmul %82, %78, %cst_21 {dimension_numbers = #tpu.dot_dimension_numbers<[1], [0], [0], [1], [0, 0, 1, 1], [], []>} : vector<64x16xbf16>, vector<16x128xbf16>, vector<64x128xf32> -> vector<64x128xf32>
    %84 = vector.extract_strided_slice %83 {offsets = [0, 0], sizes = [64, 64], strides = [1, 1]} : vector<64x128xf32> to vector<64x64xf32>
    %85 = vector.extract_strided_slice %83 {offsets = [0, 64], sizes = [64, 64], strides = [1, 1]} : vector<64x128xf32> to vector<64x64xf32>
    %86 = arith.mulf %84, %84 : vector<64x64xf32>
    %87 = arith.mulf %85, %85 : vector<64x64xf32>
    %88 = arith.addf %86, %87 : vector<64x64xf32>
    %89 = math.sqrt %88 : vector<64x64xf32>
    %cst_22 = arith.constant dense<0xFF800000> : vector<64xf32>
    %90 = vector.multi_reduction <maximumf>, %89, %cst_22 [1] : vector<64x64xf32> to vector<64xf32>
    %91 = vector.shape_cast %90 : vector<64xf32> to vector<64x1xf32>
    %92 = vector.broadcast %91 : vector<64x1xf32> to vector<64x64xf32>
    %93 = arith.subf %89, %92 : vector<64x64xf32>
    %94 = math.exp %93 : vector<64x64xf32>
    %cst_23 = arith.constant dense<0.000000e+00> : vector<64xf32>
    %95 = vector.multi_reduction <add>, %94, %cst_23 [1] : vector<64x64xf32> to vector<64xf32>
    %96 = vector.shape_cast %95 : vector<64xf32> to vector<64x1xf32>
    %97 = tpu.reciprocal %96 {approx = true} : vector<64x1xf32> -> vector<64x1xf32>
    %98 = vector.broadcast %97 : vector<64x1xf32> to vector<64x64xf32>
    %99 = arith.mulf %94, %98 : vector<64x64xf32>
    %100 = arith.truncf %99 : vector<64x64xf32> to vector<64x64xbf16>
    %cst_24 = arith.constant dense<0.000000e+00> : vector<64x16xf32>
    %101 = tpu.matmul %100, %81, %cst_24 {dimension_numbers = #tpu.dot_dimension_numbers<[1], [0], [0], [1], [0, 0, 1, 1], [], []>} : vector<64x64xbf16>, vector<64x16xbf16>, vector<64x16xf32> -> vector<64x16xf32>
    %c32 = arith.constant 32 : index
    %c0_25 = arith.constant 0 : index
    %102 = vector.load %arg4[%c32, %c0_25] : memref<128x32xbf16, #tpu.memory_space<vmem>>, vector<16x32xbf16>
    %103 = arith.truncf %101 : vector<64x16xf32> to vector<64x16xbf16>
    %cst_26 = arith.constant dense<0.000000e+00> : vector<64x32xf32>
    %104 = tpu.matmul %103, %102, %cst_26 {dimension_numbers = #tpu.dot_dimension_numbers<[1], [0], [0], [1], [0, 0, 1, 1], [], []>} : vector<64x16xbf16>, vector<16x32xbf16>, vector<64x32xf32> -> vector<64x32xf32>
    %105 = arith.addf %74, %104 : vector<64x32xf32>
    %106 = vector.extract_strided_slice %8 {offsets = [112, 0], sizes = [16, 64], strides = [1, 1]} : vector<256x64xf32> to vector<16x64xf32>
    %107 = vector.extract_strided_slice %8 {offsets = [176, 0], sizes = [16, 64], strides = [1, 1]} : vector<256x64xf32> to vector<16x64xf32>
    %108 = tpu.concatenate %106, %107 in 1 : vector<16x64xf32>, vector<16x64xf32> -> vector<16x128xf32>
    %109 = arith.truncf %108 : vector<16x128xf32> to vector<16x128xbf16>
    %110 = vector.extract_strided_slice %8 {offsets = [240, 0], sizes = [16, 64], strides = [1, 1]} : vector<256x64xf32> to vector<16x64xf32>
    %111 = tpu.transpose %110, [1, 0] : vector<16x64xf32> -> vector<64x16xf32>
    %112 = arith.truncf %111 : vector<64x16xf32> to vector<64x16xbf16>
    %113 = vector.extract_strided_slice %11 {offsets = [0, 48], sizes = [64, 16], strides = [1, 1]} : vector<64x64xbf16> to vector<64x16xbf16>
    %cst_27 = arith.constant dense<0.000000e+00> : vector<64x128xf32>
    %114 = tpu.matmul %113, %109, %cst_27 {dimension_numbers = #tpu.dot_dimension_numbers<[1], [0], [0], [1], [0, 0, 1, 1], [], []>} : vector<64x16xbf16>, vector<16x128xbf16>, vector<64x128xf32> -> vector<64x128xf32>
    %115 = vector.extract_strided_slice %114 {offsets = [0, 0], sizes = [64, 64], strides = [1, 1]} : vector<64x128xf32> to vector<64x64xf32>
    %116 = vector.extract_strided_slice %114 {offsets = [0, 64], sizes = [64, 64], strides = [1, 1]} : vector<64x128xf32> to vector<64x64xf32>
    %117 = arith.mulf %115, %115 : vector<64x64xf32>
    %118 = arith.mulf %116, %116 : vector<64x64xf32>
    %119 = arith.addf %117, %118 : vector<64x64xf32>
    %120 = math.sqrt %119 : vector<64x64xf32>
    %cst_28 = arith.constant dense<0xFF800000> : vector<64xf32>
    %121 = vector.multi_reduction <maximumf>, %120, %cst_28 [1] : vector<64x64xf32> to vector<64xf32>
    %122 = vector.shape_cast %121 : vector<64xf32> to vector<64x1xf32>
    %123 = vector.broadcast %122 : vector<64x1xf32> to vector<64x64xf32>
    %124 = arith.subf %120, %123 : vector<64x64xf32>
    %125 = math.exp %124 : vector<64x64xf32>
    %cst_29 = arith.constant dense<0.000000e+00> : vector<64xf32>
    %126 = vector.multi_reduction <add>, %125, %cst_29 [1] : vector<64x64xf32> to vector<64xf32>
    %127 = vector.shape_cast %126 : vector<64xf32> to vector<64x1xf32>
    %128 = tpu.reciprocal %127 {approx = true} : vector<64x1xf32> -> vector<64x1xf32>
    %129 = vector.broadcast %128 : vector<64x1xf32> to vector<64x64xf32>
    %130 = arith.mulf %125, %129 : vector<64x64xf32>
    %131 = arith.truncf %130 : vector<64x64xf32> to vector<64x64xbf16>
    %cst_30 = arith.constant dense<0.000000e+00> : vector<64x16xf32>
    %132 = tpu.matmul %131, %112, %cst_30 {dimension_numbers = #tpu.dot_dimension_numbers<[1], [0], [0], [1], [0, 0, 1, 1], [], []>} : vector<64x64xbf16>, vector<64x16xbf16>, vector<64x16xf32> -> vector<64x16xf32>
    %c48 = arith.constant 48 : index
    %c0_31 = arith.constant 0 : index
    %133 = vector.load %arg4[%c48, %c0_31] : memref<128x32xbf16, #tpu.memory_space<vmem>>, vector<16x32xbf16>
    %134 = arith.truncf %132 : vector<64x16xf32> to vector<64x16xbf16>
    %cst_32 = arith.constant dense<0.000000e+00> : vector<64x32xf32>
    %135 = tpu.matmul %134, %133, %cst_32 {dimension_numbers = #tpu.dot_dimension_numbers<[1], [0], [0], [1], [0, 0, 1, 1], [], []>} : vector<64x16xbf16>, vector<16x32xbf16>, vector<64x32xf32> -> vector<64x32xf32>
    %136 = arith.addf %105, %135 : vector<64x32xf32>
    %137 = tpu.transpose %136, [1, 0] : vector<64x32xf32> -> vector<32x64xf32>
    %c256 = arith.constant 256 : index
    %c0_33 = arith.constant 0 : index
    %138 = vector.load %arg3[%c256, %c0_33] : memref<512x32xbf16, #tpu.memory_space<vmem>>, vector<256x32xbf16>
    %139 = arith.truncf %137 : vector<32x64xf32> to vector<32x64xbf16>
    %cst_34 = arith.constant dense<0.000000e+00> : vector<256x64xf32>
    %140 = tpu.matmul %138, %139, %cst_34 {dimension_numbers = #tpu.dot_dimension_numbers<[1], [0], [0], [1], [0, 0, 1, 1], [], []>} : vector<256x32xbf16>, vector<32x64xbf16>, vector<256x64xf32> -> vector<256x64xf32>
    %141 = vector.extract_strided_slice %140 {offsets = [0, 0], sizes = [64, 64], strides = [1, 1]} : vector<256x64xf32> to vector<64x64xf32>
    %142 = tpu.transpose %141, [1, 0] : vector<64x64xf32> -> vector<64x64xf32>
    %143 = arith.truncf %142 : vector<64x64xf32> to vector<64x64xbf16>
    %cst_35 = arith.constant 0.000000e+00 : f32
    %144 = vector.broadcast %cst_35 : f32 to vector<64x32xf32>
    %145 = vector.extract_strided_slice %140 {offsets = [64, 0], sizes = [16, 64], strides = [1, 1]} : vector<256x64xf32> to vector<16x64xf32>
    %146 = vector.extract_strided_slice %140 {offsets = [128, 0], sizes = [16, 64], strides = [1, 1]} : vector<256x64xf32> to vector<16x64xf32>
    %147 = tpu.concatenate %145, %146 in 1 : vector<16x64xf32>, vector<16x64xf32> -> vector<16x128xf32>
    %148 = arith.truncf %147 : vector<16x128xf32> to vector<16x128xbf16>
    %149 = vector.extract_strided_slice %140 {offsets = [192, 0], sizes = [16, 64], strides = [1, 1]} : vector<256x64xf32> to vector<16x64xf32>
    %150 = tpu.transpose %149, [1, 0] : vector<16x64xf32> -> vector<64x16xf32>
    %151 = arith.truncf %150 : vector<64x16xf32> to vector<64x16xbf16>
    %152 = vector.extract_strided_slice %143 {offsets = [0, 0], sizes = [64, 16], strides = [1, 1]} : vector<64x64xbf16> to vector<64x16xbf16>
    %cst_36 = arith.constant dense<0.000000e+00> : vector<64x128xf32>
    %153 = tpu.matmul %152, %148, %cst_36 {dimension_numbers = #tpu.dot_dimension_numbers<[1], [0], [0], [1], [0, 0, 1, 1], [], []>} : vector<64x16xbf16>, vector<16x128xbf16>, vector<64x128xf32> -> vector<64x128xf32>
    %154 = vector.extract_strided_slice %153 {offsets = [0, 0], sizes = [64, 64], strides = [1, 1]} : vector<64x128xf32> to vector<64x64xf32>
    %155 = vector.extract_strided_slice %153 {offsets = [0, 64], sizes = [64, 64], strides = [1, 1]} : vector<64x128xf32> to vector<64x64xf32>
    %156 = arith.mulf %154, %154 : vector<64x64xf32>
    %157 = arith.mulf %155, %155 : vector<64x64xf32>
    %158 = arith.addf %156, %157 : vector<64x64xf32>
    %159 = math.sqrt %158 : vector<64x64xf32>
    %cst_37 = arith.constant dense<0xFF800000> : vector<64xf32>
    %160 = vector.multi_reduction <maximumf>, %159, %cst_37 [1] : vector<64x64xf32> to vector<64xf32>
    %161 = vector.shape_cast %160 : vector<64xf32> to vector<64x1xf32>
    %162 = vector.broadcast %161 : vector<64x1xf32> to vector<64x64xf32>
    %163 = arith.subf %159, %162 : vector<64x64xf32>
    %164 = math.exp %163 : vector<64x64xf32>
    %cst_38 = arith.constant dense<0.000000e+00> : vector<64xf32>
    %165 = vector.multi_reduction <add>, %164, %cst_38 [1] : vector<64x64xf32> to vector<64xf32>
    %166 = vector.shape_cast %165 : vector<64xf32> to vector<64x1xf32>
    %167 = tpu.reciprocal %166 {approx = true} : vector<64x1xf32> -> vector<64x1xf32>
    %168 = vector.broadcast %167 : vector<64x1xf32> to vector<64x64xf32>
    %169 = arith.mulf %164, %168 : vector<64x64xf32>
    %170 = arith.truncf %169 : vector<64x64xf32> to vector<64x64xbf16>
    %cst_39 = arith.constant dense<0.000000e+00> : vector<64x16xf32>
    %171 = tpu.matmul %170, %151, %cst_39 {dimension_numbers = #tpu.dot_dimension_numbers<[1], [0], [0], [1], [0, 0, 1, 1], [], []>} : vector<64x64xbf16>, vector<64x16xbf16>, vector<64x16xf32> -> vector<64x16xf32>
    %c64 = arith.constant 64 : index
    %c0_40 = arith.constant 0 : index
    %172 = vector.load %arg4[%c64, %c0_40] : memref<128x32xbf16, #tpu.memory_space<vmem>>, vector<16x32xbf16>
    %173 = arith.truncf %171 : vector<64x16xf32> to vector<64x16xbf16>
    %cst_41 = arith.constant dense<0.000000e+00> : vector<64x32xf32>
    %174 = tpu.matmul %173, %172, %cst_41 {dimension_numbers = #tpu.dot_dimension_numbers<[1], [0], [0], [1], [0, 0, 1, 1], [], []>} : vector<64x16xbf16>, vector<16x32xbf16>, vector<64x32xf32> -> vector<64x32xf32>
    %175 = arith.addf %144, %174 : vector<64x32xf32>
    %176 = vector.extract_strided_slice %140 {offsets = [80, 0], sizes = [16, 64], strides = [1, 1]} : vector<256x64xf32> to vector<16x64xf32>
    %177 = vector.extract_strided_slice %140 {offsets = [144, 0], sizes = [16, 64], strides = [1, 1]} : vector<256x64xf32> to vector<16x64xf32>
    %178 = tpu.concatenate %176, %177 in 1 : vector<16x64xf32>, vector<16x64xf32> -> vector<16x128xf32>
    %179 = arith.truncf %178 : vector<16x128xf32> to vector<16x128xbf16>
    %180 = vector.extract_strided_slice %140 {offsets = [208, 0], sizes = [16, 64], strides = [1, 1]} : vector<256x64xf32> to vector<16x64xf32>
    %181 = tpu.transpose %180, [1, 0] : vector<16x64xf32> -> vector<64x16xf32>
    %182 = arith.truncf %181 : vector<64x16xf32> to vector<64x16xbf16>
    %183 = vector.extract_strided_slice %143 {offsets = [0, 16], sizes = [64, 16], strides = [1, 1]} : vector<64x64xbf16> to vector<64x16xbf16>
    %cst_42 = arith.constant dense<0.000000e+00> : vector<64x128xf32>
    %184 = tpu.matmul %183, %179, %cst_42 {dimension_numbers = #tpu.dot_dimension_numbers<[1], [0], [0], [1], [0, 0, 1, 1], [], []>} : vector<64x16xbf16>, vector<16x128xbf16>, vector<64x128xf32> -> vector<64x128xf32>
    %185 = vector.extract_strided_slice %184 {offsets = [0, 0], sizes = [64, 64], strides = [1, 1]} : vector<64x128xf32> to vector<64x64xf32>
    %186 = vector.extract_strided_slice %184 {offsets = [0, 64], sizes = [64, 64], strides = [1, 1]} : vector<64x128xf32> to vector<64x64xf32>
    %187 = arith.mulf %185, %185 : vector<64x64xf32>
    %188 = arith.mulf %186, %186 : vector<64x64xf32>
    %189 = arith.addf %187, %188 : vector<64x64xf32>
    %190 = math.sqrt %189 : vector<64x64xf32>
    %cst_43 = arith.constant dense<0xFF800000> : vector<64xf32>
    %191 = vector.multi_reduction <maximumf>, %190, %cst_43 [1] : vector<64x64xf32> to vector<64xf32>
    %192 = vector.shape_cast %191 : vector<64xf32> to vector<64x1xf32>
    %193 = vector.broadcast %192 : vector<64x1xf32> to vector<64x64xf32>
    %194 = arith.subf %190, %193 : vector<64x64xf32>
    %195 = math.exp %194 : vector<64x64xf32>
    %cst_44 = arith.constant dense<0.000000e+00> : vector<64xf32>
    %196 = vector.multi_reduction <add>, %195, %cst_44 [1] : vector<64x64xf32> to vector<64xf32>
    %197 = vector.shape_cast %196 : vector<64xf32> to vector<64x1xf32>
    %198 = tpu.reciprocal %197 {approx = true} : vector<64x1xf32> -> vector<64x1xf32>
    %199 = vector.broadcast %198 : vector<64x1xf32> to vector<64x64xf32>
    %200 = arith.mulf %195, %199 : vector<64x64xf32>
    %201 = arith.truncf %200 : vector<64x64xf32> to vector<64x64xbf16>
    %cst_45 = arith.constant dense<0.000000e+00> : vector<64x16xf32>
    %202 = tpu.matmul %201, %182, %cst_45 {dimension_numbers = #tpu.dot_dimension_numbers<[1], [0], [0], [1], [0, 0, 1, 1], [], []>} : vector<64x64xbf16>, vector<64x16xbf16>, vector<64x16xf32> -> vector<64x16xf32>
    %c80 = arith.constant 80 : index
    %c0_46 = arith.constant 0 : index
    %203 = vector.load %arg4[%c80, %c0_46] : memref<128x32xbf16, #tpu.memory_space<vmem>>, vector<16x32xbf16>
    %204 = arith.truncf %202 : vector<64x16xf32> to vector<64x16xbf16>
    %cst_47 = arith.constant dense<0.000000e+00> : vector<64x32xf32>
    %205 = tpu.matmul %204, %203, %cst_47 {dimension_numbers = #tpu.dot_dimension_numbers<[1], [0], [0], [1], [0, 0, 1, 1], [], []>} : vector<64x16xbf16>, vector<16x32xbf16>, vector<64x32xf32> -> vector<64x32xf32>
    %206 = arith.addf %175, %205 : vector<64x32xf32>
    %207 = vector.extract_strided_slice %140 {offsets = [96, 0], sizes = [16, 64], strides = [1, 1]} : vector<256x64xf32> to vector<16x64xf32>
    %208 = vector.extract_strided_slice %140 {offsets = [160, 0], sizes = [16, 64], strides = [1, 1]} : vector<256x64xf32> to vector<16x64xf32>
    %209 = tpu.concatenate %207, %208 in 1 : vector<16x64xf32>, vector<16x64xf32> -> vector<16x128xf32>
    %210 = arith.truncf %209 : vector<16x128xf32> to vector<16x128xbf16>
    %211 = vector.extract_strided_slice %140 {offsets = [224, 0], sizes = [16, 64], strides = [1, 1]} : vector<256x64xf32> to vector<16x64xf32>
    %212 = tpu.transpose %211, [1, 0] : vector<16x64xf32> -> vector<64x16xf32>
    %213 = arith.truncf %212 : vector<64x16xf32> to vector<64x16xbf16>
    %214 = vector.extract_strided_slice %143 {offsets = [0, 32], sizes = [64, 16], strides = [1, 1]} : vector<64x64xbf16> to vector<64x16xbf16>
    %cst_48 = arith.constant dense<0.000000e+00> : vector<64x128xf32>
    %215 = tpu.matmul %214, %210, %cst_48 {dimension_numbers = #tpu.dot_dimension_numbers<[1], [0], [0], [1], [0, 0, 1, 1], [], []>} : vector<64x16xbf16>, vector<16x128xbf16>, vector<64x128xf32> -> vector<64x128xf32>
    %216 = vector.extract_strided_slice %215 {offsets = [0, 0], sizes = [64, 64], strides = [1, 1]} : vector<64x128xf32> to vector<64x64xf32>
    %217 = vector.extract_strided_slice %215 {offsets = [0, 64], sizes = [64, 64], strides = [1, 1]} : vector<64x128xf32> to vector<64x64xf32>
    %218 = arith.mulf %216, %216 : vector<64x64xf32>
    %219 = arith.mulf %217, %217 : vector<64x64xf32>
    %220 = arith.addf %218, %219 : vector<64x64xf32>
    %221 = math.sqrt %220 : vector<64x64xf32>
    %cst_49 = arith.constant dense<0xFF800000> : vector<64xf32>
    %222 = vector.multi_reduction <maximumf>, %221, %cst_49 [1] : vector<64x64xf32> to vector<64xf32>
    %223 = vector.shape_cast %222 : vector<64xf32> to vector<64x1xf32>
    %224 = vector.broadcast %223 : vector<64x1xf32> to vector<64x64xf32>
    %225 = arith.subf %221, %224 : vector<64x64xf32>
    %226 = math.exp %225 : vector<64x64xf32>
    %cst_50 = arith.constant dense<0.000000e+00> : vector<64xf32>
    %227 = vector.multi_reduction <add>, %226, %cst_50 [1] : vector<64x64xf32> to vector<64xf32>
    %228 = vector.shape_cast %227 : vector<64xf32> to vector<64x1xf32>
    %229 = tpu.reciprocal %228 {approx = true} : vector<64x1xf32> -> vector<64x1xf32>
    %230 = vector.broadcast %229 : vector<64x1xf32> to vector<64x64xf32>
    %231 = arith.mulf %226, %230 : vector<64x64xf32>
    %232 = arith.truncf %231 : vector<64x64xf32> to vector<64x64xbf16>
    %cst_51 = arith.constant dense<0.000000e+00> : vector<64x16xf32>
    %233 = tpu.matmul %232, %213, %cst_51 {dimension_numbers = #tpu.dot_dimension_numbers<[1], [0], [0], [1], [0, 0, 1, 1], [], []>} : vector<64x64xbf16>, vector<64x16xbf16>, vector<64x16xf32> -> vector<64x16xf32>
    %c96 = arith.constant 96 : index
    %c0_52 = arith.constant 0 : index
    %234 = vector.load %arg4[%c96, %c0_52] : memref<128x32xbf16, #tpu.memory_space<vmem>>, vector<16x32xbf16>
    %235 = arith.truncf %233 : vector<64x16xf32> to vector<64x16xbf16>
    %cst_53 = arith.constant dense<0.000000e+00> : vector<64x32xf32>
    %236 = tpu.matmul %235, %234, %cst_53 {dimension_numbers = #tpu.dot_dimension_numbers<[1], [0], [0], [1], [0, 0, 1, 1], [], []>} : vector<64x16xbf16>, vector<16x32xbf16>, vector<64x32xf32> -> vector<64x32xf32>
    %237 = arith.addf %206, %236 : vector<64x32xf32>
    %238 = vector.extract_strided_slice %140 {offsets = [112, 0], sizes = [16, 64], strides = [1, 1]} : vector<256x64xf32> to vector<16x64xf32>
    %239 = vector.extract_strided_slice %140 {offsets = [176, 0], sizes = [16, 64], strides = [1, 1]} : vector<256x64xf32> to vector<16x64xf32>
    %240 = tpu.concatenate %238, %239 in 1 : vector<16x64xf32>, vector<16x64xf32> -> vector<16x128xf32>
    %241 = arith.truncf %240 : vector<16x128xf32> to vector<16x128xbf16>
    %242 = vector.extract_strided_slice %140 {offsets = [240, 0], sizes = [16, 64], strides = [1, 1]} : vector<256x64xf32> to vector<16x64xf32>
    %243 = tpu.transpose %242, [1, 0] : vector<16x64xf32> -> vector<64x16xf32>
    %244 = arith.truncf %243 : vector<64x16xf32> to vector<64x16xbf16>
    %245 = vector.extract_strided_slice %143 {offsets = [0, 48], sizes = [64, 16], strides = [1, 1]} : vector<64x64xbf16> to vector<64x16xbf16>
    %cst_54 = arith.constant dense<0.000000e+00> : vector<64x128xf32>
    %246 = tpu.matmul %245, %241, %cst_54 {dimension_numbers = #tpu.dot_dimension_numbers<[1], [0], [0], [1], [0, 0, 1, 1], [], []>} : vector<64x16xbf16>, vector<16x128xbf16>, vector<64x128xf32> -> vector<64x128xf32>
    %247 = vector.extract_strided_slice %246 {offsets = [0, 0], sizes = [64, 64], strides = [1, 1]} : vector<64x128xf32> to vector<64x64xf32>
    %248 = vector.extract_strided_slice %246 {offsets = [0, 64], sizes = [64, 64], strides = [1, 1]} : vector<64x128xf32> to vector<64x64xf32>
    %249 = arith.mulf %247, %247 : vector<64x64xf32>
    %250 = arith.mulf %248, %248 : vector<64x64xf32>
    %251 = arith.addf %249, %250 : vector<64x64xf32>
    %252 = math.sqrt %251 : vector<64x64xf32>
    %cst_55 = arith.constant dense<0xFF800000> : vector<64xf32>
    %253 = vector.multi_reduction <maximumf>, %252, %cst_55 [1] : vector<64x64xf32> to vector<64xf32>
    %254 = vector.shape_cast %253 : vector<64xf32> to vector<64x1xf32>
    %255 = vector.broadcast %254 : vector<64x1xf32> to vector<64x64xf32>
    %256 = arith.subf %252, %255 : vector<64x64xf32>
    %257 = math.exp %256 : vector<64x64xf32>
    %cst_56 = arith.constant dense<0.000000e+00> : vector<64xf32>
    %258 = vector.multi_reduction <add>, %257, %cst_56 [1] : vector<64x64xf32> to vector<64xf32>
    %259 = vector.shape_cast %258 : vector<64xf32> to vector<64x1xf32>
    %260 = tpu.reciprocal %259 {approx = true} : vector<64x1xf32> -> vector<64x1xf32>
    %261 = vector.broadcast %260 : vector<64x1xf32> to vector<64x64xf32>
    %262 = arith.mulf %257, %261 : vector<64x64xf32>
    %263 = arith.truncf %262 : vector<64x64xf32> to vector<64x64xbf16>
    %cst_57 = arith.constant dense<0.000000e+00> : vector<64x16xf32>
    %264 = tpu.matmul %263, %244, %cst_57 {dimension_numbers = #tpu.dot_dimension_numbers<[1], [0], [0], [1], [0, 0, 1, 1], [], []>} : vector<64x64xbf16>, vector<64x16xbf16>, vector<64x16xf32> -> vector<64x16xf32>
    %c112 = arith.constant 112 : index
    %c0_58 = arith.constant 0 : index
    %265 = vector.load %arg4[%c112, %c0_58] : memref<128x32xbf16, #tpu.memory_space<vmem>>, vector<16x32xbf16>
    %266 = arith.truncf %264 : vector<64x16xf32> to vector<64x16xbf16>
    %cst_59 = arith.constant dense<0.000000e+00> : vector<64x32xf32>
    %267 = tpu.matmul %266, %265, %cst_59 {dimension_numbers = #tpu.dot_dimension_numbers<[1], [0], [0], [1], [0, 0, 1, 1], [], []>} : vector<64x16xbf16>, vector<16x32xbf16>, vector<64x32xf32> -> vector<64x32xf32>
    %268 = arith.addf %237, %267 : vector<64x32xf32>
    %269 = tpu.transpose %268, [1, 0] : vector<64x32xf32> -> vector<32x64xf32>
    %c0_60 = arith.constant 0 : index
    %c0_61 = arith.constant 0 : index
    %270 = vector.load %arg5[%c0_60, %c0_61] : memref<10x33xf32, #tpu.memory_space<vmem>>, vector<10x33xf32>
    %271 = vector.extract_strided_slice %270 {offsets = [0, 0], sizes = [10, 32], strides = [1, 1]} : vector<10x33xf32> to vector<10x32xf32>
    %cst_62 = arith.constant dense<0.000000e+00> : vector<10x64xf32>
    %272 = tpu.matmul %271, %269, %cst_62 {dimension_numbers = #tpu.dot_dimension_numbers<[1], [0], [0], [1], [0, 0, 1, 1], [], []>} : vector<10x32xf32>, vector<32x64xf32>, vector<10x64xf32> -> vector<10x64xf32>
    %273 = vector.extract_strided_slice %270 {offsets = [0, 32], sizes = [10, 1], strides = [1, 1]} : vector<10x33xf32> to vector<10x1xf32>
    %274 = vector.broadcast %273 : vector<10x1xf32> to vector<10x64xf32>
    %275 = arith.addf %272, %274 : vector<10x64xf32>
    %276 = vector.extract_strided_slice %275 {offsets = [0, 0], sizes = [1, 64], strides = [1, 1]} : vector<10x64xf32> to vector<1x64xf32>
    %cst_63 = arith.constant dense<0xFF800000> : vector<1xf32>
    %277 = vector.multi_reduction <maximumf>, %276, %cst_63 [1] : vector<1x64xf32> to vector<1xf32>
    %278 = vector.shape_cast %277 : vector<1xf32> to vector<1x1xf32>
    %279 = vector.broadcast %278 : vector<1x1xf32> to vector<1x64xf32>
    %280 = arith.subf %276, %279 : vector<1x64xf32>
    %281 = math.exp %280 : vector<1x64xf32>
    %cst_64 = arith.constant dense<0.000000e+00> : vector<1xf32>
    %282 = vector.multi_reduction <add>, %281, %cst_64 [1] : vector<1x64xf32> to vector<1xf32>
    %283 = vector.shape_cast %282 : vector<1xf32> to vector<1x1xf32>
    %284 = vector.broadcast %283 : vector<1x1xf32> to vector<1x64xf32>
    %285 = arith.divf %281, %284 : vector<1x64xf32>
    %cst_65 = arith.constant dense<0.000000e+00> : vector<1x3xf32>
    %286 = tpu.matmul %285, %2, %cst_65 {dimension_numbers = #tpu.dot_dimension_numbers<[1], [1], [0], [0], [0, 0, 1, 0], [], []>} : vector<1x64xf32>, vector<3x64xf32>, vector<1x3xf32> -> vector<1x3xf32>
    %287 = vector.extract_strided_slice %275 {offsets = [1, 0], sizes = [9, 64], strides = [1, 1]} : vector<10x64xf32> to vector<9x64xf32>
    %cst_66 = arith.constant 0.000000e+00 : f32
    %288 = vector.broadcast %cst_66 : f32 to vector<1x64xf32>
    %289 = vector.extract_strided_slice %2 {offsets = [0, 0], sizes = [1, 64], strides = [1, 1]} : vector<3x64xf32> to vector<1x64xf32>
    %290 = vector.extract_strided_slice %286 {offsets = [0, 0], sizes = [1, 1], strides = [1, 1]} : vector<1x3xf32> to vector<1x1xf32>
    %291 = vector.broadcast %290 : vector<1x1xf32> to vector<1x64xf32>
    %292 = arith.subf %289, %291 : vector<1x64xf32>
    %293 = arith.mulf %292, %292 : vector<1x64xf32>
    %294 = arith.addf %288, %293 : vector<1x64xf32>
    %295 = vector.extract_strided_slice %2 {offsets = [1, 0], sizes = [1, 64], strides = [1, 1]} : vector<3x64xf32> to vector<1x64xf32>
    %296 = vector.extract_strided_slice %286 {offsets = [0, 1], sizes = [1, 1], strides = [1, 1]} : vector<1x3xf32> to vector<1x1xf32>
    %297 = vector.broadcast %296 : vector<1x1xf32> to vector<1x64xf32>
    %298 = arith.subf %295, %297 : vector<1x64xf32>
    %299 = arith.mulf %298, %298 : vector<1x64xf32>
    %300 = arith.addf %294, %299 : vector<1x64xf32>
    %301 = vector.extract_strided_slice %2 {offsets = [2, 0], sizes = [1, 64], strides = [1, 1]} : vector<3x64xf32> to vector<1x64xf32>
    %302 = vector.extract_strided_slice %286 {offsets = [0, 2], sizes = [1, 1], strides = [1, 1]} : vector<1x3xf32> to vector<1x1xf32>
    %303 = vector.broadcast %302 : vector<1x1xf32> to vector<1x64xf32>
    %304 = arith.subf %301, %303 : vector<1x64xf32>
    %305 = arith.mulf %304, %304 : vector<1x64xf32>
    %306 = arith.addf %300, %305 : vector<1x64xf32>
    %cst_67 = arith.constant 4.000000e-04 : f32
    %307 = vector.broadcast %cst_67 : f32 to vector<1x64xf32>
    %308 = arith.cmpf olt, %306, %307 : vector<1x64xf32>
    %309 = arith.extui %308 : vector<1x64xi1> to vector<1x64xi32>
    %310 = arith.sitofp %309 : vector<1x64xi32> to vector<1x64xf32>
    %cst_68 = arith.constant dense<0.000000e+00> : vector<1xf32>
    %311 = vector.multi_reduction <add>, %310, %cst_68 [1] : vector<1x64xf32> to vector<1xf32>
    %312 = vector.shape_cast %311 : vector<1xf32> to vector<1x1xf32>
    %cst_69 = arith.constant dense<0.000000e+00> : vector<1x9xf32>
    %313 = tpu.matmul %310, %287, %cst_69 {dimension_numbers = #tpu.dot_dimension_numbers<[1], [1], [0], [0], [0, 0, 1, 0], [], []>} : vector<1x64xf32>, vector<9x64xf32>, vector<1x9xf32> -> vector<1x9xf32>
    %cst_70 = arith.constant 1.000000e+00 : f32
    %314 = vector.broadcast %cst_70 : f32 to vector<1x64xf32>
    %cst_71 = arith.constant dense<0.000000e+00> : vector<1x9xf32>
    %315 = tpu.matmul %314, %287, %cst_71 {dimension_numbers = #tpu.dot_dimension_numbers<[1], [1], [0], [0], [0, 0, 1, 0], [], []>} : vector<1x64xf32>, vector<9x64xf32>, vector<1x9xf32> -> vector<1x9xf32>
    %cst_72 = arith.constant 1.562500e-02 : f32
    %316 = vector.broadcast %cst_72 : f32 to vector<1x9xf32>
    %317 = arith.mulf %315, %316 : vector<1x9xf32>
    %cst_73 = arith.constant 1.000000e+00 : f32
    %318 = vector.broadcast %cst_73 : f32 to vector<1x1xf32>
    %319 = arith.maximumf %312, %318 : vector<1x1xf32>
    %320 = vector.broadcast %319 : vector<1x1xf32> to vector<1x9xf32>
    %321 = arith.divf %313, %320 : vector<1x9xf32>
    %cst_74 = arith.constant 0.000000e+00 : f32
    %322 = vector.broadcast %cst_74 : f32 to vector<1x1xf32>
    %323 = arith.cmpf ogt, %312, %322 : vector<1x1xf32>
    %324 = vector.shape_cast %323 : vector<1x1xi1> to vector<1x1xi1>
    %325 = vector.broadcast %324 : vector<1x1xi1> to vector<1x9xi1>
    %326 = arith.select %325, %321, %317 : vector<1x9xi1>, vector<1x9xf32>
    %c0_75 = arith.constant 0 : index
    %c0_76 = arith.constant 0 : index
    %c0_77 = arith.constant 0 : index
    %327 = vector.load %arg6[%c0_75, %c0_76, %c0_77] : memref<1x1x16xf32, #tpu.memory_space<vmem>>, vector<1x1x3xf32>
    %328 = vector.shape_cast %327 : vector<1x1x3xf32> to vector<1x3xf32>
    %329 = vector.shape_cast %286 : vector<1x3xf32> to vector<1x1x3xf32>
    tpu.vector_store %arg6[%c0_75, %c0_76, %c0_77], %329 {strides = array<i32>} : memref<1x1x16xf32, #tpu.memory_space<vmem>>, vector<1x1x3xf32>,
    %330 = vector.extract_strided_slice %326 {offsets = [0, 0], sizes = [1, 3], strides = [1, 1]} : vector<1x9xf32> to vector<1x3xf32>
    %331 = arith.mulf %330, %330 : vector<1x3xf32>
    %cst_78 = arith.constant dense<0.000000e+00> : vector<1xf32>
    %332 = vector.multi_reduction <add>, %331, %cst_78 [1] : vector<1x3xf32> to vector<1xf32>
    %333 = vector.shape_cast %332 : vector<1xf32> to vector<1x1xf32>
    %334 = math.sqrt %333 : vector<1x1xf32>
    %cst_79 = arith.constant 9.99999993E-9 : f32
    %335 = vector.broadcast %cst_79 : f32 to vector<1x1xf32>
    %336 = arith.addf %334, %335 : vector<1x1xf32>
    %337 = vector.broadcast %336 : vector<1x1xf32> to vector<1x3xf32>
    %338 = arith.divf %330, %337 : vector<1x3xf32>
    %c0_80 = arith.constant 0 : index
    %c0_81 = arith.constant 0 : index
    %c3 = arith.constant 3 : index
    %339 = vector.load %arg6[%c0_80, %c0_81, %c3] : memref<1x1x16xf32, #tpu.memory_space<vmem>>, vector<1x1x3xf32>
    %340 = vector.shape_cast %339 : vector<1x1x3xf32> to vector<1x3xf32>
    %341 = vector.shape_cast %338 : vector<1x3xf32> to vector<1x1x3xf32>
    tpu.vector_store %arg6[%c0_80, %c0_81, %c3], %341 {strides = array<i32>} : memref<1x1x16xf32, #tpu.memory_space<vmem>>, vector<1x1x3xf32>,
    %342 = vector.extract_strided_slice %326 {offsets = [0, 3], sizes = [1, 3], strides = [1, 1]} : vector<1x9xf32> to vector<1x3xf32>
    %343 = arith.mulf %342, %342 : vector<1x3xf32>
    %cst_82 = arith.constant dense<0.000000e+00> : vector<1xf32>
    %344 = vector.multi_reduction <add>, %343, %cst_82 [1] : vector<1x3xf32> to vector<1xf32>
    %345 = vector.shape_cast %344 : vector<1xf32> to vector<1x1xf32>
    %346 = math.sqrt %345 : vector<1x1xf32>
    %cst_83 = arith.constant 9.99999993E-9 : f32
    %347 = vector.broadcast %cst_83 : f32 to vector<1x1xf32>
    %348 = arith.addf %346, %347 : vector<1x1xf32>
    %349 = vector.broadcast %348 : vector<1x1xf32> to vector<1x3xf32>
    %350 = arith.divf %342, %349 : vector<1x3xf32>
    %c0_84 = arith.constant 0 : index
    %c0_85 = arith.constant 0 : index
    %c6 = arith.constant 6 : index
    %351 = vector.load %arg6[%c0_84, %c0_85, %c6] : memref<1x1x16xf32, #tpu.memory_space<vmem>>, vector<1x1x3xf32>
    %352 = vector.shape_cast %351 : vector<1x1x3xf32> to vector<1x3xf32>
    %353 = vector.shape_cast %350 : vector<1x3xf32> to vector<1x1x3xf32>
    tpu.vector_store %arg6[%c0_84, %c0_85, %c6], %353 {strides = array<i32>} : memref<1x1x16xf32, #tpu.memory_space<vmem>>, vector<1x1x3xf32>,
    %354 = vector.extract_strided_slice %326 {offsets = [0, 6], sizes = [1, 3], strides = [1, 1]} : vector<1x9xf32> to vector<1x3xf32>
    %355 = arith.mulf %354, %354 : vector<1x3xf32>
    %cst_86 = arith.constant dense<0.000000e+00> : vector<1xf32>
    %356 = vector.multi_reduction <add>, %355, %cst_86 [1] : vector<1x3xf32> to vector<1xf32>
    %357 = vector.shape_cast %356 : vector<1xf32> to vector<1x1xf32>
    %358 = math.sqrt %357 : vector<1x1xf32>
    %cst_87 = arith.constant 9.99999993E-9 : f32
    %359 = vector.broadcast %cst_87 : f32 to vector<1x1xf32>
    %360 = arith.addf %358, %359 : vector<1x1xf32>
    %361 = vector.broadcast %360 : vector<1x1xf32> to vector<1x3xf32>
    %362 = arith.divf %354, %361 : vector<1x3xf32>
    %c0_88 = arith.constant 0 : index
    %c0_89 = arith.constant 0 : index
    %c9 = arith.constant 9 : index
    %363 = vector.load %arg6[%c0_88, %c0_89, %c9] : memref<1x1x16xf32, #tpu.memory_space<vmem>>, vector<1x1x3xf32>
    %364 = vector.shape_cast %363 : vector<1x1x3xf32> to vector<1x3xf32>
    %365 = vector.shape_cast %362 : vector<1x3xf32> to vector<1x1x3xf32>
    tpu.vector_store %arg6[%c0_88, %c0_89, %c9], %365 {strides = array<i32>} : memref<1x1x16xf32, #tpu.memory_space<vmem>>, vector<1x1x3xf32>,
    %cst_90 = arith.constant 0.000000e+00 : f32
    %366 = vector.broadcast %cst_90 : f32 to vector<1x4xf32>
    %c0_91 = arith.constant 0 : index
    %c0_92 = arith.constant 0 : index
    %c12 = arith.constant 12 : index
    %367 = vector.load %arg6[%c0_91, %c0_92, %c12] : memref<1x1x16xf32, #tpu.memory_space<vmem>>, vector<1x1x4xf32>
    %368 = vector.shape_cast %367 : vector<1x1x4xf32> to vector<1x4xf32>
    %369 = vector.shape_cast %366 : vector<1x4xf32> to vector<1x1x4xf32>
    tpu.vector_store %arg6[%c0_91, %c0_92, %c12], %369 {strides = array<i32>} : memref<1x1x16xf32, #tpu.memory_space<vmem>>, vector<1x1x4xf32>,
    return
  }
  func.func @transform_0(%arg0: i32) -> (i32, i32, i32) {
    %c0_i32 = arith.constant 0 : i32
    %c0_i32_0 = arith.constant 0 : i32
    %c0_i32_1 = arith.constant 0 : i32
    return %arg0, %c0_i32, %c0_i32_0 : i32, i32, i32
  }
  func.func @transform_1(%arg0: i32) -> (i32, i32) {
    %c0_i32 = arith.constant 0 : i32
    %c0_i32_0 = arith.constant 0 : i32
    %c0_i32_1 = arith.constant 0 : i32
    return %c0_i32, %c0_i32_0 : i32, i32
  }
  func.func @transform_2(%arg0: i32) -> (i32, i32) {
    %c0_i32 = arith.constant 0 : i32
    %c0_i32_0 = arith.constant 0 : i32
    %c0_i32_1 = arith.constant 0 : i32
    return %c0_i32, %c0_i32_0 : i32, i32
  }
  func.func @transform_3(%arg0: i32) -> (i32, i32) {
    %c0_i32 = arith.constant 0 : i32
    %c0_i32_0 = arith.constant 0 : i32
    %c0_i32_1 = arith.constant 0 : i32
    return %c0_i32, %c0_i32_0 : i32, i32
  }
  func.func @transform_4(%arg0: i32) -> (i32, i32) {
    %c0_i32 = arith.constant 0 : i32
    %c0_i32_0 = arith.constant 0 : i32
    %c0_i32_1 = arith.constant 0 : i32
    return %c0_i32, %c0_i32_0 : i32, i32
  }
  func.func @transform_5(%arg0: i32) -> (i32, i32, i32) {
    %c0_i32 = arith.constant 0 : i32
    %c0_i32_0 = arith.constant 0 : i32
    %c0_i32_1 = arith.constant 0 : i32
    return %arg0, %c0_i32, %c0_i32_0 : i32, i32, i32
  }
}

</mosaic_0001>

<llo_original>
// kernel: tpu_custom_call.1
$region0: #{tpu_custom_call.1}
  #allocation0 [shape = 'u32[]', space=smem, size = 0x4, offset = 0x4, fixed_abs, tag = 'smem constant byte address 0x4 - core index']
  #allocation1 [shape = 'u32[144,128]{1,0:T(1,128)}', space=vmem, size = 0x12000, scoped, tag = 'internal scratch']
  %s0 = inlined_call_operand.vmem [shape: f32[2,7,64], index: 0, kind: input, shape index: {}]
  %s1 = inlined_call_operand.vmem [shape: f32[32,4], index: 1, kind: input, shape index: {}]
  %s2 = inlined_call_operand.vmem [shape: bf16[512,32], index: 2, kind: input, shape index: {}]
  %s3 = inlined_call_operand.vmem [shape: bf16[128,32], index: 3, kind: input, shape index: {}]
  %s4 = inlined_call_operand.vmem [shape: f32[10,33], index: 4, kind: input, shape index: {}]
  %s5 = inlined_call_operand.hbm [shape: f32[2,1,16], index: 5, kind: output, shape index: {}]
  %s6 = sld [smem:[#allocation0]]
  $region53: #{tpu_custom_call.1} parent=0
    _
  %s8 = ssub.s32 1, %s6
  %s9 = scalar_select 0, %s8, %s6
  $region1: #{tpu_custom_call.1} parent=0
    #allocation2 [shape = 'u8[1024]{0}', space=vmem, size = 0x400, scoped, tag = 'output window, operand 0']
    #allocation3 [shape = 's32[2]{0}', space=sflag, size = 0x8, scoped, tag = 'scoped memory for tpu_custom_call.1']
    %10 = vsyncpa [#allocation3], 0
    %s11 = scalar_lea.sflag [#allocation3], 1
    %12 = vsyncpa %s11, 0
    loop: start=0, step=1, limit=4
    $region2: #{tpu_custom_call.1} parent=1 // loop_pre_header
      _
    $region3: #{tpu_custom_call.1} parent=1 // loop_header
      %s14 = sphi 0, %s18
      %p15 = scmp.ge.s32.totalorder %s14, 4
      %s24 = sphi 0, %s26
      %s27 = sphi 0, %s24
      %s28 = sphi 0, %s27
      %s44 = sphi 0, %s28
      %s48 = sphi 0, %s48
      %s50 = sphi 0, %s48
      %s51 = sphi 0, %s50
      %s65 = sphi 0, %s51
      %s69 = sphi 0, %s69
      %s71 = sphi 0, %s69
      %s72 = sphi 0, %s71
      %s86 = sphi 0, %s72
      %s90 = sphi 0, %s90
      %s92 = sphi 0, %s90
      %s93 = sphi 0, %s92
      %s107 = sphi 0, %s93
      %s111 = sphi 0, %s111
      %s113 = sphi 0, %s111
      %s114 = sphi 0, %s113
      %s128 = sphi 0, %s114
      %s134 = sphi 0, %s136
      %s137 = sphi 0, %s134
      %s138 = sphi 0, %s137
      %s154 = sphi 0, %s138
    $region4: #{tpu_custom_call.1} parent=1 // loop_header_branch
      %17 = sbr.rel (%p15) target = $region8
    $region5: #{tpu_custom_call.1} parent=1 // loop_body
      %s19 = ssub.s32 %s14, 1
      %s20 = ssub.s32 %s14, 2
      %s21 = sadd.s32 %s14, 1
      %s22 = ssub.s32 %s14, %s21
      %p23 = scmp.eq.s32.totalorder %s22, 0
      %s25 = sadd.s32 %s24, 1
      %s26 = scalar_select %p23, %s24, %s25
      %p29 = pneg %p23
      %p30 = scmp.eq.s32.totalorder %s14, 1
      %p31 = por %p29, %p30
      %p32 = scmp.ne.s32.totalorder %s24, %s27
      %p33 = scmp.eq.s32.totalorder %s14, 0
      %p34 = por %p32, %p33
      %p35 = scmp.ne.s32.totalorder %s24, %s27
      %p36 = scmp.eq.s32.totalorder %s19, 1
      %p37 = por %p35, %p36
      %p38 = scmp.ne.s32.totalorder %s27, %s28
      %p39 = scmp.eq.s32.totalorder %s19, 0
      %p40 = por %p38, %p39
      %p41 = scmp.ne.s32.totalorder %s27, %s28
      %p42 = scmp.eq.s32.totalorder %s20, 1
      %p43 = por %p41, %p42
      %p45 = scmp.ne.s32.totalorder %s28, %s44
      %p46 = scmp.eq.s32.totalorder %s20, 0
      %p47 = por %p45, %p46
      %s49 = sadd.s32 %s48, 1
      %p52 = scmp.eq.s32.totalorder %s14, 1
      %p53 = scmp.ne.s32.totalorder %s48, %s50
      %p54 = scmp.eq.s32.totalorder %s14, 0
      %p55 = por %p53, %p54
      %p56 = scmp.ne.s32.totalorder %s48, %s50
      %p57 = scmp.eq.s32.totalorder %s19, 1
      %p58 = por %p56, %p57
      %p59 = scmp.ne.s32.totalorder %s50, %s51
      %p60 = scmp.eq.s32.totalorder %s19, 0
      %p61 = por %p59, %p60
      %p62 = scmp.ne.s32.totalorder %s50, %s51
      %p63 = scmp.eq.s32.totalorder %s20, 1
      %p64 = por %p62, %p63
      %p66 = scmp.ne.s32.totalorder %s51, %s65
      %p67 = scmp.eq.s32.totalorder %s20, 0
      %p68 = por %p66, %p67
      %s70 = sadd.s32 %s69, 1
      %p73 = scmp.eq.s32.totalorder %s14, 1
      %p74 = scmp.ne.s32.totalorder %s69, %s71
      %p75 = scmp.eq.s32.totalorder %s14, 0
      %p76 = por %p74, %p75
      %p77 = scmp.ne.s32.totalorder %s69, %s71
      %p78 = scmp.eq.s32.totalorder %s19, 1
      %p79 = por %p77, %p78
      %p80 = scmp.ne.s32.totalorder %s71, %s72
      %p81 = scmp.eq.s32.totalorder %s19, 0
      %p82 = por %p80, %p81
      %p83 = scmp.ne.s32.totalorder %s71, %s72
      %p84 = scmp.eq.s32.totalorder %s20, 1
      %p85 = por %p83, %p84
      %p87 = scmp.ne.s32.totalorder %s72, %s86
      %p88 = scmp.eq.s32.totalorder %s20, 0
      %p89 = por %p87, %p88
      %s91 = sadd.s32 %s90, 1
      %p94 = scmp.eq.s32.totalorder %s14, 1
      %p95 = scmp.ne.s32.totalorder %s90, %s92
      %p96 = scmp.eq.s32.totalorder %s14, 0
      %p97 = por %p95, %p96
      %p98 = scmp.ne.s32.totalorder %s90, %s92
      %p99 = scmp.eq.s32.totalorder %s19, 1
      %p100 = por %p98, %p99
      %p101 = scmp.ne.s32.totalorder %s92, %s93
      %p102 = scmp.eq.s32.totalorder %s19, 0
      %p103 = por %p101, %p102
      %p104 = scmp.ne.s32.totalorder %s92, %s93
      %p105 = scmp.eq.s32.totalorder %s20, 1
      %p106 = por %p104, %p105
      %p108 = scmp.ne.s32.totalorder %s93, %s107
      %p109 = scmp.eq.s32.totalorder %s20, 0
      %p110 = por %p108, %p109
      %s112 = sadd.s32 %s111, 1
      %p115 = scmp.eq.s32.totalorder %s14, 1
      %p116 = scmp.ne.s32.totalorder %s111, %s113
      %p117 = scmp.eq.s32.totalorder %s14, 0
      %p118 = por %p116, %p117
      %p119 = scmp.ne.s32.totalorder %s111, %s113
      %p120 = scmp.eq.s32.totalorder %s19, 1
      %p121 = por %p119, %p120
      %p122 = scmp.ne.s32.totalorder %s113, %s114
      %p123 = scmp.eq.s32.totalorder %s19, 0
      %p124 = por %p122, %p123
      %p125 = scmp.ne.s32.totalorder %s113, %s114
      %p126 = scmp.eq.s32.totalorder %s20, 1
      %p127 = por %p125, %p126
      %p129 = scmp.ne.s32.totalorder %s114, %s128
      %p130 = scmp.eq.s32.totalorder %s20, 0
      %p131 = por %p129, %p130
      %s132 = ssub.s32 %s14, %s21
      %p133 = scmp.eq.s32.totalorder %s132, 0
      %s135 = sadd.s32 %s134, 1
      %s136 = scalar_select %p133, %s134, %s135
      %p139 = pneg %p133
      %p140 = scmp.eq.s32.totalorder %s14, 1
      %p141 = por %p139, %p140
      %p142 = scmp.ne.s32.totalorder %s134, %s137
      %p143 = scmp.eq.s32.totalorder %s14, 0
      %p144 = por %p142, %p143
      %p145 = scmp.ne.s32.totalorder %s134, %s137
      %p146 = scmp.eq.s32.totalorder %s19, 1
      %p147 = por %p145, %p146
      %p148 = scmp.ne.s32.totalorder %s137, %s138
      %p149 = scmp.eq.s32.totalorder %s19, 0
      %p150 = por %p148, %p149
      %p151 = scmp.ne.s32.totalorder %s137, %s138
      %p152 = scmp.eq.s32.totalorder %s20, 1
      %p153 = por %p151, %p152
      %p155 = scmp.ne.s32.totalorder %s138, %s154
      %p156 = scmp.eq.s32.totalorder %s20, 0
      %p157 = por %p155, %p156
      %p158 = scmp.le.s32.totalorder 1, %s14
      %p159 = scmp.lt.s32.totalorder %s14, 3
      %p160 = pnand %p158, %p159
      %p161 = pneg %p160
      // Predicated region
      $region9: #{tpu_custom_call.1} parent=5 // pred_check
        _
      $region10: #{tpu_custom_call.1} parent=5 // pred_check_branch
        %163 = sbr.rel (%p160) target = $region12
      $region11: #{tpu_custom_call.1} parent=5 // pred_region
        %s164 = ssub.s32 %s14, 1
        // Predicated region
        $region13: #{tpu_custom_call.1} parent=11 // pred_check
          %p165 = pneg %p61
        $region14: #{tpu_custom_call.1} parent=11 // pred_check_branch
          %167 = sbr.rel (%p165) target = $region16
        $region15: #{tpu_custom_call.1} parent=11 // pred_region
          _
        $region16: #{tpu_custom_call.1} parent=11 // pred_fallthru
          _
        // Predicated region
        $region17: #{tpu_custom_call.1} parent=11 // pred_check
          %p168 = pneg %p82
        $region18: #{tpu_custom_call.1} parent=11 // pred_check_branch
          %170 = sbr.rel (%p168) target = $region20
        $region19: #{tpu_custom_call.1} parent=11 // pred_region
          _
        $region20: #{tpu_custom_call.1} parent=11 // pred_fallthru
          _
        // Predicated region
        $region21: #{tpu_custom_call.1} parent=11 // pred_check
          %p171 = pneg %p103
        $region22: #{tpu_custom_call.1} parent=11 // pred_check_branch
          %173 = sbr.rel (%p171) target = $region24
        $region23: #{tpu_custom_call.1} parent=11 // pred_region
          _
        $region24: #{tpu_custom_call.1} parent=11 // pred_fallthru
          _
        // Predicated region
        $region25: #{tpu_custom_call.1} parent=11 // pred_check
          %p174 = pneg %p124
        $region26: #{tpu_custom_call.1} parent=11 // pred_check_branch
          %176 = sbr.rel (%p174) target = $region28
        $region27: #{tpu_custom_call.1} parent=11 // pred_region
          _
        $region28: #{tpu_custom_call.1} parent=11 // pred_fallthru
          _
      $region12: #{tpu_custom_call.1} parent=5 // pred_fallthru
        _
      %p177 = scmp.lt.s32.totalorder %s14, 2
      // Predicated region
      $region29: #{tpu_custom_call.1} parent=5 // pred_check
        %p178 = pneg %p177
      $region30: #{tpu_custom_call.1} parent=5 // pred_check_branch
        %180 = sbr.rel (%p178) target = $region32
      $region31: #{tpu_custom_call.1} parent=5 // pred_region
        // Predicated region
        $region33: #{tpu_custom_call.1} parent=31 // pred_check
          %p181 = pneg %p34
        $region34: #{tpu_custom_call.1} parent=31 // pred_check_branch
          %183 = sbr.rel (%p181) target = $region36
        $region35: #{tpu_custom_call.1} parent=31 // pred_region
          %p184 = scmp.lt.s32.totalorder %s14, 1
          %s185 = scalar_select %p184, %s14, 1
          %s186 = smul.addr %s185, 8
          %s187 = scalar_lea.vmem %s0, %s186
        $region36: #{tpu_custom_call.1} parent=31 // pred_fallthru
          _
      $region32: #{tpu_custom_call.1} parent=5 // pred_fallthru
        _
      %p188 = scmp.le.s32.totalorder 1, %s14
      %p189 = scmp.lt.s32.totalorder %s14, 3
      %p190 = pnand %p188, %p189
      %p191 = pneg %p190
      // Predicated region
      $region37: #{tpu_custom_call.1} parent=5 // pred_check
        _
      $region38: #{tpu_custom_call.1} parent=5 // pred_check_branch
        %193 = sbr.rel (%p190) target = $region40
      $region39: #{tpu_custom_call.1} parent=5 // pred_region
        %s194 = ssub.s32 %s14, 1
        %p195 = scmp.lt.s32.totalorder %s19, 1
        %s196 = scalar_select %p195, %s19, 1
        %s197 = smul.addr %s196, 8
        %s198 = scalar_lea.vmem %s0, %s197
        %p199 = pneg %p40
        %p200 = pneg %p37
        %p201 = pneg %p61
        %p202 = pneg %p58
        %p203 = pneg %p82
        %p204 = pneg %p79
        %p205 = pneg %p103
        %p206 = pneg %p100
        %p207 = pneg %p124
        %p208 = pneg %p121
        %p209 = pneg %p150
        %p210 = pneg %p147
        %s211 = sand.u32 %s137, 1
        %s212 = scalar_lea.sflag [#allocation3], %s211
        %s213 = sand.u32 %s137, 1
        %s214 = scalar_lea.vmem [#allocation2], %s213
        %p215 = scmp.lt.s32.totalorder %s19, 1
        %s216 = scalar_select %p215, %s19, 1
        %s217 = smul.addr %s216, 8
        %s218 = scalar_lea.vmem %s0, %s217
        %v220 = vld [vmem:[%s218] sm:$0x7f]
        %v221 = vld [vmem:[%s1] sm:$0xff]
        %v222 = vld [vmem:[%s1 + $0x8] sm:$0xff]
        %v223 = vld [vmem:[%s1 + $0x10] sm:$0xff]
        %v224 = vld [vmem:[%s1 + $0x18] sm:$0xff]
        %v226 = vrot.slane %v220, 3
        %vm227 = vcmask 31744
        %v229 = vsel %vm227, %v221, 0
        %v232 = vsel %vm227, %v222, 0
        %v235 = vsel %vm227, %v223, 0
        %v238 = vsel %vm227, %v224, 0
        %vm240 = vcmask 1043456
        %v241 = vsel %vm240, %v226, 0
        %243 = vmatprep.subr.mxu0 0.0
        %244 = vmatpush1.msra.mxu0 0.0
        %245 = vmatprep.subr.mxu0 0.0
        %246 = vmatpush1.msra.mxu0 0.0
        %247 = vmatprep.subr.mxu0 0.0
        %248 = vmatpush1.msra.mxu0 0.0
        %249 = vmatprep.subr.mxu0 0.0
        %250 = vmatpush1.msra.mxu0 0.0
        %251 = vmatprep.subr.mxu0 0.0
        %252 = vmatpush1.msra.mxu0 0.0
        %253 = vmatprep.subr.mxu0 0.0
        %254 = vmatpush1.msra.mxu0 0.0
        %255 = vmatprep.subr.mxu0 0.0
        %256 = vmatpush1.msra.mxu0 0.0
        %257 = vmatprep.subr.mxu0 0.0
        %258 = vmatpush1.msra.mxu0 0.0
        %259 = vmatprep.subr.mxu0 0.0
        %260 = vmatpush1.msra.mxu0 0.0
        %261 = vmatprep.subr.mxu0 0.0
        %262 = vmatpush1.msra.mxu0 0.0
        %263 = vmatprep.subr.mxu0 0.0
        %264 = vmatpush1.msra.mxu0 0.0
        %265 = vmatprep.subr.mxu0 0.0
        %266 = vmatpush1.msra.mxu0 0.0
        %267 = vmatprep.subr.mxu0 0.0
        %268 = vmatpush1.msra.mxu0 0.0
        %269 = vmatprep.subr.mxu0 0.0
        %270 = vmatpush1.msra.mxu0 0.0
        %271 = vmatprep.subr.mxu0 0.0
        %272 = vmatpush1.msra.mxu0 0.0
        %273 = vmatprep.subr.mxu0 0.0
        %274 = vmatpush1.msra.mxu0 %v241
        %275 = vmatprep.subr.mxu0 0.0
        %276 = vmatpush2.msra.mxu0 0.0
        %277 = vmatprep.subr.mxu0 0.0
        %278 = vmatpush2.msra.mxu0 0.0
        %279 = vmatprep.subr.mxu0 0.0
        %280 = vmatpush2.msra.mxu0 0.0
        %281 = vmatprep.subr.mxu0 0.0
        %282 = vmatpush2.msra.mxu0 0.0
        %283 = vmatprep.subr.mxu0 0.0
        %284 = vmatpush2.msra.mxu0 0.0
        %285 = vmatprep.subr.mxu0 0.0
        %286 = vmatpush2.msra.mxu0 0.0
        %287 = vmatprep.subr.mxu0 0.0
        %288 = vmatpush2.msra.mxu0 0.0
        %289 = vmatprep.subr.mxu0 0.0
        %290 = vmatpush2.msra.mxu0 0.0
        %291 = vmatprep.subr.mxu0 0.0
        %292 = vmatpush2.msra.mxu0 0.0
        %293 = vmatprep.subr.mxu0 0.0
        %294 = vmatpush2.msra.mxu0 0.0
        %295 = vmatprep.subr.mxu0 0.0
        %296 = vmatpush2.msra.mxu0 0.0
        %297 = vmatprep.subr.mxu0 0.0
        %298 = vmatpush2.msra.mxu0 0.0
        %299 = vmatprep.subr.mxu0 0.0
        %300 = vmatpush2.msra.mxu0 0.0
        %301 = vmatprep.subr.mxu0 0.0
        %302 = vmatpush2.msra.mxu0 0.0
        %303 = vmatprep.subr.mxu0 0.0
        %304 = vmatpush2.msra.mxu0 0.0
        %305 = vmatprep.subr.mxu0 0.0
        %306 = vmatpush2.msra.mxu0 0.0
        %307 = vmatprep.mubr.f32.mxu0 0.0
        %308 = vmatmul.mubr.f32.gmra.mxu0 %v229
        %v309 = vpop.f32.mrf.mxu0
        %v310 = vadd.f32 0.0, %v309
        %v311 = vpop.f32.mrf.mxu0
        %312 = vmatprep.mubr.f32.mxu0 0.0
        %313 = vmatmul.mubr.f32.gmra.mxu0 %v232
        %v314 = vpop.f32.mrf.mxu0
        %v315 = vadd.f32 0.0, %v314
        %v316 = vpop.f32.mrf.mxu0
        %317 = vmatprep.mubr.f32.mxu0 0.0
        %318 = vmatmul.mubr.f32.gmra.mxu0 %v235
        %v319 = vpop.f32.mrf.mxu0
        %v320 = vadd.f32 0.0, %v319
        %v321 = vpop.f32.mrf.mxu0
        %322 = vmatprep.mubr.f32.mxu0 0.0
        %323 = vmatmul.mubr.f32.gmra.mxu0 %v238
        %v324 = vpop.f32.mrf.mxu0
        %v325 = vadd.f32 0.0, %v324
        %v326 = vpop.f32.mrf.mxu0
        %327 = vdwg.mxu0
        %v328 = vld [vmem:[%s2] sm:$0xf]
        %v329 = vld [vmem:[%s2 + $0x4] sm:$0xf]
        %v330 = vld [vmem:[%s2 + $0x8] sm:$0xf]
        %v331 = vld [vmem:[%s2 + $0xc] sm:$0xf]
        %v332 = vld [vmem:[%s2 + $0x10] sm:$0xf]
        %v333 = vld [vmem:[%s2 + $0x14] sm:$0xf]
        %v334 = vld [vmem:[%s2 + $0x18] sm:$0xf]
        %v335 = vld [vmem:[%s2 + $0x1c] sm:$0xf]
        %v336 = vld [vmem:[%s2 + $0x20] sm:$0xf]
        %v337 = vld [vmem:[%s2 + $0x24] sm:$0xf]
        %v338 = vld [vmem:[%s2 + $0x28] sm:$0xf]
        %v339 = vld [vmem:[%s2 + $0x2c] sm:$0xf]
        %v340 = vld [vmem:[%s2 + $0x30] sm:$0xf]
        %v341 = vld [vmem:[%s2 + $0x34] sm:$0xf]
        %v342 = vld [vmem:[%s2 + $0x38] sm:$0xf]
        %v343 = vld [vmem:[%s2 + $0x3c] sm:$0xf]
        %v344 = vld [vmem:[%s2 + $0x40] sm:$0xf]
        %v345 = vld [vmem:[%s2 + $0x44] sm:$0xf]
        %v346 = vld [vmem:[%s2 + $0x48] sm:$0xf]
        %v347 = vld [vmem:[%s2 + $0x4c] sm:$0xf]
        %v348 = vld [vmem:[%s2 + $0x50] sm:$0xf]
        %v349 = vld [vmem:[%s2 + $0x54] sm:$0xf]
        %v350 = vld [vmem:[%s2 + $0x58] sm:$0xf]
        %v351 = vld [vmem:[%s2 + $0x5c] sm:$0xf]
        %v352 = vld [vmem:[%s2 + $0x60] sm:$0xf]
        %v353 = vld [vmem:[%s2 + $0x64] sm:$0xf]
        %v354 = vld [vmem:[%s2 + $0x68] sm:$0xf]
        %v355 = vld [vmem:[%s2 + $0x6c] sm:$0xf]
        %v356 = vld [vmem:[%s2 + $0x70] sm:$0xf]
        %v357 = vld [vmem:[%s2 + $0x74] sm:$0xf]
        %v358 = vld [vmem:[%s2 + $0x78] sm:$0xf]
        %v359 = vld [vmem:[%s2 + $0x7c] sm:$0xf]
        %v360 = vpack.c.bf16 %v315, %v310
        %v361 = vpack.c.bf16 %v325, %v320
        %v394 = vunpack.c.l.b16 %v328
        %v395 = vunpack.c.l.b16 %v329
        %v396 = vunpack.c.l.b16 %v330
        %v397 = vunpack.c.l.b16 %v331
        %v398 = vunpack.c.l.b16 %v332
        %v399 = vunpack.c.l.b16 %v333
        %v400 = vunpack.c.l.b16 %v334
        %v401 = vunpack.c.l.b16 %v335
        %v402 = vunpack.c.l.b16 %v336
        %v403 = vunpack.c.l.b16 %v337
        %v404 = vunpack.c.l.b16 %v338
        %v405 = vunpack.c.l.b16 %v339
        %v406 = vunpack.c.l.b16 %v340
        %v407 = vunpack.c.l.b16 %v341
        %v408 = vunpack.c.l.b16 %v342
        %v409 = vunpack.c.l.b16 %v343
        %v410 = vunpack.c.l.b16 %v344
        %v411 = vunpack.c.l.b16 %v345
        %v412 = vunpack.c.l.b16 %v346
        %v413 = vunpack.c.l.b16 %v347
        %v414 = vunpack.c.l.b16 %v348
        %v415 = vunpack.c.l.b16 %v349
        %v416 = vunpack.c.l.b16 %v350
        %v417 = vunpack.c.l.b16 %v351
        %v418 = vunpack.c.l.b16 %v352
        %v419 = vunpack.c.l.b16 %v353
        %v420 = vunpack.c.l.b16 %v354
        %v421 = vunpack.c.l.b16 %v355
        %v422 = vunpack.c.l.b16 %v356
        %v423 = vunpack.c.l.b16 %v357
        %v424 = vunpack.c.l.b16 %v358
        %v425 = vunpack.c.l.b16 %v359
        %v426 = vpack.c.b16 %v395, %v394
        %v427 = vpack.c.b16 %v397, %v396
        %v428 = vpack.c.b16 %v399, %v398
        %v429 = vpack.c.b16 %v401, %v400
        %v430 = vpack.c.b16 %v403, %v402
        %v431 = vpack.c.b16 %v405, %v404
        %v432 = vpack.c.b16 %v407, %v406
        %v433 = vpack.c.b16 %v409, %v408
        %v434 = vpack.c.b16 %v411, %v410
        %v435 = vpack.c.b16 %v413, %v412
        %v436 = vpack.c.b16 %v415, %v414
        %v437 = vpack.c.b16 %v417, %v416
        %v438 = vpack.c.b16 %v419, %v418
        %v439 = vpack.c.b16 %v421, %v420
        %v440 = vpack.c.b16 %v423, %v422
        %v441 = vpack.c.b16 %v425, %v424
        %vm442 = vcmask 261120
        %v444 = vsel %vm442, %v426, 0
        %v447 = vsel %vm442, %v427, 0
        %v450 = vsel %vm442, %v428, 0
        %v453 = vsel %vm442, %v429, 0
        %v456 = vsel %vm442, %v430, 0
        %v459 = vsel %vm442, %v431, 0
        %v462 = vsel %vm442, %v432, 0
        %v465 = vsel %vm442, %v433, 0
        %v468 = vsel %vm442, %v434, 0
        %v471 = vsel %vm442, %v435, 0
        %v474 = vsel %vm442, %v436, 0
        %v477 = vsel %vm442, %v437, 0
        %v480 = vsel %vm442, %v438, 0
        %v483 = vsel %vm442, %v439, 0
        %v486 = vsel %vm442, %v440, 0
        %v489 = vsel %vm442, %v441, 0
        %491 = vmatprep.subr.bf16.mxu0 0
        %492 = vmatpush1.bf16.msra.mxu0 0
        %493 = vmatprep.subr.bf16.mxu0 0
        %494 = vmatpush1.bf16.msra.mxu0 0
        %495 = vmatprep.subr.bf16.mxu0 0
        %496 = vmatpush1.bf16.msra.mxu0 0
        %497 = vmatprep.subr.bf16.mxu0 0
        %498 = vmatpush1.bf16.msra.mxu0 0
        %499 = vmatprep.subr.bf16.mxu0 0
        %500 = vmatpush1.bf16.msra.mxu0 0
        %501 = vmatprep.subr.bf16.mxu0 0
        %502 = vmatpush1.bf16.msra.mxu0 0
        %503 = vmatprep.subr.bf16.mxu0 0
        %504 = vmatpush1.bf16.msra.mxu0 %v361
        %505 = vmatprep.subr.bf16.mxu0 0
        %506 = vmatpush1.bf16.msra.mxu0 %v360
        %507 = vmatprep.subr.bf16.mxu0 0
        %508 = vmatpush2.bf16.msra.mxu0 0
        %509 = vmatprep.subr.bf16.mxu0 0
        %510 = vmatpush2.bf16.msra.mxu0 0
        %511 = vmatprep.subr.bf16.mxu0 0
        %512 = vmatpush2.bf16.msra.mxu0 0
        %513 = vmatprep.subr.bf16.mxu0 0
        %514 = vmatpush2.bf16.msra.mxu0 0
        %515 = vmatprep.subr.bf16.mxu0 0
        %516 = vmatpush2.bf16.msra.mxu0 0
        %517 = vmatprep.subr.bf16.mxu0 0
        %518 = vmatpush2.bf16.msra.mxu0 0
        %519 = vmatprep.subr.bf16.mxu0 0
        %520 = vmatpush2.bf16.msra.mxu0 0
        %521 = vmatprep.subr.bf16.mxu0 0
        %522 = vmatpush2.bf16.msra.mxu0 0
        %523 = vmatprep.mubr.bf16.mxu0 0
        %524 = vmatmul.mubr.bf16.gmra.mxu0 %v444
        %v525 = vpop.f32.mrf.mxu0
        %v526 = vadd.f32 0.0, %v525
        %v527 = vpop.f32.mrf.mxu0
        %v528 = vpop.f32.mrf.mxu0
        %v529 = vadd.f32 0.0, %v528
        %v530 = vpop.f32.mrf.mxu0
        %531 = vmatprep.mubr.bf16.mxu0 0
        %532 = vmatmul.mubr.bf16.gmra.mxu0 %v447
        %v533 = vpop.f32.mrf.mxu0
        %v534 = vadd.f32 0.0, %v533
        %v535 = vpop.f32.mrf.mxu0
        %v536 = vpop.f32.mrf.mxu0
        %v537 = vadd.f32 0.0, %v536
        %v538 = vpop.f32.mrf.mxu0
        %539 = vmatprep.mubr.bf16.mxu0 0
        %540 = vmatmul.mubr.bf16.gmra.mxu0 %v450
        %v541 = vpop.f32.mrf.mxu0
        %v542 = vadd.f32 0.0, %v541
        %v543 = vpop.f32.mrf.mxu0
        %v544 = vpop.f32.mrf.mxu0
        %v545 = vadd.f32 0.0, %v544
        %v546 = vpop.f32.mrf.mxu0
        %547 = vmatprep.mubr.bf16.mxu0 0
        %548 = vmatmul.mubr.bf16.gmra.mxu0 %v453
        %v549 = vpop.f32.mrf.mxu0
        %v550 = vadd.f32 0.0, %v549
        %v551 = vpop.f32.mrf.mxu0
        %v552 = vpop.f32.mrf.mxu0
        %v553 = vadd.f32 0.0, %v552
        %v554 = vpop.f32.mrf.mxu0
        %555 = vmatprep.mubr.bf16.mxu0 0
        %556 = vmatmul.mubr.bf16.gmra.mxu0 %v456
        %v557 = vpop.f32.mrf.mxu0
        %v558 = vadd.f32 0.0, %v557
        %v559 = vpop.f32.mrf.mxu0
        %v560 = vpop.f32.mrf.mxu0
        %v561 = vadd.f32 0.0, %v560
        %v562 = vpop.f32.mrf.mxu0
        %563 = vmatprep.mubr.bf16.mxu0 0
        %564 = vmatmul.mubr.bf16.gmra.mxu0 %v459
        %v565 = vpop.f32.mrf.mxu0
        %v566 = vadd.f32 0.0, %v565
        %v567 = vpop.f32.mrf.mxu0
        %v568 = vpop.f32.mrf.mxu0
        %v569 = vadd.f32 0.0, %v568
        %v570 = vpop.f32.mrf.mxu0
        %571 = vmatprep.mubr.bf16.mxu0 0
        %572 = vmatmul.mubr.bf16.gmra.mxu0 %v462
        %v573 = vpop.f32.mrf.mxu0
        %v574 = vadd.f32 0.0, %v573
        %v575 = vpop.f32.mrf.mxu0
        %v576 = vpop.f32.mrf.mxu0
        %v577 = vadd.f32 0.0, %v576
        %v578 = vpop.f32.mrf.mxu0
        %579 = vmatprep.mubr.bf16.mxu0 0
        %580 = vmatmul.mubr.bf16.gmra.mxu0 %v465
        %v581 = vpop.f32.mrf.mxu0
        %v582 = vadd.f32 0.0, %v581
        %v583 = vpop.f32.mrf.mxu0
        %v584 = vpop.f32.mrf.mxu0
        %v585 = vadd.f32 0.0, %v584
        %v586 = vpop.f32.mrf.mxu0
        %587 = vmatprep.mubr.bf16.mxu0 0
        %588 = vmatmul.mubr.bf16.gmra.mxu0 %v468
        %v589 = vpop.f32.mrf.mxu0
        %v590 = vadd.f32 0.0, %v589
        %v591 = vpop.f32.mrf.mxu0
        %v592 = vpop.f32.mrf.mxu0
        %v593 = vadd.f32 0.0, %v592
        %v594 = vpop.f32.mrf.mxu0
        %595 = vmatprep.mubr.bf16.mxu0 0
        %596 = vmatmul.mubr.bf16.gmra.mxu0 %v471
        %v597 = vpop.f32.mrf.mxu0
        %v598 = vadd.f32 0.0, %v597
        %v599 = vpop.f32.mrf.mxu0
        %v600 = vpop.f32.mrf.mxu0
        %v601 = vadd.f32 0.0, %v600
        %v602 = vpop.f32.mrf.mxu0
        %603 = vmatprep.mubr.bf16.mxu0 0
        %604 = vmatmul.mubr.bf16.gmra.mxu0 %v474
        %v605 = vpop.f32.mrf.mxu0
        %v606 = vadd.f32 0.0, %v605
        %v607 = vpop.f32.mrf.mxu0
        %v608 = vpop.f32.mrf.mxu0
        %v609 = vadd.f32 0.0, %v608
        %v610 = vpop.f32.mrf.mxu0
        %611 = vmatprep.mubr.bf16.mxu0 0
        %612 = vmatmul.mubr.bf16.gmra.mxu0 %v477
        %v613 = vpop.f32.mrf.mxu0
        %v614 = vadd.f32 0.0, %v613
        %v615 = vpop.f32.mrf.mxu0
        %v616 = vpop.f32.mrf.mxu0
        %v617 = vadd.f32 0.0, %v616
        %v618 = vpop.f32.mrf.mxu0
        %619 = vmatprep.mubr.bf16.mxu0 0
        %620 = vmatmul.mubr.bf16.gmra.mxu0 %v480
        %v621 = vpop.f32.mrf.mxu0
        %v622 = vadd.f32 0.0, %v621
        %v623 = vpop.f32.mrf.mxu0
        %v624 = vpop.f32.mrf.mxu0
        %v625 = vadd.f32 0.0, %v624
        %v626 = vpop.f32.mrf.mxu0
        %627 = vmatprep.mubr.bf16.mxu0 0
        %628 = vmatmul.mubr.bf16.gmra.mxu0 %v483
        %v629 = vpop.f32.mrf.mxu0
        %v630 = vadd.f32 0.0, %v629
        %v631 = vpop.f32.mrf.mxu0
        %v632 = vpop.f32.mrf.mxu0
        %v633 = vadd.f32 0.0, %v632
        %v634 = vpop.f32.mrf.mxu0
        %635 = vmatprep.mubr.bf16.mxu0 0
        %636 = vmatmul.mubr.bf16.gmra.mxu0 %v486
        %v637 = vpop.f32.mrf.mxu0
        %v638 = vadd.f32 0.0, %v637
        %v639 = vpop.f32.mrf.mxu0
        %v640 = vpop.f32.mrf.mxu0
        %v641 = vadd.f32 0.0, %v640
        %v642 = vpop.f32.mrf.mxu0
        %643 = vmatprep.mubr.bf16.mxu0 0
        %644 = vmatmul.mubr.bf16.gmra.mxu0 %v489
        %v645 = vpop.f32.mrf.mxu0
        %v646 = vadd.f32 0.0, %v645
        %v647 = vpop.f32.mrf.mxu0
        %v648 = vpop.f32.mrf.mxu0
        %v649 = vadd.f32 0.0, %v648
        %v650 = vpop.f32.mrf.mxu0
        %651 = vdwg.mxu0
        %652 = vxpose.xlu0.b32.start [1/16] %v526, 128
        %653 = vxpose.xlu0.b32.cont [2/16] %v529, 128
        %654 = vxpose.xlu0.b32.cont [3/16] %v534, 128
        %655 = vxpose.xlu0.b32.cont [4/16] %v537, 128
        %656 = vxpose.xlu0.b32.cont [5/16] %v542, 128
        %657 = vxpose.xlu0.b32.cont [6/16] %v545, 128
        %658 = vxpose.xlu0.b32.cont [7/16] %v550, 128
        %659 = vxpose.xlu0.b32.cont [8/16] %v553, 128
        %660 = vxpose.xlu0.b32.cont [9/16] 0.0, 128
        %661 = vxpose.xlu0.b32.cont [10/16] 0.0, 128
        %662 = vxpose.xlu0.b32.cont [11/16] 0.0, 128
        %663 = vxpose.xlu0.b32.cont [12/16] 0.0, 128
        %664 = vxpose.xlu0.b32.cont [13/16] 0.0, 128
        %665 = vxpose.xlu0.b32.cont [14/16] 0.0, 128
        %666 = vxpose.xlu0.b32.cont [15/16] 0.0, 128
        %667 = vxpose.xlu0.b32.end [16/16] 0.0, 128
        %v668 = vpop.trf.xlu0
        %v669 = vpop.trf.xlu0
        %v670 = vpop.trf.xlu0
        %v671 = vpop.trf.xlu0
        %v672 = vpop.trf.xlu0
        %v673 = vpop.trf.xlu0
        %v674 = vpop.trf.xlu0
        %v675 = vpop.trf.xlu0
        %v676 = vpop.trf.xlu0
        %v677 = vpop.trf.xlu0
        %v678 = vpop.trf.xlu0
        %v679 = vpop.trf.xlu0
        %v680 = vpop.trf.xlu0
        %v681 = vpop.trf.xlu0
        %v682 = vpop.trf.xlu0
        %v683 = vpop.trf.xlu0
        %v684 = vpack.c.bf16 %v669, %v668
        %v685 = vpack.c.bf16 %v671, %v670
        %v686 = vpack.c.bf16 %v673, %v672
        %v687 = vpack.c.bf16 %v675, %v674
        %690 = vrot.lane.b32.xlu0 %v590, 64
        %v691 = vpop.permute.xlu0 %690
        %692 = vrot.lane.b32.xlu0 %v593, 64
        %v693 = vpop.permute.xlu0 %692
        %vm696 = vcmask 523264
        %v697 = vsel %vm696, %v558, %v691
        %v698 = vsel %vm696, %v561, %v693
        %v699 = vpack.c.bf16 %v698, %v697
        %700 = vxpose.xlu0.b32.start [1/16] %v622, 128
        %701 = vxpose.xlu0.b32.cont [2/16] %v625, 128
        %702 = vxpose.xlu0.b32.cont [3/16] 0.0, 128
        %703 = vxpose.xlu0.b32.cont [4/16] 0.0, 128
        %704 = vxpose.xlu0.b32.cont [5/16] 0.0, 128
        %705 = vxpose.xlu0.b32.cont [6/16] 0.0, 128
        %706 = vxpose.xlu0.b32.cont [7/16] 0.0, 128
        %707 = vxpose.xlu0.b32.cont [8/16] 0.0, 128
        %708 = vxpose.xlu0.b32.cont [9/16] 0.0, 128
        %709 = vxpose.xlu0.b32.cont [10/16] 0.0, 128
        %710 = vxpose.xlu0.b32.cont [11/16] 0.0, 128
        %711 = vxpose.xlu0.b32.cont [12/16] 0.0, 128
        %712 = vxpose.xlu0.b32.cont [13/16] 0.0, 128
        %713 = vxpose.xlu0.b32.cont [14/16] 0.0, 128
        %714 = vxpose.xlu0.b32.cont [15/16] 0.0, 128
        %715 = vxpose.xlu0.b32.end [16/16] 0.0, 128
        %v716 = vpop.trf.xlu0
        %v717 = vpop.trf.xlu0
        %v718 = vpop.trf.xlu0
        %v719 = vpop.trf.xlu0
        %v720 = vpop.trf.xlu0
        %v721 = vpop.trf.xlu0
        %v722 = vpop.trf.xlu0
        %v723 = vpop.trf.xlu0
        %v724 = vpop.trf.xlu0
        %v725 = vpop.trf.xlu0
        %v726 = vpop.trf.xlu0
        %v727 = vpop.trf.xlu0
        %v728 = vpop.trf.xlu0
        %v729 = vpop.trf.xlu0
        %v730 = vpop.trf.xlu0
        %v731 = vpop.trf.xlu0
        %v732 = vpack.c.bf16 %v717, %v716
        %v733 = vpack.c.bf16 %v719, %v718
        %v734 = vpack.c.bf16 %v721, %v720
        %v735 = vpack.c.bf16 %v723, %v722
        %vm736 = vcmask 130048
        %v738 = vsel %vm736, %v684, 0
        %v741 = vsel %vm736, %v685, 0
        %v744 = vsel %vm736, %v686, 0
        %v747 = vsel %vm736, %v687, 0
        %749 = vmatprep.subr.bf16.mxu0 0
        %750 = vmatpush1.bf16.msra.mxu0 0
        %751 = vmatprep.subr.bf16.mxu0 0
        %752 = vmatpush1.bf16.msra.mxu0 0
        %753 = vmatprep.subr.bf16.mxu0 0
        %754 = vmatpush1.bf16.msra.mxu0 0
        %755 = vmatprep.subr.bf16.mxu0 0
        %756 = vmatpush1.bf16.msra.mxu0 0
        %757 = vmatprep.subr.bf16.mxu0 0
        %758 = vmatpush1.bf16.msra.mxu0 0
        %759 = vmatprep.subr.bf16.mxu0 0
        %760 = vmatpush1.bf16.msra.mxu0 0
        %761 = vmatprep.subr.bf16.mxu0 0
        %762 = vmatpush1.bf16.msra.mxu0 0
        %763 = vmatprep.subr.bf16.mxu0 0
        %764 = vmatpush1.bf16.msra.mxu0 %v699
        %765 = vmatprep.subr.bf16.mxu0 0
        %766 = vmatpush2.bf16.msra.mxu0 0
        %767 = vmatprep.subr.bf16.mxu0 0
        %768 = vmatpush2.bf16.msra.mxu0 0
        %769 = vmatprep.subr.bf16.mxu0 0
        %770 = vmatpush2.bf16.msra.mxu0 0
        %771 = vmatprep.subr.bf16.mxu0 0
        %772 = vmatpush2.bf16.msra.mxu0 0
        %773 = vmatprep.subr.bf16.mxu0 0
        %774 = vmatpush2.bf16.msra.mxu0 0
        %775 = vmatprep.subr.bf16.mxu0 0
        %776 = vmatpush2.bf16.msra.mxu0 0
        %777 = vmatprep.subr.bf16.mxu0 0
        %778 = vmatpush2.bf16.msra.mxu0 0
        %779 = vmatprep.subr.bf16.mxu0 0
        %780 = vmatpush2.bf16.msra.mxu0 0
        %781 = vmatprep.mubr.bf16.mxu0 0
        %782 = vmatmul.mubr.bf16.gmra.mxu0 %v738
        %v783 = vpop.f32.mrf.mxu0
        %v784 = vadd.f32 0.0, %v783
        %v785 = vpop.f32.mrf.mxu0
        %v786 = vpop.f32.mrf.mxu0
        %v787 = vadd.f32 0.0, %v786
        %v788 = vpop.f32.mrf.mxu0
        %789 = vmatprep.mubr.bf16.mxu0 0
        %790 = vmatmul.mubr.bf16.gmra.mxu0 %v741
        %v791 = vpop.f32.mrf.mxu0
        %v792 = vadd.f32 0.0, %v791
        %v793 = vpop.f32.mrf.mxu0
        %v794 = vpop.f32.mrf.mxu0
        %v795 = vadd.f32 0.0, %v794
        %v796 = vpop.f32.mrf.mxu0
        %797 = vmatprep.mubr.bf16.mxu0 0
        %798 = vmatmul.mubr.bf16.gmra.mxu0 %v744
        %v799 = vpop.f32.mrf.mxu0
        %v800 = vadd.f32 0.0, %v799
        %v801 = vpop.f32.mrf.mxu0
        %v802 = vpop.f32.mrf.mxu0
        %v803 = vadd.f32 0.0, %v802
        %v804 = vpop.f32.mrf.mxu0
        %805 = vmatprep.mubr.bf16.mxu0 0
        %806 = vmatmul.mubr.bf16.gmra.mxu0 %v747
        %v807 = vpop.f32.mrf.mxu0
        %v808 = vadd.f32 0.0, %v807
        %v809 = vpop.f32.mrf.mxu0
        %v810 = vpop.f32.mrf.mxu0
        %v811 = vadd.f32 0.0, %v810
        %v812 = vpop.f32.mrf.mxu0
        %813 = vdwg.mxu0
        %v814 = vmul.f32 %v784, %v784
        %v815 = vmul.f32 %v787, %v787
        %v816 = vmul.f32 %v792, %v792
        %v817 = vmul.f32 %v795, %v795
        %v818 = vmul.f32 %v800, %v800
        %v819 = vmul.f32 %v803, %v803
        %v820 = vmul.f32 %v808, %v808
        %v821 = vmul.f32 %v811, %v811
        %830 = vrot.lane.b32.xlu0 %v814, 64
        %v831 = vpop.permute.xlu0 %830
        %832 = vrot.lane.b32.xlu0 %v815, 64
        %v833 = vpop.permute.xlu0 %832
        %834 = vrot.lane.b32.xlu0 %v816, 64
        %v835 = vpop.permute.xlu0 %834
        %836 = vrot.lane.b32.xlu0 %v817, 64
        %v837 = vpop.permute.xlu0 %836
        %838 = vrot.lane.b32.xlu0 %v818, 64
        %v839 = vpop.permute.xlu0 %838
        %840 = vrot.lane.b32.xlu0 %v819, 64
        %v841 = vpop.permute.xlu0 %840
        %842 = vrot.lane.b32.xlu0 %v820, 64
        %v843 = vpop.permute.xlu0 %842
        %844 = vrot.lane.b32.xlu0 %v821, 64
        %v845 = vpop.permute.xlu0 %844
        %v854 = vadd.f32 %v814, %v831
        %v855 = vadd.f32 %v815, %v833
        %v856 = vadd.f32 %v816, %v835
        %v857 = vadd.f32 %v817, %v837
        %v858 = vadd.f32 %v818, %v839
        %v859 = vadd.f32 %v819, %v841
        %v860 = vadd.f32 %v820, %v843
        %v861 = vadd.f32 %v821, %v845
        %v862 = vrsqrt.pop %v854
        %v863 = vmul.f32 %v854, %v862
        %vm864 = vcmp.eq.f32.partialorder %v854, inf
        %v865 = vsel %vm864, %v854, %v863
        %vm866 = vcmp.eq.f32.partialorder %v854, 0.0
        %v867 = vand.u32 %v854, 2147483648
        %v868 = vsel %vm866, %v867, %v865
        %v869 = vrsqrt.pop %v855
        %v870 = vmul.f32 %v855, %v869
        %vm871 = vcmp.eq.f32.partialorder %v855, inf
        %v872 = vsel %vm871, %v855, %v870
        %vm873 = vcmp.eq.f32.partialorder %v855, 0.0
        %v874 = vand.u32 %v855, 2147483648
        %v875 = vsel %vm873, %v874, %v872
        %v876 = vrsqrt.pop %v856
        %v877 = vmul.f32 %v856, %v876
        %vm878 = vcmp.eq.f32.partialorder %v856, inf
        %v879 = vsel %vm878, %v856, %v877
        %vm880 = vcmp.eq.f32.partialorder %v856, 0.0
        %v881 = vand.u32 %v856, 2147483648
        %v882 = vsel %vm880, %v881, %v879
        %v883 = vrsqrt.pop %v857
        %v884 = vmul.f32 %v857, %v883
        %vm885 = vcmp.eq.f32.partialorder %v857, inf
        %v886 = vsel %vm885, %v857, %v884
        %vm887 = vcmp.eq.f32.partialorder %v857, 0.0
        %v888 = vand.u32 %v857, 2147483648
        %v889 = vsel %vm887, %v888, %v886
        %v890 = vrsqrt.pop %v858
        %v891 = vmul.f32 %v858, %v890
        %vm892 = vcmp.eq.f32.partialorder %v858, inf
        %v893 = vsel %vm892, %v858, %v891
        %vm894 = vcmp.eq.f32.partialorder %v858, 0.0
        %v895 = vand.u32 %v858, 2147483648
        %v896 = vsel %vm894, %v895, %v893
        %v897 = vrsqrt.pop %v859
        %v898 = vmul.f32 %v859, %v897
        %vm899 = vcmp.eq.f32.partialorder %v859, inf
        %v900 = vsel %vm899, %v859, %v898
        %vm901 = vcmp.eq.f32.partialorder %v859, 0.0
        %v902 = vand.u32 %v859, 2147483648
        %v903 = vsel %vm901, %v902, %v900
        %v904 = vrsqrt.pop %v860
        %v905 = vmul.f32 %v860, %v904
        %vm906 = vcmp.eq.f32.partialorder %v860, inf
        %v907 = vsel %vm906, %v860, %v905
        %vm908 = vcmp.eq.f32.partialorder %v860, 0.0
        %v909 = vand.u32 %v860, 2147483648
        %v910 = vsel %vm908, %v909, %v907
        %v911 = vrsqrt.pop %v861
        %v912 = vmul.f32 %v861, %v911
        %vm913 = vcmp.eq.f32.partialorder %v861, inf
        %v914 = vsel %vm913, %v861, %v912
        %vm915 = vcmp.eq.f32.partialorder %v861, 0.0
        %v916 = vand.u32 %v861, 2147483648
        %v917 = vsel %vm915, %v916, %v914
        %v918 = vsel %vm696, %v868, -inf
        %919 = vmax.xlane.f32.xlu0 %v918
        %v920 = vpop.xlane.xlu0 %919
        %v921 = vsel %vm696, %v875, -inf
        %922 = vmax.xlane.f32.xlu0 %v921
        %v923 = vpop.xlane.xlu0 %922
        %v924 = vsel %vm696, %v882, -inf
        %925 = vmax.xlane.f32.xlu0 %v924
        %v926 = vpop.xlane.xlu0 %925
        %v927 = vsel %vm696, %v889, -inf
        %928 = vmax.xlane.f32.xlu0 %v927
        %v929 = vpop.xlane.xlu0 %928
        %v930 = vsel %vm696, %v896, -inf
        %931 = vmax.xlane.f32.xlu0 %v930
        %v932 = vpop.xlane.xlu0 %931
        %v933 = vsel %vm696, %v903, -inf
        %934 = vmax.xlane.f32.xlu0 %v933
        %v935 = vpop.xlane.xlu0 %934
        %v936 = vsel %vm696, %v910, -inf
        %937 = vmax.xlane.f32.xlu0 %v936
        %v938 = vpop.xlane.xlu0 %937
        %v939 = vsel %vm696, %v917, -inf
        %940 = vmax.xlane.f32.xlu0 %v939
        %v941 = vpop.xlane.xlu0 %940
        %v942 = vsub.f32 %v868, %v920
        %v943 = vsub.f32 %v875, %v923
        %v944 = vsub.f32 %v882, %v926
        %v945 = vsub.f32 %v889, %v929
        %v946 = vsub.f32 %v896, %v932
        %v947 = vsub.f32 %v903, %v935
        %v948 = vsub.f32 %v910, %v938
        %v949 = vsub.f32 %v917, %v941
        %v950 = vmul.f32 %v942, 1.442695
        %v951 = vpow.pop %v950
        %v952 = vmul.f32 %v943, 1.442695
        %v953 = vpow.pop %v952
        %v954 = vmul.f32 %v944, 1.442695
        %v955 = vpow.pop %v954
        %v956 = vmul.f32 %v945, 1.442695
        %v957 = vpow.pop %v956
        %v958 = vmul.f32 %v946, 1.442695
        %v959 = vpow.pop %v958
        %v960 = vmul.f32 %v947, 1.442695
        %v961 = vpow.pop %v960
        %v962 = vmul.f32 %v948, 1.442695
        %v963 = vpow.pop %v962
        %v964 = vmul.f32 %v949, 1.442695
        %v965 = vpow.pop %v964
        %v966 = vsel %vm696, %v951, 0.0
        %967 = vadd.xlane.f32.xlu0 %v966
        %v968 = vpop.xlane.xlu0 %967
        %v969 = vsel %vm696, %v953, 0.0
        %970 = vadd.xlane.f32.xlu0 %v969
        %v971 = vpop.xlane.xlu0 %970
        %v972 = vsel %vm696, %v955, 0.0
        %973 = vadd.xlane.f32.xlu0 %v972
        %v974 = vpop.xlane.xlu0 %973
        %v975 = vsel %vm696, %v957, 0.0
        %976 = vadd.xlane.f32.xlu0 %v975
        %v977 = vpop.xlane.xlu0 %976
        %v978 = vsel %vm696, %v959, 0.0
        %979 = vadd.xlane.f32.xlu0 %v978
        %v980 = vpop.xlane.xlu0 %979
        %v981 = vsel %vm696, %v961, 0.0
        %982 = vadd.xlane.f32.xlu0 %v981
        %v983 = vpop.xlane.xlu0 %982
        %v984 = vsel %vm696, %v963, 0.0
        %985 = vadd.xlane.f32.xlu0 %v984
        %v986 = vpop.xlane.xlu0 %985
        %v987 = vsel %vm696, %v965, 0.0
        %988 = vadd.xlane.f32.xlu0 %v987
        %v989 = vpop.xlane.xlu0 %988
        %v990 = vrcp.pop %v968
        %v991 = vrcp.pop %v971
        %v992 = vrcp.pop %v974
        %v993 = vrcp.pop %v977
        %v994 = vrcp.pop %v980
        %v995 = vrcp.pop %v983
        %v996 = vrcp.pop %v986
        %v997 = vrcp.pop %v989
        %v998 = vmul.f32 %v951, %v990
        %v999 = vmul.f32 %v953, %v991
        %v1000 = vmul.f32 %v955, %v992
        %v1001 = vmul.f32 %v957, %v993
        %v1002 = vmul.f32 %v959, %v994
        %v1003 = vmul.f32 %v961, %v995
        %v1004 = vmul.f32 %v963, %v996
        %v1005 = vmul.f32 %v965, %v997
        %v1006 = vpack.c.bf16 %v999, %v998
        %v1007 = vpack.c.bf16 %v1001, %v1000
        %v1008 = vpack.c.bf16 %v1003, %v1002
        %v1009 = vpack.c.bf16 %v1005, %v1004
        %v1011 = vsel %vm696, %v1006, 0
        %v1014 = vsel %vm696, %v1007, 0
        %v1017 = vsel %vm696, %v1008, 0
        %v1020 = vsel %vm696, %v1009, 0
        %1022 = vmatprep.subr.bf16.mxu0 0
        %1023 = vmatpush1.bf16.msra.mxu0 0
        %1024 = vmatprep.subr.bf16.mxu0 0
        %1025 = vmatpush1.bf16.msra.mxu0 0
        %1026 = vmatprep.subr.bf16.mxu0 0
        %1027 = vmatpush1.bf16.msra.mxu0 0
        %1028 = vmatprep.subr.bf16.mxu0 0
        %1029 = vmatpush1.bf16.msra.mxu0 0
        %1030 = vmatprep.subr.bf16.mxu0 0
        %1031 = vmatpush1.bf16.msra.mxu0 %v735
        %1032 = vmatprep.subr.bf16.mxu0 0
        %1033 = vmatpush1.bf16.msra.mxu0 %v734
        %1034 = vmatprep.subr.bf16.mxu0 0
        %1035 = vmatpush1.bf16.msra.mxu0 %v733
        %1036 = vmatprep.subr.bf16.mxu0 0
        %1037 = vmatpush1.bf16.msra.mxu0 %v732
        %1038 = vmatprep.subr.bf16.mxu0 0
        %1039 = vmatpush2.bf16.msra.mxu0 0
        %1040 = vmatprep.subr.bf16.mxu0 0
        %1041 = vmatpush2.bf16.msra.mxu0 0
        %1042 = vmatprep.subr.bf16.mxu0 0
        %1043 = vmatpush2.bf16.msra.mxu0 0
        %1044 = vmatprep.subr.bf16.mxu0 0
        %1045 = vmatpush2.bf16.msra.mxu0 0
        %1046 = vmatprep.subr.bf16.mxu0 0
        %1047 = vmatpush2.bf16.msra.mxu0 0
        %1048 = vmatprep.subr.bf16.mxu0 0
        %1049 = vmatpush2.bf16.msra.mxu0 0
        %1050 = vmatprep.subr.bf16.mxu0 0
        %1051 = vmatpush2.bf16.msra.mxu0 0
        %1052 = vmatprep.subr.bf16.mxu0 0
        %1053 = vmatpush2.bf16.msra.mxu0 0
        %1054 = vmatprep.mubr.bf16.mxu0 0
        %1055 = vmatmul.mubr.bf16.gmra.mxu0 %v1011
        %v1056 = vpop.f32.mrf.mxu0
        %v1057 = vadd.f32 0.0, %v1056
        %v1058 = vpop.f32.mrf.mxu0
        %v1059 = vpop.f32.mrf.mxu0
        %v1060 = vadd.f32 0.0, %v1059
        %v1061 = vpop.f32.mrf.mxu0
        %1062 = vmatprep.mubr.bf16.mxu0 0
        %1063 = vmatmul.mubr.bf16.gmra.mxu0 %v1014
        %v1064 = vpop.f32.mrf.mxu0
        %v1065 = vadd.f32 0.0, %v1064
        %v1066 = vpop.f32.mrf.mxu0
        %v1067 = vpop.f32.mrf.mxu0
        %v1068 = vadd.f32 0.0, %v1067
        %v1069 = vpop.f32.mrf.mxu0
        %1070 = vmatprep.mubr.bf16.mxu0 0
        %1071 = vmatmul.mubr.bf16.gmra.mxu0 %v1017
        %v1072 = vpop.f32.mrf.mxu0
        %v1073 = vadd.f32 0.0, %v1072
        %v1074 = vpop.f32.mrf.mxu0
        %v1075 = vpop.f32.mrf.mxu0
        %v1076 = vadd.f32 0.0, %v1075
        %v1077 = vpop.f32.mrf.mxu0
        %1078 = vmatprep.mubr.bf16.mxu0 0
        %1079 = vmatmul.mubr.bf16.gmra.mxu0 %v1020
        %v1080 = vpop.f32.mrf.mxu0
        %v1081 = vadd.f32 0.0, %v1080
        %v1082 = vpop.f32.mrf.mxu0
        %v1083 = vpop.f32.mrf.mxu0
        %v1084 = vadd.f32 0.0, %v1083
        %v1085 = vpop.f32.mrf.mxu0
        %1086 = vdwg.mxu0
        %v1087 = vld [vmem:[%s3] sm:$0xf]
        %v1088 = vld [vmem:[%s3 + $0x4] sm:$0xf]
        %v1089 = vpack.c.bf16 %v1060, %v1057
        %v1090 = vpack.c.bf16 %v1068, %v1065
        %v1091 = vpack.c.bf16 %v1076, %v1073
        %v1092 = vpack.c.bf16 %v1084, %v1081
        %1095 = vrot.lane.b32.xlu0 %v598, 64
        %v1096 = vpop.permute.xlu0 %1095
        %1097 = vrot.lane.b32.xlu0 %v601, 64
        %v1098 = vpop.permute.xlu0 %1097
        %v1101 = vsel %vm696, %v566, %v1096
        %v1102 = vsel %vm696, %v569, %v1098
        %v1103 = vpack.c.bf16 %v1102, %v1101
        %1104 = vxpose.xlu0.b32.start [1/16] %v630, 128
        %1105 = vxpose.xlu0.b32.cont [2/16] %v633, 128
        %1106 = vxpose.xlu0.b32.cont [3/16] 0.0, 128
        %1107 = vxpose.xlu0.b32.cont [4/16] 0.0, 128
        %1108 = vxpose.xlu0.b32.cont [5/16] 0.0, 128
        %1109 = vxpose.xlu0.b32.cont [6/16] 0.0, 128
        %1110 = vxpose.xlu0.b32.cont [7/16] 0.0, 128
        %1111 = vxpose.xlu0.b32.cont [8/16] 0.0, 128
        %1112 = vxpose.xlu0.b32.cont [9/16] 0.0, 128
        %1113 = vxpose.xlu0.b32.cont [10/16] 0.0, 128
        %1114 = vxpose.xlu0.b32.cont [11/16] 0.0, 128
        %1115 = vxpose.xlu0.b32.cont [12/16] 0.0, 128
        %1116 = vxpose.xlu0.b32.cont [13/16] 0.0, 128
        %1117 = vxpose.xlu0.b32.cont [14/16] 0.0, 128
        %1118 = vxpose.xlu0.b32.cont [15/16] 0.0, 128
        %1119 = vxpose.xlu0.b32.end [16/16] 0.0, 128
        %v1120 = vpop.trf.xlu0
        %v1121 = vpop.trf.xlu0
        %v1122 = vpop.trf.xlu0
        %v1123 = vpop.trf.xlu0
        %v1124 = vpop.trf.xlu0
        %v1125 = vpop.trf.xlu0
        %v1126 = vpop.trf.xlu0
        %v1127 = vpop.trf.xlu0
        %v1128 = vpop.trf.xlu0
        %v1129 = vpop.trf.xlu0
        %v1130 = vpop.trf.xlu0
        %v1131 = vpop.trf.xlu0
        %v1132 = vpop.trf.xlu0
        %v1133 = vpop.trf.xlu0
        %v1134 = vpop.trf.xlu0
        %v1135 = vpop.trf.xlu0
        %v1136 = vpack.c.bf16 %v1121, %v1120
        %v1137 = vpack.c.bf16 %v1123, %v1122
        %v1138 = vpack.c.bf16 %v1125, %v1124
        %v1139 = vpack.c.bf16 %v1127, %v1126
        %1144 = vrot.lane.b32.xlu0 %v684, 112
        %v1145 = vpop.permute.xlu0 %1144
        %1146 = vrot.lane.b32.xlu0 %v685, 112
        %v1147 = vpop.permute.xlu0 %1146
        %1148 = vrot.lane.b32.xlu0 %v686, 112
        %v1149 = vpop.permute.xlu0 %1148
        %1150 = vrot.lane.b32.xlu0 %v687, 112
        %v1151 = vpop.permute.xlu0 %1150
        %v1153 = vsel %vm736, %v1145, 0
        %v1156 = vsel %vm736, %v1147, 0
        %v1159 = vsel %vm736, %v1149, 0
        %v1162 = vsel %vm736, %v1151, 0
        %1164 = vmatprep.subr.bf16.mxu0 0
        %1165 = vmatpush1.bf16.msra.mxu0 0
        %1166 = vmatprep.subr.bf16.mxu0 0
        %1167 = vmatpush1.bf16.msra.mxu0 0
        %1168 = vmatprep.subr.bf16.mxu0 0
        %1169 = vmatpush1.bf16.msra.mxu0 0
        %1170 = vmatprep.subr.bf16.mxu0 0
        %1171 = vmatpush1.bf16.msra.mxu0 0
        %1172 = vmatprep.subr.bf16.mxu0 0
        %1173 = vmatpush1.bf16.msra.mxu0 0
        %1174 = vmatprep.subr.bf16.mxu0 0
        %1175 = vmatpush1.bf16.msra.mxu0 0
        %1176 = vmatprep.subr.bf16.mxu0 0
        %1177 = vmatpush1.bf16.msra.mxu0 0
        %1178 = vmatprep.subr.bf16.mxu0 0
        %1179 = vmatpush1.bf16.msra.mxu0 %v1103
        %1180 = vmatprep.subr.bf16.mxu0 0
        %1181 = vmatpush2.bf16.msra.mxu0 0
        %1182 = vmatprep.subr.bf16.mxu0 0
        %1183 = vmatpush2.bf16.msra.mxu0 0
        %1184 = vmatprep.subr.bf16.mxu0 0
        %1185 = vmatpush2.bf16.msra.mxu0 0
        %1186 = vmatprep.subr.bf16.mxu0 0
        %1187 = vmatpush2.bf16.msra.mxu0 0
        %1188 = vmatprep.subr.bf16.mxu0 0
        %1189 = vmatpush2.bf16.msra.mxu0 0
        %1190 = vmatprep.subr.bf16.mxu0 0
        %1191 = vmatpush2.bf16.msra.mxu0 0
        %1192 = vmatprep.subr.bf16.mxu0 0
        %1193 = vmatpush2.bf16.msra.mxu0 0
        %1194 = vmatprep.subr.bf16.mxu0 0
        %1195 = vmatpush2.bf16.msra.mxu0 0
        %1196 = vmatprep.mubr.bf16.mxu0 0
        %1197 = vmatmul.mubr.bf16.gmra.mxu0 %v1153
        %v1198 = vpop.f32.mrf.mxu0
        %v1199 = vadd.f32 0.0, %v1198
        %v1200 = vpop.f32.mrf.mxu0
        %v1201 = vpop.f32.mrf.mxu0
        %v1202 = vadd.f32 0.0, %v1201
        %v1203 = vpop.f32.mrf.mxu0
        %1204 = vmatprep.mubr.bf16.mxu0 0
        %1205 = vmatmul.mubr.bf16.gmra.mxu0 %v1156
        %v1206 = vpop.f32.mrf.mxu0
        %v1207 = vadd.f32 0.0, %v1206
        %v1208 = vpop.f32.mrf.mxu0
        %v1209 = vpop.f32.mrf.mxu0
        %v1210 = vadd.f32 0.0, %v1209
        %v1211 = vpop.f32.mrf.mxu0
        %1212 = vmatprep.mubr.bf16.mxu0 0
        %1213 = vmatmul.mubr.bf16.gmra.mxu0 %v1159
        %v1214 = vpop.f32.mrf.mxu0
        %v1215 = vadd.f32 0.0, %v1214
        %v1216 = vpop.f32.mrf.mxu0
        %v1217 = vpop.f32.mrf.mxu0
        %v1218 = vadd.f32 0.0, %v1217
        %v1219 = vpop.f32.mrf.mxu0
        %1220 = vmatprep.mubr.bf16.mxu0 0
        %1221 = vmatmul.mubr.bf16.gmra.mxu0 %v1162
        %v1222 = vpop.f32.mrf.mxu0
        %v1223 = vadd.f32 0.0, %v1222
        %v1224 = vpop.f32.mrf.mxu0
        %v1225 = vpop.f32.mrf.mxu0
        %v1226 = vadd.f32 0.0, %v1225
        %v1227 = vpop.f32.mrf.mxu0
        %1228 = vdwg.mxu0
        %v1229 = vmul.f32 %v1199, %v1199
        %v1230 = vmul.f32 %v1202, %v1202
        %v1231 = vmul.f32 %v1207, %v1207
        %v1232 = vmul.f32 %v1210, %v1210
        %v1233 = vmul.f32 %v1215, %v1215
        %v1234 = vmul.f32 %v1218, %v1218
        %v1235 = vmul.f32 %v1223, %v1223
        %v1236 = vmul.f32 %v1226, %v1226
        %1245 = vrot.lane.b32.xlu0 %v1229, 64
        %v1246 = vpop.permute.xlu0 %1245
        %1247 = vrot.lane.b32.xlu0 %v1230, 64
        %v1248 = vpop.permute.xlu0 %1247
        %1249 = vrot.lane.b32.xlu0 %v1231, 64
        %v1250 = vpop.permute.xlu0 %1249
        %1251 = vrot.lane.b32.xlu0 %v1232, 64
        %v1252 = vpop.permute.xlu0 %1251
        %1253 = vrot.lane.b32.xlu0 %v1233, 64
        %v1254 = vpop.permute.xlu0 %1253
        %1255 = vrot.lane.b32.xlu0 %v1234, 64
        %v1256 = vpop.permute.xlu0 %1255
        %1257 = vrot.lane.b32.xlu0 %v1235, 64
        %v1258 = vpop.permute.xlu0 %1257
        %1259 = vrot.lane.b32.xlu0 %v1236, 64
        %v1260 = vpop.permute.xlu0 %1259
        %v1269 = vadd.f32 %v1229, %v1246
        %v1270 = vadd.f32 %v1230, %v1248
        %v1271 = vadd.f32 %v1231, %v1250
        %v1272 = vadd.f32 %v1232, %v1252
        %v1273 = vadd.f32 %v1233, %v1254
        %v1274 = vadd.f32 %v1234, %v1256
        %v1275 = vadd.f32 %v1235, %v1258
        %v1276 = vadd.f32 %v1236, %v1260
        %v1277 = vrsqrt.pop %v1269
        %v1278 = vmul.f32 %v1269, %v1277
        %vm1279 = vcmp.eq.f32.partialorder %v1269, inf
        %v1280 = vsel %vm1279, %v1269, %v1278
        %vm1281 = vcmp.eq.f32.partialorder %v1269, 0.0
        %v1282 = vand.u32 %v1269, 2147483648
        %v1283 = vsel %vm1281, %v1282, %v1280
        %v1284 = vrsqrt.pop %v1270
        %v1285 = vmul.f32 %v1270, %v1284
        %vm1286 = vcmp.eq.f32.partialorder %v1270, inf
        %v1287 = vsel %vm1286, %v1270, %v1285
        %vm1288 = vcmp.eq.f32.partialorder %v1270, 0.0
        %v1289 = vand.u32 %v1270, 2147483648
        %v1290 = vsel %vm1288, %v1289, %v1287
        %v1291 = vrsqrt.pop %v1271
        %v1292 = vmul.f32 %v1271, %v1291
        %vm1293 = vcmp.eq.f32.partialorder %v1271, inf
        %v1294 = vsel %vm1293, %v1271, %v1292
        %vm1295 = vcmp.eq.f32.partialorder %v1271, 0.0
        %v1296 = vand.u32 %v1271, 2147483648
        %v1297 = vsel %vm1295, %v1296, %v1294
        %v1298 = vrsqrt.pop %v1272
        %v1299 = vmul.f32 %v1272, %v1298
        %vm1300 = vcmp.eq.f32.partialorder %v1272, inf
        %v1301 = vsel %vm1300, %v1272, %v1299
        %vm1302 = vcmp.eq.f32.partialorder %v1272, 0.0
        %v1303 = vand.u32 %v1272, 2147483648
        %v1304 = vsel %vm1302, %v1303, %v1301
        %v1305 = vrsqrt.pop %v1273
        %v1306 = vmul.f32 %v1273, %v1305
        %vm1307 = vcmp.eq.f32.partialorder %v1273, inf
        %v1308 = vsel %vm1307, %v1273, %v1306
        %vm1309 = vcmp.eq.f32.partialorder %v1273, 0.0
        %v1310 = vand.u32 %v1273, 2147483648
        %v1311 = vsel %vm1309, %v1310, %v1308
        %v1312 = vrsqrt.pop %v1274
        %v1313 = vmul.f32 %v1274, %v1312
        %vm1314 = vcmp.eq.f32.partialorder %v1274, inf
        %v1315 = vsel %vm1314, %v1274, %v1313
        %vm1316 = vcmp.eq.f32.partialorder %v1274, 0.0
        %v1317 = vand.u32 %v1274, 2147483648
        %v1318 = vsel %vm1316, %v1317, %v1315
        %v1319 = vrsqrt.pop %v1275
        %v1320 = vmul.f32 %v1275, %v1319
        %vm1321 = vcmp.eq.f32.partialorder %v1275, inf
        %v1322 = vsel %vm1321, %v1275, %v1320
        %vm1323 = vcmp.eq.f32.partialorder %v1275, 0.0
        %v1324 = vand.u32 %v1275, 2147483648
        %v1325 = vsel %vm1323, %v1324, %v1322
        %v1326 = vrsqrt.pop %v1276
        %v1327 = vmul.f32 %v1276, %v1326
        %vm1328 = vcmp.eq.f32.partialorder %v1276, inf
        %v1329 = vsel %vm1328, %v1276, %v1327
        %vm1330 = vcmp.eq.f32.partialorder %v1276, 0.0
        %v1331 = vand.u32 %v1276, 2147483648
        %v1332 = vsel %vm1330, %v1331, %v1329
        %v1333 = vsel %vm696, %v1283, -inf
        %1334 = vmax.xlane.f32.xlu0 %v1333
        %v1335 = vpop.xlane.xlu0 %1334
        %v1336 = vsel %vm696, %v1290, -inf
        %1337 = vmax.xlane.f32.xlu0 %v1336
        %v1338 = vpop.xlane.xlu0 %1337
        %v1339 = vsel %vm696, %v1297, -inf
        %1340 = vmax.xlane.f32.xlu0 %v1339
        %v1341 = vpop.xlane.xlu0 %1340
        %v1342 = vsel %vm696, %v1304, -inf
        %1343 = vmax.xlane.f32.xlu0 %v1342
        %v1344 = vpop.xlane.xlu0 %1343
        %v1345 = vsel %vm696, %v1311, -inf
        %1346 = vmax.xlane.f32.xlu0 %v1345
        %v1347 = vpop.xlane.xlu0 %1346
        %v1348 = vsel %vm696, %v1318, -inf
        %1349 = vmax.xlane.f32.xlu0 %v1348
        %v1350 = vpop.xlane.xlu0 %1349
        %v1351 = vsel %vm696, %v1325, -inf
        %1352 = vmax.xlane.f32.xlu0 %v1351
        %v1353 = vpop.xlane.xlu0 %1352
        %v1354 = vsel %vm696, %v1332, -inf
        %1355 = vmax.xlane.f32.xlu0 %v1354
        %v1356 = vpop.xlane.xlu0 %1355
        %v1357 = vsub.f32 %v1283, %v1335
        %v1358 = vsub.f32 %v1290, %v1338
        %v1359 = vsub.f32 %v1297, %v1341
        %v1360 = vsub.f32 %v1304, %v1344
        %v1361 = vsub.f32 %v1311, %v1347
        %v1362 = vsub.f32 %v1318, %v1350
        %v1363 = vsub.f32 %v1325, %v1353
        %v1364 = vsub.f32 %v1332, %v1356
        %v1365 = vmul.f32 %v1357, 1.442695
        %v1366 = vpow.pop %v1365
        %v1367 = vmul.f32 %v1358, 1.442695
        %v1368 = vpow.pop %v1367
        %v1369 = vmul.f32 %v1359, 1.442695
        %v1370 = vpow.pop %v1369
        %v1371 = vmul.f32 %v1360, 1.442695
        %v1372 = vpow.pop %v1371
        %v1373 = vmul.f32 %v1361, 1.442695
        %v1374 = vpow.pop %v1373
        %v1375 = vmul.f32 %v1362, 1.442695
        %v1376 = vpow.pop %v1375
        %v1377 = vmul.f32 %v1363, 1.442695
        %v1378 = vpow.pop %v1377
        %v1379 = vmul.f32 %v1364, 1.442695
        %v1380 = vpow.pop %v1379
        %v1381 = vsel %vm696, %v1366, 0.0
        %1382 = vadd.xlane.f32.xlu0 %v1381
        %v1383 = vpop.xlane.xlu0 %1382
        %v1384 = vsel %vm696, %v1368, 0.0
        %1385 = vadd.xlane.f32.xlu0 %v1384
        %v1386 = vpop.xlane.xlu0 %1385
        %v1387 = vsel %vm696, %v1370, 0.0
        %1388 = vadd.xlane.f32.xlu0 %v1387
        %v1389 = vpop.xlane.xlu0 %1388
        %v1390 = vsel %vm696, %v1372, 0.0
        %1391 = vadd.xlane.f32.xlu0 %v1390
        %v1392 = vpop.xlane.xlu0 %1391
        %v1393 = vsel %vm696, %v1374, 0.0
        %1394 = vadd.xlane.f32.xlu0 %v1393
        %v1395 = vpop.xlane.xlu0 %1394
        %v1396 = vsel %vm696, %v1376, 0.0
        %1397 = vadd.xlane.f32.xlu0 %v1396
        %v1398 = vpop.xlane.xlu0 %1397
        %v1399 = vsel %vm696, %v1378, 0.0
        %1400 = vadd.xlane.f32.xlu0 %v1399
        %v1401 = vpop.xlane.xlu0 %1400
        %v1402 = vsel %vm696, %v1380, 0.0
        %1403 = vadd.xlane.f32.xlu0 %v1402
        %v1404 = vpop.xlane.xlu0 %1403
        %v1405 = vrcp.pop %v1383
        %v1406 = vrcp.pop %v1386
        %v1407 = vrcp.pop %v1389
        %v1408 = vrcp.pop %v1392
        %v1409 = vrcp.pop %v1395
        %v1410 = vrcp.pop %v1398
        %v1411 = vrcp.pop %v1401
        %v1412 = vrcp.pop %v1404
        %v1413 = vmul.f32 %v1366, %v1405
        %v1414 = vmul.f32 %v1368, %v1406
        %v1415 = vmul.f32 %v1370, %v1407
        %v1416 = vmul.f32 %v1372, %v1408
        %v1417 = vmul.f32 %v1374, %v1409
        %v1418 = vmul.f32 %v1376, %v1410
        %v1419 = vmul.f32 %v1378, %v1411
        %v1420 = vmul.f32 %v1380, %v1412
        %v1421 = vpack.c.bf16 %v1414, %v1413
        %v1422 = vpack.c.bf16 %v1416, %v1415
        %v1423 = vpack.c.bf16 %v1418, %v1417
        %v1424 = vpack.c.bf16 %v1420, %v1419
        %v1426 = vsel %vm696, %v1421, 0
        %v1429 = vsel %vm696, %v1422, 0
        %v1432 = vsel %vm696, %v1423, 0
        %v1435 = vsel %vm696, %v1424, 0
        %1437 = vmatprep.subr.bf16.mxu0 0
        %1438 = vmatpush1.bf16.msra.mxu0 0
        %1439 = vmatprep.subr.bf16.mxu0 0
        %1440 = vmatpush1.bf16.msra.mxu0 0
        %1441 = vmatprep.subr.bf16.mxu0 0
        %1442 = vmatpush1.bf16.msra.mxu0 0
        %1443 = vmatprep.subr.bf16.mxu0 0
        %1444 = vmatpush1.bf16.msra.mxu0 0
        %1445 = vmatprep.subr.bf16.mxu0 0
        %1446 = vmatpush1.bf16.msra.mxu0 %v1139
        %1447 = vmatprep.subr.bf16.mxu0 0
        %1448 = vmatpush1.bf16.msra.mxu0 %v1138
        %1449 = vmatprep.subr.bf16.mxu0 0
        %1450 = vmatpush1.bf16.msra.mxu0 %v1137
        %1451 = vmatprep.subr.bf16.mxu0 0
        %1452 = vmatpush1.bf16.msra.mxu0 %v1136
        %1453 = vmatprep.subr.bf16.mxu0 0
        %1454 = vmatpush2.bf16.msra.mxu0 0
        %1455 = vmatprep.subr.bf16.mxu0 0
        %1456 = vmatpush2.bf16.msra.mxu0 0
        %1457 = vmatprep.subr.bf16.mxu0 0
        %1458 = vmatpush2.bf16.msra.mxu0 0
        %1459 = vmatprep.subr.bf16.mxu0 0
        %1460 = vmatpush2.bf16.msra.mxu0 0
        %1461 = vmatprep.subr.bf16.mxu0 0
        %1462 = vmatpush2.bf16.msra.mxu0 0
        %1463 = vmatprep.subr.bf16.mxu0 0
        %1464 = vmatpush2.bf16.msra.mxu0 0
        %1465 = vmatprep.subr.bf16.mxu0 0
        %1466 = vmatpush2.bf16.msra.mxu0 0
        %1467 = vmatprep.subr.bf16.mxu0 0
        %1468 = vmatpush2.bf16.msra.mxu0 0
        %1469 = vmatprep.mubr.bf16.mxu0 0
        %1470 = vmatmul.mubr.bf16.gmra.mxu0 %v1426
        %v1471 = vpop.f32.mrf.mxu0
        %v1472 = vadd.f32 0.0, %v1471
        %v1473 = vpop.f32.mrf.mxu0
        %v1474 = vpop.f32.mrf.mxu0
        %v1475 = vadd.f32 0.0, %v1474
        %v1476 = vpop.f32.mrf.mxu0
        %1477 = vmatprep.mubr.bf16.mxu0 0
        %1478 = vmatmul.mubr.bf16.gmra.mxu0 %v1429
        %v1479 = vpop.f32.mrf.mxu0
        %v1480 = vadd.f32 0.0, %v1479
        %v1481 = vpop.f32.mrf.mxu0
        %v1482 = vpop.f32.mrf.mxu0
        %v1483 = vadd.f32 0.0, %v1482
        %v1484 = vpop.f32.mrf.mxu0
        %1485 = vmatprep.mubr.bf16.mxu0 0
        %1486 = vmatmul.mubr.bf16.gmra.mxu0 %v1432
        %v1487 = vpop.f32.mrf.mxu0
        %v1488 = vadd.f32 0.0, %v1487
        %v1489 = vpop.f32.mrf.mxu0
        %v1490 = vpop.f32.mrf.mxu0
        %v1491 = vadd.f32 0.0, %v1490
        %v1492 = vpop.f32.mrf.mxu0
        %1493 = vmatprep.mubr.bf16.mxu0 0
        %1494 = vmatmul.mubr.bf16.gmra.mxu0 %v1435
        %v1495 = vpop.f32.mrf.mxu0
        %v1496 = vadd.f32 0.0, %v1495
        %v1497 = vpop.f32.mrf.mxu0
        %v1498 = vpop.f32.mrf.mxu0
        %v1499 = vadd.f32 0.0, %v1498
        %v1500 = vpop.f32.mrf.mxu0
        %1501 = vdwg.mxu0
        %v1502 = vld [vmem:[%s3 + $0x8] sm:$0xf]
        %v1503 = vld [vmem:[%s3 + $0xc] sm:$0xf]
        %v1504 = vpack.c.bf16 %v1475, %v1472
        %v1505 = vpack.c.bf16 %v1483, %v1480
        %v1506 = vpack.c.bf16 %v1491, %v1488
        %v1507 = vpack.c.bf16 %v1499, %v1496
        %v1510 = vunpack.c.l.b16 %v1502
        %v1511 = vunpack.c.l.b16 %v1503
        %v1512 = vpack.c.b16 %v1511, %v1510
        %v1515 = vsel %vm736, %v1504, 0
        %v1518 = vsel %vm736, %v1505, 0
        %v1521 = vsel %vm736, %v1506, 0
        %v1524 = vsel %vm736, %v1507, 0
        %1526 = vmatprep.subr.bf16.mxu0 0
        %1527 = vmatpush1.bf16.msra.mxu0 0
        %1528 = vmatprep.subr.bf16.mxu0 0
        %1529 = vmatpush1.bf16.msra.mxu0 0
        %1530 = vmatprep.subr.bf16.mxu0 0
        %1531 = vmatpush1.bf16.msra.mxu0 0
        %1532 = vmatprep.subr.bf16.mxu0 0
        %1533 = vmatpush1.bf16.msra.mxu0 0
        %1534 = vmatprep.subr.bf16.mxu0 0
        %1535 = vmatpush1.bf16.msra.mxu0 0
        %1536 = vmatprep.subr.bf16.mxu0 0
        %1537 = vmatpush1.bf16.msra.mxu0 0
        %1538 = vmatprep.subr.bf16.mxu0 0
        %1539 = vmatpush1.bf16.msra.mxu0 0
        %1540 = vmatprep.subr.bf16.mxu0 0
        %1541 = vmatpush1.bf16.msra.mxu0 %v1512
        %1542 = vmatprep.subr.bf16.mxu0 0
        %1543 = vmatpush2.bf16.msra.mxu0 0
        %1544 = vmatprep.subr.bf16.mxu0 0
        %1545 = vmatpush2.bf16.msra.mxu0 0
        %1546 = vmatprep.subr.bf16.mxu0 0
        %1547 = vmatpush2.bf16.msra.mxu0 0
        %1548 = vmatprep.subr.bf16.mxu0 0
        %1549 = vmatpush2.bf16.msra.mxu0 0
        %1550 = vmatprep.subr.bf16.mxu0 0
        %1551 = vmatpush2.bf16.msra.mxu0 0
        %1552 = vmatprep.subr.bf16.mxu0 0
        %1553 = vmatpush2.bf16.msra.mxu0 0
        %1554 = vmatprep.subr.bf16.mxu0 0
        %1555 = vmatpush2.bf16.msra.mxu0 0
        %1556 = vmatprep.subr.bf16.mxu0 0
        %1557 = vmatpush2.bf16.msra.mxu0 0
        %1558 = vmatprep.mubr.bf16.mxu0 0
        %1559 = vmatmul.mubr.bf16.gmra.mxu0 %v1515
        %v1560 = vpop.f32.mrf.mxu0
        %v1561 = vadd.f32 0.0, %v1560
        %v1562 = vpop.f32.mrf.mxu0
        %v1563 = vpop.f32.mrf.mxu0
        %v1564 = vadd.f32 0.0, %v1563
        %v1565 = vpop.f32.mrf.mxu0
        %1566 = vmatprep.mubr.bf16.mxu0 0
        %1567 = vmatmul.mubr.bf16.gmra.mxu0 %v1518
        %v1568 = vpop.f32.mrf.mxu0
        %v1569 = vadd.f32 0.0, %v1568
        %v1570 = vpop.f32.mrf.mxu0
        %v1571 = vpop.f32.mrf.mxu0
        %v1572 = vadd.f32 0.0, %v1571
        %v1573 = vpop.f32.mrf.mxu0
        %1574 = vmatprep.mubr.bf16.mxu0 0
        %1575 = vmatmul.mubr.bf16.gmra.mxu0 %v1521
        %v1576 = vpop.f32.mrf.mxu0
        %v1577 = vadd.f32 0.0, %v1576
        %v1578 = vpop.f32.mrf.mxu0
        %v1579 = vpop.f32.mrf.mxu0
        %v1580 = vadd.f32 0.0, %v1579
        %v1581 = vpop.f32.mrf.mxu0
        %1582 = vmatprep.mubr.bf16.mxu0 0
        %1583 = vmatmul.mubr.bf16.gmra.mxu0 %v1524
        %v1584 = vpop.f32.mrf.mxu0
        %v1585 = vadd.f32 0.0, %v1584
        %v1586 = vpop.f32.mrf.mxu0
        %v1587 = vpop.f32.mrf.mxu0
        %v1588 = vadd.f32 0.0, %v1587
        %v1589 = vpop.f32.mrf.mxu0
        %1590 = vdwg.mxu0
        %v1593 = vunpack.c.l.b16 %v1087
        %v1594 = vunpack.c.l.b16 %v1088
        %v1595 = vpack.c.b16 %v1594, %v1593
        %v1598 = vsel %vm736, %v1089, 0
        %v1601 = vsel %vm736, %v1090, 0
        %v1604 = vsel %vm736, %v1091, 0
        %v1607 = vsel %vm736, %v1092, 0
        %1609 = vmatprep.subr.bf16.mxu0 0
        %1610 = vmatpush1.bf16.msra.mxu0 0
        %1611 = vmatprep.subr.bf16.mxu0 0
        %1612 = vmatpush1.bf16.msra.mxu0 0
        %1613 = vmatprep.subr.bf16.mxu0 0
        %1614 = vmatpush1.bf16.msra.mxu0 0
        %1615 = vmatprep.subr.bf16.mxu0 0
        %1616 = vmatpush1.bf16.msra.mxu0 0
        %1617 = vmatprep.subr.bf16.mxu0 0
        %1618 = vmatpush1.bf16.msra.mxu0 0
        %1619 = vmatprep.subr.bf16.mxu0 0
        %1620 = vmatpush1.bf16.msra.mxu0 0
        %1621 = vmatprep.subr.bf16.mxu0 0
        %1622 = vmatpush1.bf16.msra.mxu0 0
        %1623 = vmatprep.subr.bf16.mxu0 0
        %1624 = vmatpush1.bf16.msra.mxu0 %v1595
        %1625 = vmatprep.subr.bf16.mxu0 0
        %1626 = vmatpush2.bf16.msra.mxu0 0
        %1627 = vmatprep.subr.bf16.mxu0 0
        %1628 = vmatpush2.bf16.msra.mxu0 0
        %1629 = vmatprep.subr.bf16.mxu0 0
        %1630 = vmatpush2.bf16.msra.mxu0 0
        %1631 = vmatprep.subr.bf16.mxu0 0
        %1632 = vmatpush2.bf16.msra.mxu0 0
        %1633 = vmatprep.subr.bf16.mxu0 0
        %1634 = vmatpush2.bf16.msra.mxu0 0
        %1635 = vmatprep.subr.bf16.mxu0 0
        %1636 = vmatpush2.bf16.msra.mxu0 0
        %1637 = vmatprep.subr.bf16.mxu0 0
        %1638 = vmatpush2.bf16.msra.mxu0 0
        %1639 = vmatprep.subr.bf16.mxu0 0
        %1640 = vmatpush2.bf16.msra.mxu0 0
        %1641 = vmatprep.mubr.bf16.mxu0 0
        %1642 = vmatmul.mubr.bf16.gmra.mxu0 %v1598
        %v1643 = vpop.f32.mrf.mxu0
        %v1644 = vadd.f32 %v1561, %v1643
        %v1645 = vpop.f32.mrf.mxu0
        %v1646 = vpop.f32.mrf.mxu0
        %v1647 = vadd.f32 %v1564, %v1646
        %v1648 = vpop.f32.mrf.mxu0
        %1649 = vmatprep.mubr.bf16.mxu0 0
        %1650 = vmatmul.mubr.bf16.gmra.mxu0 %v1601
        %v1651 = vpop.f32.mrf.mxu0
        %v1652 = vadd.f32 %v1569, %v1651
        %v1653 = vpop.f32.mrf.mxu0
        %v1654 = vpop.f32.mrf.mxu0
        %v1655 = vadd.f32 %v1572, %v1654
        %v1656 = vpop.f32.mrf.mxu0
        %1657 = vmatprep.mubr.bf16.mxu0 0
        %1658 = vmatmul.mubr.bf16.gmra.mxu0 %v1604
        %v1659 = vpop.f32.mrf.mxu0
        %v1660 = vadd.f32 %v1577, %v1659
        %v1661 = vpop.f32.mrf.mxu0
        %v1662 = vpop.f32.mrf.mxu0
        %v1663 = vadd.f32 %v1580, %v1662
        %v1664 = vpop.f32.mrf.mxu0
        %1665 = vmatprep.mubr.bf16.mxu0 0
        %1666 = vmatmul.mubr.bf16.gmra.mxu0 %v1607
        %v1667 = vpop.f32.mrf.mxu0
        %v1668 = vadd.f32 %v1585, %v1667
        %v1669 = vpop.f32.mrf.mxu0
        %v1670 = vpop.f32.mrf.mxu0
        %v1671 = vadd.f32 %v1588, %v1670
        %v1672 = vpop.f32.mrf.mxu0
        %1673 = vdwg.mxu0
        %1676 = vrot.lane.b32.xlu0 %v606, 64
        %v1677 = vpop.permute.xlu0 %1676
        %1678 = vrot.lane.b32.xlu0 %v609, 64
        %v1679 = vpop.permute.xlu0 %1678
        %v1682 = vsel %vm696, %v574, %v1677
        %v1683 = vsel %vm696, %v577, %v1679
        %v1684 = vpack.c.bf16 %v1683, %v1682
        %1685 = vxpose.xlu0.b32.start [1/16] %v638, 128
        %1686 = vxpose.xlu0.b32.cont [2/16] %v641, 128
        %1687 = vxpose.xlu0.b32.cont [3/16] 0.0, 128
        %1688 = vxpose.xlu0.b32.cont [4/16] 0.0, 128
        %1689 = vxpose.xlu0.b32.cont [5/16] 0.0, 128
        %1690 = vxpose.xlu0.b32.cont [6/16] 0.0, 128
        %1691 = vxpose.xlu0.b32.cont [7/16] 0.0, 128
        %1692 = vxpose.xlu0.b32.cont [8/16] 0.0, 128
        %1693 = vxpose.xlu0.b32.cont [9/16] 0.0, 128
        %1694 = vxpose.xlu0.b32.cont [10/16] 0.0, 128
        %1695 = vxpose.xlu0.b32.cont [11/16] 0.0, 128
        %1696 = vxpose.xlu0.b32.cont [12/16] 0.0, 128
        %1697 = vxpose.xlu0.b32.cont [13/16] 0.0, 128
        %1698 = vxpose.xlu0.b32.cont [14/16] 0.0, 128
        %1699 = vxpose.xlu0.b32.cont [15/16] 0.0, 128
        %1700 = vxpose.xlu0.b32.end [16/16] 0.0, 128
        %v1701 = vpop.trf.xlu0
        %v1702 = vpop.trf.xlu0
        %v1703 = vpop.trf.xlu0
        %v1704 = vpop.trf.xlu0
        %v1705 = vpop.trf.xlu0
        %v1706 = vpop.trf.xlu0
        %v1707 = vpop.trf.xlu0
        %v1708 = vpop.trf.xlu0
        %v1709 = vpop.trf.xlu0
        %v1710 = vpop.trf.xlu0
        %v1711 = vpop.trf.xlu0
        %v1712 = vpop.trf.xlu0
        %v1713 = vpop.trf.xlu0
        %v1714 = vpop.trf.xlu0
        %v1715 = vpop.trf.xlu0
        %v1716 = vpop.trf.xlu0
        %v1717 = vpack.c.bf16 %v1702, %v1701
        %v1718 = vpack.c.bf16 %v1704, %v1703
        %v1719 = vpack.c.bf16 %v1706, %v1705
        %v1720 = vpack.c.bf16 %v1708, %v1707
        %1721 = vrot.lane.b32.xlu0 %v684, 96
        %v1722 = vpop.permute.xlu0 %1721
        %1723 = vrot.lane.b32.xlu0 %v685, 96
        %v1724 = vpop.permute.xlu0 %1723
        %1725 = vrot.lane.b32.xlu0 %v686, 96
        %v1726 = vpop.permute.xlu0 %1725
        %1727 = vrot.lane.b32.xlu0 %v687, 96
        %v1728 = vpop.permute.xlu0 %1727
        %v1730 = vsel %vm736, %v1722, 0
        %v1733 = vsel %vm736, %v1724, 0
        %v1736 = vsel %vm736, %v1726, 0
        %v1739 = vsel %vm736, %v1728, 0
        %1741 = vmatprep.subr.bf16.mxu0 0
        %1742 = vmatpush1.bf16.msra.mxu0 0
        %1743 = vmatprep.subr.bf16.mxu0 0
        %1744 = vmatpush1.bf16.msra.mxu0 0
        %1745 = vmatprep.subr.bf16.mxu0 0
        %1746 = vmatpush1.bf16.msra.mxu0 0
        %1747 = vmatprep.subr.bf16.mxu0 0
        %1748 = vmatpush1.bf16.msra.mxu0 0
        %1749 = vmatprep.subr.bf16.mxu0 0
        %1750 = vmatpush1.bf16.msra.mxu0 0
        %1751 = vmatprep.subr.bf16.mxu0 0
        %1752 = vmatpush1.bf16.msra.mxu0 0
        %1753 = vmatprep.subr.bf16.mxu0 0
        %1754 = vmatpush1.bf16.msra.mxu0 0
        %1755 = vmatprep.subr.bf16.mxu0 0
        %1756 = vmatpush1.bf16.msra.mxu0 %v1684
        %1757 = vmatprep.subr.bf16.mxu0 0
        %1758 = vmatpush2.bf16.msra.mxu0 0
        %1759 = vmatprep.subr.bf16.mxu0 0
        %1760 = vmatpush2.bf16.msra.mxu0 0
        %1761 = vmatprep.subr.bf16.mxu0 0
        %1762 = vmatpush2.bf16.msra.mxu0 0
        %1763 = vmatprep.subr.bf16.mxu0 0
        %1764 = vmatpush2.bf16.msra.mxu0 0
        %1765 = vmatprep.subr.bf16.mxu0 0
        %1766 = vmatpush2.bf16.msra.mxu0 0
        %1767 = vmatprep.subr.bf16.mxu0 0
        %1768 = vmatpush2.bf16.msra.mxu0 0
        %1769 = vmatprep.subr.bf16.mxu0 0
        %1770 = vmatpush2.bf16.msra.mxu0 0
        %1771 = vmatprep.subr.bf16.mxu0 0
        %1772 = vmatpush2.bf16.msra.mxu0 0
        %1773 = vmatprep.mubr.bf16.mxu0 0
        %1774 = vmatmul.mubr.bf16.gmra.mxu0 %v1730
        %v1775 = vpop.f32.mrf.mxu0
        %v1776 = vadd.f32 0.0, %v1775
        %v1777 = vpop.f32.mrf.mxu0
        %v1778 = vpop.f32.mrf.mxu0
        %v1779 = vadd.f32 0.0, %v1778
        %v1780 = vpop.f32.mrf.mxu0
        %1781 = vmatprep.mubr.bf16.mxu0 0
        %1782 = vmatmul.mubr.bf16.gmra.mxu0 %v1733
        %v1783 = vpop.f32.mrf.mxu0
        %v1784 = vadd.f32 0.0, %v1783
        %v1785 = vpop.f32.mrf.mxu0
        %v1786 = vpop.f32.mrf.mxu0
        %v1787 = vadd.f32 0.0, %v1786
        %v1788 = vpop.f32.mrf.mxu0
        %1789 = vmatprep.mubr.bf16.mxu0 0
        %1790 = vmatmul.mubr.bf16.gmra.mxu0 %v1736
        %v1791 = vpop.f32.mrf.mxu0
        %v1792 = vadd.f32 0.0, %v1791
        %v1793 = vpop.f32.mrf.mxu0
        %v1794 = vpop.f32.mrf.mxu0
        %v1795 = vadd.f32 0.0, %v1794
        %v1796 = vpop.f32.mrf.mxu0
        %1797 = vmatprep.mubr.bf16.mxu0 0
        %1798 = vmatmul.mubr.bf16.gmra.mxu0 %v1739
        %v1799 = vpop.f32.mrf.mxu0
        %v1800 = vadd.f32 0.0, %v1799
        %v1801 = vpop.f32.mrf.mxu0
        %v1802 = vpop.f32.mrf.mxu0
        %v1803 = vadd.f32 0.0, %v1802
        %v1804 = vpop.f32.mrf.mxu0
        %1805 = vdwg.mxu0
        %v1806 = vmul.f32 %v1776, %v1776
        %v1807 = vmul.f32 %v1779, %v1779
        %v1808 = vmul.f32 %v1784, %v1784
        %v1809 = vmul.f32 %v1787, %v1787
        %v1810 = vmul.f32 %v1792, %v1792
        %v1811 = vmul.f32 %v1795, %v1795
        %v1812 = vmul.f32 %v1800, %v1800
        %v1813 = vmul.f32 %v1803, %v1803
        %1822 = vrot.lane.b32.xlu0 %v1806, 64
        %v1823 = vpop.permute.xlu0 %1822
        %1824 = vrot.lane.b32.xlu0 %v1807, 64
        %v1825 = vpop.permute.xlu0 %1824
        %1826 = vrot.lane.b32.xlu0 %v1808, 64
        %v1827 = vpop.permute.xlu0 %1826
        %1828 = vrot.lane.b32.xlu0 %v1809, 64
        %v1829 = vpop.permute.xlu0 %1828
        %1830 = vrot.lane.b32.xlu0 %v1810, 64
        %v1831 = vpop.permute.xlu0 %1830
        %1832 = vrot.lane.b32.xlu0 %v1811, 64
        %v1833 = vpop.permute.xlu0 %1832
        %1834 = vrot.lane.b32.xlu0 %v1812, 64
        %v1835 = vpop.permute.xlu0 %1834
        %1836 = vrot.lane.b32.xlu0 %v1813, 64
        %v1837 = vpop.permute.xlu0 %1836
        %v1846 = vadd.f32 %v1806, %v1823
        %v1847 = vadd.f32 %v1807, %v1825
        %v1848 = vadd.f32 %v1808, %v1827
        %v1849 = vadd.f32 %v1809, %v1829
        %v1850 = vadd.f32 %v1810, %v1831
        %v1851 = vadd.f32 %v1811, %v1833
        %v1852 = vadd.f32 %v1812, %v1835
        %v1853 = vadd.f32 %v1813, %v1837
        %v1854 = vrsqrt.pop %v1846
        %v1855 = vmul.f32 %v1846, %v1854
        %vm1856 = vcmp.eq.f32.partialorder %v1846, inf
        %v1857 = vsel %vm1856, %v1846, %v1855
        %vm1858 = vcmp.eq.f32.partialorder %v1846, 0.0
        %v1859 = vand.u32 %v1846, 2147483648
        %v1860 = vsel %vm1858, %v1859, %v1857
        %v1861 = vrsqrt.pop %v1847
        %v1862 = vmul.f32 %v1847, %v1861
        %vm1863 = vcmp.eq.f32.partialorder %v1847, inf
        %v1864 = vsel %vm1863, %v1847, %v1862
        %vm1865 = vcmp.eq.f32.partialorder %v1847, 0.0
        %v1866 = vand.u32 %v1847, 2147483648
        %v1867 = vsel %vm1865, %v1866, %v1864
        %v1868 = vrsqrt.pop %v1848
        %v1869 = vmul.f32 %v1848, %v1868
        %vm1870 = vcmp.eq.f32.partialorder %v1848, inf
        %v1871 = vsel %vm1870, %v1848, %v1869
        %vm1872 = vcmp.eq.f32.partialorder %v1848, 0.0
        %v1873 = vand.u32 %v1848, 2147483648
        %v1874 = vsel %vm1872, %v1873, %v1871
        %v1875 = vrsqrt.pop %v1849
        %v1876 = vmul.f32 %v1849, %v1875
        %vm1877 = vcmp.eq.f32.partialorder %v1849, inf
        %v1878 = vsel %vm1877, %v1849, %v1876
        %vm1879 = vcmp.eq.f32.partialorder %v1849, 0.0
        %v1880 = vand.u32 %v1849, 2147483648
        %v1881 = vsel %vm1879, %v1880, %v1878
        %v1882 = vrsqrt.pop %v1850
        %v1883 = vmul.f32 %v1850, %v1882
        %vm1884 = vcmp.eq.f32.partialorder %v1850, inf
        %v1885 = vsel %vm1884, %v1850, %v1883
        %vm1886 = vcmp.eq.f32.partialorder %v1850, 0.0
        %v1887 = vand.u32 %v1850, 2147483648
        %v1888 = vsel %vm1886, %v1887, %v1885
        %v1889 = vrsqrt.pop %v1851
        %v1890 = vmul.f32 %v1851, %v1889
        %vm1891 = vcmp.eq.f32.partialorder %v1851, inf
        %v1892 = vsel %vm1891, %v1851, %v1890
        %vm1893 = vcmp.eq.f32.partialorder %v1851, 0.0
        %v1894 = vand.u32 %v1851, 2147483648
        %v1895 = vsel %vm1893, %v1894, %v1892
        %v1896 = vrsqrt.pop %v1852
        %v1897 = vmul.f32 %v1852, %v1896
        %vm1898 = vcmp.eq.f32.partialorder %v1852, inf
        %v1899 = vsel %vm1898, %v1852, %v1897
        %vm1900 = vcmp.eq.f32.partialorder %v1852, 0.0
        %v1901 = vand.u32 %v1852, 2147483648
        %v1902 = vsel %vm1900, %v1901, %v1899
        %v1903 = vrsqrt.pop %v1853
        %v1904 = vmul.f32 %v1853, %v1903
        %vm1905 = vcmp.eq.f32.partialorder %v1853, inf
        %v1906 = vsel %vm1905, %v1853, %v1904
        %vm1907 = vcmp.eq.f32.partialorder %v1853, 0.0
        %v1908 = vand.u32 %v1853, 2147483648
        %v1909 = vsel %vm1907, %v1908, %v1906
        %v1910 = vsel %vm696, %v1860, -inf
        %1911 = vmax.xlane.f32.xlu0 %v1910
        %v1912 = vpop.xlane.xlu0 %1911
        %v1913 = vsel %vm696, %v1867, -inf
        %1914 = vmax.xlane.f32.xlu0 %v1913
        %v1915 = vpop.xlane.xlu0 %1914
        %v1916 = vsel %vm696, %v1874, -inf
        %1917 = vmax.xlane.f32.xlu0 %v1916
        %v1918 = vpop.xlane.xlu0 %1917
        %v1919 = vsel %vm696, %v1881, -inf
        %1920 = vmax.xlane.f32.xlu0 %v1919
        %v1921 = vpop.xlane.xlu0 %1920
        %v1922 = vsel %vm696, %v1888, -inf
        %1923 = vmax.xlane.f32.xlu0 %v1922
        %v1924 = vpop.xlane.xlu0 %1923
        %v1925 = vsel %vm696, %v1895, -inf
        %1926 = vmax.xlane.f32.xlu0 %v1925
        %v1927 = vpop.xlane.xlu0 %1926
        %v1928 = vsel %vm696, %v1902, -inf
        %1929 = vmax.xlane.f32.xlu0 %v1928
        %v1930 = vpop.xlane.xlu0 %1929
        %v1931 = vsel %vm696, %v1909, -inf
        %1932 = vmax.xlane.f32.xlu0 %v1931
        %v1933 = vpop.xlane.xlu0 %1932
        %v1934 = vsub.f32 %v1860, %v1912
        %v1935 = vsub.f32 %v1867, %v1915
        %v1936 = vsub.f32 %v1874, %v1918
        %v1937 = vsub.f32 %v1881, %v1921
        %v1938 = vsub.f32 %v1888, %v1924
        %v1939 = vsub.f32 %v1895, %v1927
        %v1940 = vsub.f32 %v1902, %v1930
        %v1941 = vsub.f32 %v1909, %v1933
        %v1942 = vmul.f32 %v1934, 1.442695
        %v1943 = vpow.pop %v1942
        %v1944 = vmul.f32 %v1935, 1.442695
        %v1945 = vpow.pop %v1944
        %v1946 = vmul.f32 %v1936, 1.442695
        %v1947 = vpow.pop %v1946
        %v1948 = vmul.f32 %v1937, 1.442695
        %v1949 = vpow.pop %v1948
        %v1950 = vmul.f32 %v1938, 1.442695
        %v1951 = vpow.pop %v1950
        %v1952 = vmul.f32 %v1939, 1.442695
        %v1953 = vpow.pop %v1952
        %v1954 = vmul.f32 %v1940, 1.442695
        %v1955 = vpow.pop %v1954
        %v1956 = vmul.f32 %v1941, 1.442695
        %v1957 = vpow.pop %v1956
        %v1958 = vsel %vm696, %v1943, 0.0
        %1959 = vadd.xlane.f32.xlu0 %v1958
        %v1960 = vpop.xlane.xlu0 %1959
        %v1961 = vsel %vm696, %v1945, 0.0
        %1962 = vadd.xlane.f32.xlu0 %v1961
        %v1963 = vpop.xlane.xlu0 %1962
        %v1964 = vsel %vm696, %v1947, 0.0
        %1965 = vadd.xlane.f32.xlu0 %v1964
        %v1966 = vpop.xlane.xlu0 %1965
        %v1967 = vsel %vm696, %v1949, 0.0
        %1968 = vadd.xlane.f32.xlu0 %v1967
        %v1969 = vpop.xlane.xlu0 %1968
        %v1970 = vsel %vm696, %v1951, 0.0
        %1971 = vadd.xlane.f32.xlu0 %v1970
        %v1972 = vpop.xlane.xlu0 %1971
        %v1973 = vsel %vm696, %v1953, 0.0
        %1974 = vadd.xlane.f32.xlu0 %v1973
        %v1975 = vpop.xlane.xlu0 %1974
        %v1976 = vsel %vm696, %v1955, 0.0
        %1977 = vadd.xlane.f32.xlu0 %v1976
        %v1978 = vpop.xlane.xlu0 %1977
        %v1979 = vsel %vm696, %v1957, 0.0
        %1980 = vadd.xlane.f32.xlu0 %v1979
        %v1981 = vpop.xlane.xlu0 %1980
        %v1982 = vrcp.pop %v1960
        %v1983 = vrcp.pop %v1963
        %v1984 = vrcp.pop %v1966
        %v1985 = vrcp.pop %v1969
        %v1986 = vrcp.pop %v1972
        %v1987 = vrcp.pop %v1975
        %v1988 = vrcp.pop %v1978
        %v1989 = vrcp.pop %v1981
        %v1990 = vmul.f32 %v1943, %v1982
        %v1991 = vmul.f32 %v1945, %v1983
        %v1992 = vmul.f32 %v1947, %v1984
        %v1993 = vmul.f32 %v1949, %v1985
        %v1994 = vmul.f32 %v1951, %v1986
        %v1995 = vmul.f32 %v1953, %v1987
        %v1996 = vmul.f32 %v1955, %v1988
        %v1997 = vmul.f32 %v1957, %v1989
        %v1998 = vpack.c.bf16 %v1991, %v1990
        %v1999 = vpack.c.bf16 %v1993, %v1992
        %v2000 = vpack.c.bf16 %v1995, %v1994
        %v2001 = vpack.c.bf16 %v1997, %v1996
        %v2003 = vsel %vm696, %v1998, 0
        %v2006 = vsel %vm696, %v1999, 0
        %v2009 = vsel %vm696, %v2000, 0
        %v2012 = vsel %vm696, %v2001, 0
        %2014 = vmatprep.subr.bf16.mxu0 0
        %2015 = vmatpush1.bf16.msra.mxu0 0
        %2016 = vmatprep.subr.bf16.mxu0 0
        %2017 = vmatpush1.bf16.msra.mxu0 0
        %2018 = vmatprep.subr.bf16.mxu0 0
        %2019 = vmatpush1.bf16.msra.mxu0 0
        %2020 = vmatprep.subr.bf16.mxu0 0
        %2021 = vmatpush1.bf16.msra.mxu0 0
        %2022 = vmatprep.subr.bf16.mxu0 0
        %2023 = vmatpush1.bf16.msra.mxu0 %v1720
        %2024 = vmatprep.subr.bf16.mxu0 0
        %2025 = vmatpush1.bf16.msra.mxu0 %v1719
        %2026 = vmatprep.subr.bf16.mxu0 0
        %2027 = vmatpush1.bf16.msra.mxu0 %v1718
        %2028 = vmatprep.subr.bf16.mxu0 0
        %2029 = vmatpush1.bf16.msra.mxu0 %v1717
        %2030 = vmatprep.subr.bf16.mxu0 0
        %2031 = vmatpush2.bf16.msra.mxu0 0
        %2032 = vmatprep.subr.bf16.mxu0 0
        %2033 = vmatpush2.bf16.msra.mxu0 0
        %2034 = vmatprep.subr.bf16.mxu0 0
        %2035 = vmatpush2.bf16.msra.mxu0 0
        %2036 = vmatprep.subr.bf16.mxu0 0
        %2037 = vmatpush2.bf16.msra.mxu0 0
        %2038 = vmatprep.subr.bf16.mxu0 0
        %2039 = vmatpush2.bf16.msra.mxu0 0
        %2040 = vmatprep.subr.bf16.mxu0 0
        %2041 = vmatpush2.bf16.msra.mxu0 0
        %2042 = vmatprep.subr.bf16.mxu0 0
        %2043 = vmatpush2.bf16.msra.mxu0 0
        %2044 = vmatprep.subr.bf16.mxu0 0
        %2045 = vmatpush2.bf16.msra.mxu0 0
        %2046 = vmatprep.mubr.bf16.mxu0 0
        %2047 = vmatmul.mubr.bf16.gmra.mxu0 %v2003
        %v2048 = vpop.f32.mrf.mxu0
        %v2049 = vadd.f32 0.0, %v2048
        %v2050 = vpop.f32.mrf.mxu0
        %v2051 = vpop.f32.mrf.mxu0
        %v2052 = vadd.f32 0.0, %v2051
        %v2053 = vpop.f32.mrf.mxu0
        %2054 = vmatprep.mubr.bf16.mxu0 0
        %2055 = vmatmul.mubr.bf16.gmra.mxu0 %v2006
        %v2056 = vpop.f32.mrf.mxu0
        %v2057 = vadd.f32 0.0, %v2056
        %v2058 = vpop.f32.mrf.mxu0
        %v2059 = vpop.f32.mrf.mxu0
        %v2060 = vadd.f32 0.0, %v2059
        %v2061 = vpop.f32.mrf.mxu0
        %2062 = vmatprep.mubr.bf16.mxu0 0
        %2063 = vmatmul.mubr.bf16.gmra.mxu0 %v2009
        %v2064 = vpop.f32.mrf.mxu0
        %v2065 = vadd.f32 0.0, %v2064
        %v2066 = vpop.f32.mrf.mxu0
        %v2067 = vpop.f32.mrf.mxu0
        %v2068 = vadd.f32 0.0, %v2067
        %v2069 = vpop.f32.mrf.mxu0
        %2070 = vmatprep.mubr.bf16.mxu0 0
        %2071 = vmatmul.mubr.bf16.gmra.mxu0 %v2012
        %v2072 = vpop.f32.mrf.mxu0
        %v2073 = vadd.f32 0.0, %v2072
        %v2074 = vpop.f32.mrf.mxu0
        %v2075 = vpop.f32.mrf.mxu0
        %v2076 = vadd.f32 0.0, %v2075
        %v2077 = vpop.f32.mrf.mxu0
        %2078 = vdwg.mxu0
        %v2079 = vld [vmem:[%s3 + $0x10] sm:$0xf]
        %v2080 = vld [vmem:[%s3 + $0x14] sm:$0xf]
        %v2081 = vpack.c.bf16 %v2052, %v2049
        %v2082 = vpack.c.bf16 %v2060, %v2057
        %v2083 = vpack.c.bf16 %v2068, %v2065
        %v2084 = vpack.c.bf16 %v2076, %v2073
        %v2087 = vunpack.c.l.b16 %v2079
        %v2088 = vunpack.c.l.b16 %v2080
        %v2089 = vpack.c.b16 %v2088, %v2087
        %v2092 = vsel %vm736, %v2081, 0
        %v2095 = vsel %vm736, %v2082, 0
        %v2098 = vsel %vm736, %v2083, 0
        %v2101 = vsel %vm736, %v2084, 0
        %2103 = vmatprep.subr.bf16.mxu0 0
        %2104 = vmatpush1.bf16.msra.mxu0 0
        %2105 = vmatprep.subr.bf16.mxu0 0
        %2106 = vmatpush1.bf16.msra.mxu0 0
        %2107 = vmatprep.subr.bf16.mxu0 0
        %2108 = vmatpush1.bf16.msra.mxu0 0
        %2109 = vmatprep.subr.bf16.mxu0 0
        %2110 = vmatpush1.bf16.msra.mxu0 0
        %2111 = vmatprep.subr.bf16.mxu0 0
        %2112 = vmatpush1.bf16.msra.mxu0 0
        %2113 = vmatprep.subr.bf16.mxu0 0
        %2114 = vmatpush1.bf16.msra.mxu0 0
        %2115 = vmatprep.subr.bf16.mxu0 0
        %2116 = vmatpush1.bf16.msra.mxu0 0
        %2117 = vmatprep.subr.bf16.mxu0 0
        %2118 = vmatpush1.bf16.msra.mxu0 %v2089
        %2119 = vmatprep.subr.bf16.mxu0 0
        %2120 = vmatpush2.bf16.msra.mxu0 0
        %2121 = vmatprep.subr.bf16.mxu0 0
        %2122 = vmatpush2.bf16.msra.mxu0 0
        %2123 = vmatprep.subr.bf16.mxu0 0
        %2124 = vmatpush2.bf16.msra.mxu0 0
        %2125 = vmatprep.subr.bf16.mxu0 0
        %2126 = vmatpush2.bf16.msra.mxu0 0
        %2127 = vmatprep.subr.bf16.mxu0 0
        %2128 = vmatpush2.bf16.msra.mxu0 0
        %2129 = vmatprep.subr.bf16.mxu0 0
        %2130 = vmatpush2.bf16.msra.mxu0 0
        %2131 = vmatprep.subr.bf16.mxu0 0
        %2132 = vmatpush2.bf16.msra.mxu0 0
        %2133 = vmatprep.subr.bf16.mxu0 0
        %2134 = vmatpush2.bf16.msra.mxu0 0
        %2135 = vmatprep.mubr.bf16.mxu0 0
        %2136 = vmatmul.mubr.bf16.gmra.mxu0 %v2092
        %v2137 = vpop.f32.mrf.mxu0
        %v2138 = vadd.f32 0.0, %v2137
        %v2139 = vpop.f32.mrf.mxu0
        %v2140 = vpop.f32.mrf.mxu0
        %v2141 = vadd.f32 0.0, %v2140
        %v2142 = vpop.f32.mrf.mxu0
        %2143 = vmatprep.mubr.bf16.mxu0 0
        %2144 = vmatmul.mubr.bf16.gmra.mxu0 %v2095
        %v2145 = vpop.f32.mrf.mxu0
        %v2146 = vadd.f32 0.0, %v2145
        %v2147 = vpop.f32.mrf.mxu0
        %v2148 = vpop.f32.mrf.mxu0
        %v2149 = vadd.f32 0.0, %v2148
        %v2150 = vpop.f32.mrf.mxu0
        %2151 = vmatprep.mubr.bf16.mxu0 0
        %2152 = vmatmul.mubr.bf16.gmra.mxu0 %v2098
        %v2153 = vpop.f32.mrf.mxu0
        %v2154 = vadd.f32 0.0, %v2153
        %v2155 = vpop.f32.mrf.mxu0
        %v2156 = vpop.f32.mrf.mxu0
        %v2157 = vadd.f32 0.0, %v2156
        %v2158 = vpop.f32.mrf.mxu0
        %2159 = vmatprep.mubr.bf16.mxu0 0
        %2160 = vmatmul.mubr.bf16.gmra.mxu0 %v2101
        %v2161 = vpop.f32.mrf.mxu0
        %v2162 = vadd.f32 0.0, %v2161
        %v2163 = vpop.f32.mrf.mxu0
        %v2164 = vpop.f32.mrf.mxu0
        %v2165 = vadd.f32 0.0, %v2164
        %v2166 = vpop.f32.mrf.mxu0
        %2167 = vdwg.mxu0
        %v2168 = vadd.f32 %v1644, %v2138
        %v2169 = vadd.f32 %v1647, %v2141
        %v2170 = vadd.f32 %v1652, %v2146
        %v2171 = vadd.f32 %v1655, %v2149
        %v2172 = vadd.f32 %v1660, %v2154
        %v2173 = vadd.f32 %v1663, %v2157
        %v2174 = vadd.f32 %v1668, %v2162
        %v2175 = vadd.f32 %v1671, %v2165
        %2178 = vrot.lane.b32.xlu0 %v614, 64
        %v2179 = vpop.permute.xlu0 %2178
        %2180 = vrot.lane.b32.xlu0 %v617, 64
        %v2181 = vpop.permute.xlu0 %2180
        %v2184 = vsel %vm696, %v582, %v2179
        %v2185 = vsel %vm696, %v585, %v2181
        %v2186 = vpack.c.bf16 %v2185, %v2184
        %2187 = vxpose.xlu0.b32.start [1/16] %v646, 128
        %2188 = vxpose.xlu0.b32.cont [2/16] %v649, 128
        %2189 = vxpose.xlu0.b32.cont [3/16] 0.0, 128
        %2190 = vxpose.xlu0.b32.cont [4/16] 0.0, 128
        %2191 = vxpose.xlu0.b32.cont [5/16] 0.0, 128
        %2192 = vxpose.xlu0.b32.cont [6/16] 0.0, 128
        %2193 = vxpose.xlu0.b32.cont [7/16] 0.0, 128
        %2194 = vxpose.xlu0.b32.cont [8/16] 0.0, 128
        %2195 = vxpose.xlu0.b32.cont [9/16] 0.0, 128
        %2196 = vxpose.xlu0.b32.cont [10/16] 0.0, 128
        %2197 = vxpose.xlu0.b32.cont [11/16] 0.0, 128
        %2198 = vxpose.xlu0.b32.cont [12/16] 0.0, 128
        %2199 = vxpose.xlu0.b32.cont [13/16] 0.0, 128
        %2200 = vxpose.xlu0.b32.cont [14/16] 0.0, 128
        %2201 = vxpose.xlu0.b32.cont [15/16] 0.0, 128
        %2202 = vxpose.xlu0.b32.end [16/16] 0.0, 128
        %v2203 = vpop.trf.xlu0
        %v2204 = vpop.trf.xlu0
        %v2205 = vpop.trf.xlu0
        %v2206 = vpop.trf.xlu0
        %v2207 = vpop.trf.xlu0
        %v2208 = vpop.trf.xlu0
        %v2209 = vpop.trf.xlu0
        %v2210 = vpop.trf.xlu0
        %v2211 = vpop.trf.xlu0
        %v2212 = vpop.trf.xlu0
        %v2213 = vpop.trf.xlu0
        %v2214 = vpop.trf.xlu0
        %v2215 = vpop.trf.xlu0
        %v2216 = vpop.trf.xlu0
        %v2217 = vpop.trf.xlu0
        %v2218 = vpop.trf.xlu0
        %v2219 = vpack.c.bf16 %v2204, %v2203
        %v2220 = vpack.c.bf16 %v2206, %v2205
        %v2221 = vpack.c.bf16 %v2208, %v2207
        %v2222 = vpack.c.bf16 %v2210, %v2209
        %2223 = vrot.lane.b32.xlu0 %v684, 80
        %v2224 = vpop.permute.xlu0 %2223
        %2225 = vrot.lane.b32.xlu0 %v685, 80
        %v2226 = vpop.permute.xlu0 %2225
        %2227 = vrot.lane.b32.xlu0 %v686, 80
        %v2228 = vpop.permute.xlu0 %2227
        %2229 = vrot.lane.b32.xlu0 %v687, 80
        %v2230 = vpop.permute.xlu0 %2229
        %v2232 = vsel %vm736, %v2224, 0
        %v2235 = vsel %vm736, %v2226, 0
        %v2238 = vsel %vm736, %v2228, 0
        %v2241 = vsel %vm736, %v2230, 0
        %2243 = vmatprep.subr.bf16.mxu0 0
        %2244 = vmatpush1.bf16.msra.mxu0 0
        %2245 = vmatprep.subr.bf16.mxu0 0
        %2246 = vmatpush1.bf16.msra.mxu0 0
        %2247 = vmatprep.subr.bf16.mxu0 0
        %2248 = vmatpush1.bf16.msra.mxu0 0
        %2249 = vmatprep.subr.bf16.mxu0 0
        %2250 = vmatpush1.bf16.msra.mxu0 0
        %2251 = vmatprep.subr.bf16.mxu0 0
        %2252 = vmatpush1.bf16.msra.mxu0 0
        %2253 = vmatprep.subr.bf16.mxu0 0
        %2254 = vmatpush1.bf16.msra.mxu0 0
        %2255 = vmatprep.subr.bf16.mxu0 0
        %2256 = vmatpush1.bf16.msra.mxu0 0
        %2257 = vmatprep.subr.bf16.mxu0 0
        %2258 = vmatpush1.bf16.msra.mxu0 %v2186
        %2259 = vmatprep.subr.bf16.mxu0 0
        %2260 = vmatpush2.bf16.msra.mxu0 0
        %2261 = vmatprep.subr.bf16.mxu0 0
        %2262 = vmatpush2.bf16.msra.mxu0 0
        %2263 = vmatprep.subr.bf16.mxu0 0
        %2264 = vmatpush2.bf16.msra.mxu0 0
        %2265 = vmatprep.subr.bf16.mxu0 0
        %2266 = vmatpush2.bf16.msra.mxu0 0
        %2267 = vmatprep.subr.bf16.mxu0 0
        %2268 = vmatpush2.bf16.msra.mxu0 0
        %2269 = vmatprep.subr.bf16.mxu0 0
        %2270 = vmatpush2.bf16.msra.mxu0 0
        %2271 = vmatprep.subr.bf16.mxu0 0
        %2272 = vmatpush2.bf16.msra.mxu0 0
        %2273 = vmatprep.subr.bf16.mxu0 0
        %2274 = vmatpush2.bf16.msra.mxu0 0
        %2275 = vmatprep.mubr.bf16.mxu0 0
        %2276 = vmatmul.mubr.bf16.gmra.mxu0 %v2232
        %v2277 = vpop.f32.mrf.mxu0
        %v2278 = vadd.f32 0.0, %v2277
        %v2279 = vpop.f32.mrf.mxu0
        %v2280 = vpop.f32.mrf.mxu0
        %v2281 = vadd.f32 0.0, %v2280
        %v2282 = vpop.f32.mrf.mxu0
        %2283 = vmatprep.mubr.bf16.mxu0 0
        %2284 = vmatmul.mubr.bf16.gmra.mxu0 %v2235
        %v2285 = vpop.f32.mrf.mxu0
        %v2286 = vadd.f32 0.0, %v2285
        %v2287 = vpop.f32.mrf.mxu0
        %v2288 = vpop.f32.mrf.mxu0
        %v2289 = vadd.f32 0.0, %v2288
        %v2290 = vpop.f32.mrf.mxu0
        %2291 = vmatprep.mubr.bf16.mxu0 0
        %2292 = vmatmul.mubr.bf16.gmra.mxu0 %v2238
        %v2293 = vpop.f32.mrf.mxu0
        %v2294 = vadd.f32 0.0, %v2293
        %v2295 = vpop.f32.mrf.mxu0
        %v2296 = vpop.f32.mrf.mxu0
        %v2297 = vadd.f32 0.0, %v2296
        %v2298 = vpop.f32.mrf.mxu0
        %2299 = vmatprep.mubr.bf16.mxu0 0
        %2300 = vmatmul.mubr.bf16.gmra.mxu0 %v2241
        %v2301 = vpop.f32.mrf.mxu0
        %v2302 = vadd.f32 0.0, %v2301
        %v2303 = vpop.f32.mrf.mxu0
        %v2304 = vpop.f32.mrf.mxu0
        %v2305 = vadd.f32 0.0, %v2304
        %v2306 = vpop.f32.mrf.mxu0
        %2307 = vdwg.mxu0
        %v2308 = vmul.f32 %v2278, %v2278
        %v2309 = vmul.f32 %v2281, %v2281
        %v2310 = vmul.f32 %v2286, %v2286
        %v2311 = vmul.f32 %v2289, %v2289
        %v2312 = vmul.f32 %v2294, %v2294
        %v2313 = vmul.f32 %v2297, %v2297
        %v2314 = vmul.f32 %v2302, %v2302
        %v2315 = vmul.f32 %v2305, %v2305
        %2324 = vrot.lane.b32.xlu0 %v2308, 64
        %v2325 = vpop.permute.xlu0 %2324
        %2326 = vrot.lane.b32.xlu0 %v2309, 64
        %v2327 = vpop.permute.xlu0 %2326
        %2328 = vrot.lane.b32.xlu0 %v2310, 64
        %v2329 = vpop.permute.xlu0 %2328
        %2330 = vrot.lane.b32.xlu0 %v2311, 64
        %v2331 = vpop.permute.xlu0 %2330
        %2332 = vrot.lane.b32.xlu0 %v2312, 64
        %v2333 = vpop.permute.xlu0 %2332
        %2334 = vrot.lane.b32.xlu0 %v2313, 64
        %v2335 = vpop.permute.xlu0 %2334
        %2336 = vrot.lane.b32.xlu0 %v2314, 64
        %v2337 = vpop.permute.xlu0 %2336
        %2338 = vrot.lane.b32.xlu0 %v2315, 64
        %v2339 = vpop.permute.xlu0 %2338
        %v2348 = vadd.f32 %v2308, %v2325
        %v2349 = vadd.f32 %v2309, %v2327
        %v2350 = vadd.f32 %v2310, %v2329
        %v2351 = vadd.f32 %v2311, %v2331
        %v2352 = vadd.f32 %v2312, %v2333
        %v2353 = vadd.f32 %v2313, %v2335
        %v2354 = vadd.f32 %v2314, %v2337
        %v2355 = vadd.f32 %v2315, %v2339
        %v2356 = vrsqrt.pop %v2348
        %v2357 = vmul.f32 %v2348, %v2356
        %vm2358 = vcmp.eq.f32.partialorder %v2348, inf
        %v2359 = vsel %vm2358, %v2348, %v2357
        %vm2360 = vcmp.eq.f32.partialorder %v2348, 0.0
        %v2361 = vand.u32 %v2348, 2147483648
        %v2362 = vsel %vm2360, %v2361, %v2359
        %v2363 = vrsqrt.pop %v2349
        %v2364 = vmul.f32 %v2349, %v2363
        %vm2365 = vcmp.eq.f32.partialorder %v2349, inf
        %v2366 = vsel %vm2365, %v2349, %v2364
        %vm2367 = vcmp.eq.f32.partialorder %v2349, 0.0
        %v2368 = vand.u32 %v2349, 2147483648
        %v2369 = vsel %vm2367, %v2368, %v2366
        %v2370 = vrsqrt.pop %v2350
        %v2371 = vmul.f32 %v2350, %v2370
        %vm2372 = vcmp.eq.f32.partialorder %v2350, inf
        %v2373 = vsel %vm2372, %v2350, %v2371
        %vm2374 = vcmp.eq.f32.partialorder %v2350, 0.0
        %v2375 = vand.u32 %v2350, 2147483648
        %v2376 = vsel %vm2374, %v2375, %v2373
        %v2377 = vrsqrt.pop %v2351
        %v2378 = vmul.f32 %v2351, %v2377
        %vm2379 = vcmp.eq.f32.partialorder %v2351, inf
        %v2380 = vsel %vm2379, %v2351, %v2378
        %vm2381 = vcmp.eq.f32.partialorder %v2351, 0.0
        %v2382 = vand.u32 %v2351, 2147483648
        %v2383 = vsel %vm2381, %v2382, %v2380
        %v2384 = vrsqrt.pop %v2352
        %v2385 = vmul.f32 %v2352, %v2384
        %vm2386 = vcmp.eq.f32.partialorder %v2352, inf
        %v2387 = vsel %vm2386, %v2352, %v2385
        %vm2388 = vcmp.eq.f32.partialorder %v2352, 0.0
        %v2389 = vand.u32 %v2352, 2147483648
        %v2390 = vsel %vm2388, %v2389, %v2387
        %v2391 = vrsqrt.pop %v2353
        %v2392 = vmul.f32 %v2353, %v2391
        %vm2393 = vcmp.eq.f32.partialorder %v2353, inf
        %v2394 = vsel %vm2393, %v2353, %v2392
        %vm2395 = vcmp.eq.f32.partialorder %v2353, 0.0
        %v2396 = vand.u32 %v2353, 2147483648
        %v2397 = vsel %vm2395, %v2396, %v2394
        %v2398 = vrsqrt.pop %v2354
        %v2399 = vmul.f32 %v2354, %v2398
        %vm2400 = vcmp.eq.f32.partialorder %v2354, inf
        %v2401 = vsel %vm2400, %v2354, %v2399
        %vm2402 = vcmp.eq.f32.partialorder %v2354, 0.0
        %v2403 = vand.u32 %v2354, 2147483648
        %v2404 = vsel %vm2402, %v2403, %v2401
        %v2405 = vrsqrt.pop %v2355
        %v2406 = vmul.f32 %v2355, %v2405
        %vm2407 = vcmp.eq.f32.partialorder %v2355, inf
        %v2408 = vsel %vm2407, %v2355, %v2406
        %vm2409 = vcmp.eq.f32.partialorder %v2355, 0.0
        %v2410 = vand.u32 %v2355, 2147483648
        %v2411 = vsel %vm2409, %v2410, %v2408
        %v2412 = vsel %vm696, %v2362, -inf
        %2413 = vmax.xlane.f32.xlu0 %v2412
        %v2414 = vpop.xlane.xlu0 %2413
        %v2415 = vsel %vm696, %v2369, -inf
        %2416 = vmax.xlane.f32.xlu0 %v2415
        %v2417 = vpop.xlane.xlu0 %2416
        %v2418 = vsel %vm696, %v2376, -inf
        %2419 = vmax.xlane.f32.xlu0 %v2418
        %v2420 = vpop.xlane.xlu0 %2419
        %v2421 = vsel %vm696, %v2383, -inf
        %2422 = vmax.xlane.f32.xlu0 %v2421
        %v2423 = vpop.xlane.xlu0 %2422
        %v2424 = vsel %vm696, %v2390, -inf
        %2425 = vmax.xlane.f32.xlu0 %v2424
        %v2426 = vpop.xlane.xlu0 %2425
        %v2427 = vsel %vm696, %v2397, -inf
        %2428 = vmax.xlane.f32.xlu0 %v2427
        %v2429 = vpop.xlane.xlu0 %2428
        %v2430 = vsel %vm696, %v2404, -inf
        %2431 = vmax.xlane.f32.xlu0 %v2430
        %v2432 = vpop.xlane.xlu0 %2431
        %v2433 = vsel %vm696, %v2411, -inf
        %2434 = vmax.xlane.f32.xlu0 %v2433
        %v2435 = vpop.xlane.xlu0 %2434
        %v2436 = vsub.f32 %v2362, %v2414
        %v2437 = vsub.f32 %v2369, %v2417
        %v2438 = vsub.f32 %v2376, %v2420
        %v2439 = vsub.f32 %v2383, %v2423
        %v2440 = vsub.f32 %v2390, %v2426
        %v2441 = vsub.f32 %v2397, %v2429
        %v2442 = vsub.f32 %v2404, %v2432
        %v2443 = vsub.f32 %v2411, %v2435
        %v2444 = vmul.f32 %v2436, 1.442695
        %v2445 = vpow.pop %v2444
        %v2446 = vmul.f32 %v2437, 1.442695
        %v2447 = vpow.pop %v2446
        %v2448 = vmul.f32 %v2438, 1.442695
        %v2449 = vpow.pop %v2448
        %v2450 = vmul.f32 %v2439, 1.442695
        %v2451 = vpow.pop %v2450
        %v2452 = vmul.f32 %v2440, 1.442695
        %v2453 = vpow.pop %v2452
        %v2454 = vmul.f32 %v2441, 1.442695
        %v2455 = vpow.pop %v2454
        %v2456 = vmul.f32 %v2442, 1.442695
        %v2457 = vpow.pop %v2456
        %v2458 = vmul.f32 %v2443, 1.442695
        %v2459 = vpow.pop %v2458
        %v2460 = vsel %vm696, %v2445, 0.0
        %2461 = vadd.xlane.f32.xlu0 %v2460
        %v2462 = vpop.xlane.xlu0 %2461
        %v2463 = vsel %vm696, %v2447, 0.0
        %2464 = vadd.xlane.f32.xlu0 %v2463
        %v2465 = vpop.xlane.xlu0 %2464
        %v2466 = vsel %vm696, %v2449, 0.0
        %2467 = vadd.xlane.f32.xlu0 %v2466
        %v2468 = vpop.xlane.xlu0 %2467
        %v2469 = vsel %vm696, %v2451, 0.0
        %2470 = vadd.xlane.f32.xlu0 %v2469
        %v2471 = vpop.xlane.xlu0 %2470
        %v2472 = vsel %vm696, %v2453, 0.0
        %2473 = vadd.xlane.f32.xlu0 %v2472
        %v2474 = vpop.xlane.xlu0 %2473
        %v2475 = vsel %vm696, %v2455, 0.0
        %2476 = vadd.xlane.f32.xlu0 %v2475
        %v2477 = vpop.xlane.xlu0 %2476
        %v2478 = vsel %vm696, %v2457, 0.0
        %2479 = vadd.xlane.f32.xlu0 %v2478
        %v2480 = vpop.xlane.xlu0 %2479
        %v2481 = vsel %vm696, %v2459, 0.0
        %2482 = vadd.xlane.f32.xlu0 %v2481
        %v2483 = vpop.xlane.xlu0 %2482
        %v2484 = vrcp.pop %v2462
        %v2485 = vrcp.pop %v2465
        %v2486 = vrcp.pop %v2468
        %v2487 = vrcp.pop %v2471
        %v2488 = vrcp.pop %v2474
        %v2489 = vrcp.pop %v2477
        %v2490 = vrcp.pop %v2480
        %v2491 = vrcp.pop %v2483
        %v2492 = vmul.f32 %v2445, %v2484
        %v2493 = vmul.f32 %v2447, %v2485
        %v2494 = vmul.f32 %v2449, %v2486
        %v2495 = vmul.f32 %v2451, %v2487
        %v2496 = vmul.f32 %v2453, %v2488
        %v2497 = vmul.f32 %v2455, %v2489
        %v2498 = vmul.f32 %v2457, %v2490
        %v2499 = vmul.f32 %v2459, %v2491
        %v2500 = vpack.c.bf16 %v2493, %v2492
        %v2501 = vpack.c.bf16 %v2495, %v2494
        %v2502 = vpack.c.bf16 %v2497, %v2496
        %v2503 = vpack.c.bf16 %v2499, %v2498
        %v2505 = vsel %vm696, %v2500, 0
        %v2508 = vsel %vm696, %v2501, 0
        %v2511 = vsel %vm696, %v2502, 0
        %v2514 = vsel %vm696, %v2503, 0
        %2516 = vmatprep.subr.bf16.mxu0 0
        %2517 = vmatpush1.bf16.msra.mxu0 0
        %2518 = vmatprep.subr.bf16.mxu0 0
        %2519 = vmatpush1.bf16.msra.mxu0 0
        %2520 = vmatprep.subr.bf16.mxu0 0
        %2521 = vmatpush1.bf16.msra.mxu0 0
        %2522 = vmatprep.subr.bf16.mxu0 0
        %2523 = vmatpush1.bf16.msra.mxu0 0
        %2524 = vmatprep.subr.bf16.mxu0 0
        %2525 = vmatpush1.bf16.msra.mxu0 %v2222
        %2526 = vmatprep.subr.bf16.mxu0 0
        %2527 = vmatpush1.bf16.msra.mxu0 %v2221
        %2528 = vmatprep.subr.bf16.mxu0 0
        %2529 = vmatpush1.bf16.msra.mxu0 %v2220
        %2530 = vmatprep.subr.bf16.mxu0 0
        %2531 = vmatpush1.bf16.msra.mxu0 %v2219
        %2532 = vmatprep.subr.bf16.mxu0 0
        %2533 = vmatpush2.bf16.msra.mxu0 0
        %2534 = vmatprep.subr.bf16.mxu0 0
        %2535 = vmatpush2.bf16.msra.mxu0 0
        %2536 = vmatprep.subr.bf16.mxu0 0
        %2537 = vmatpush2.bf16.msra.mxu0 0
        %2538 = vmatprep.subr.bf16.mxu0 0
        %2539 = vmatpush2.bf16.msra.mxu0 0
        %2540 = vmatprep.subr.bf16.mxu0 0
        %2541 = vmatpush2.bf16.msra.mxu0 0
        %2542 = vmatprep.subr.bf16.mxu0 0
        %2543 = vmatpush2.bf16.msra.mxu0 0
        %2544 = vmatprep.subr.bf16.mxu0 0
        %2545 = vmatpush2.bf16.msra.mxu0 0
        %2546 = vmatprep.subr.bf16.mxu0 0
        %2547 = vmatpush2.bf16.msra.mxu0 0
        %2548 = vmatprep.mubr.bf16.mxu0 0
        %2549 = vmatmul.mubr.bf16.gmra.mxu0 %v2505
        %v2550 = vpop.f32.mrf.mxu0
        %v2551 = vadd.f32 0.0, %v2550
        %v2552 = vpop.f32.mrf.mxu0
        %v2553 = vpop.f32.mrf.mxu0
        %v2554 = vadd.f32 0.0, %v2553
        %v2555 = vpop.f32.mrf.mxu0
        %2556 = vmatprep.mubr.bf16.mxu0 0
        %2557 = vmatmul.mubr.bf16.gmra.mxu0 %v2508
        %v2558 = vpop.f32.mrf.mxu0
        %v2559 = vadd.f32 0.0, %v2558
        %v2560 = vpop.f32.mrf.mxu0
        %v2561 = vpop.f32.mrf.mxu0
        %v2562 = vadd.f32 0.0, %v2561
        %v2563 = vpop.f32.mrf.mxu0
        %2564 = vmatprep.mubr.bf16.mxu0 0
        %2565 = vmatmul.mubr.bf16.gmra.mxu0 %v2511
        %v2566 = vpop.f32.mrf.mxu0
        %v2567 = vadd.f32 0.0, %v2566
        %v2568 = vpop.f32.mrf.mxu0
        %v2569 = vpop.f32.mrf.mxu0
        %v2570 = vadd.f32 0.0, %v2569
        %v2571 = vpop.f32.mrf.mxu0
        %2572 = vmatprep.mubr.bf16.mxu0 0
        %2573 = vmatmul.mubr.bf16.gmra.mxu0 %v2514
        %v2574 = vpop.f32.mrf.mxu0
        %v2575 = vadd.f32 0.0, %v2574
        %v2576 = vpop.f32.mrf.mxu0
        %v2577 = vpop.f32.mrf.mxu0
        %v2578 = vadd.f32 0.0, %v2577
        %v2579 = vpop.f32.mrf.mxu0
        %2580 = vdwg.mxu0
        %v2581 = vld [vmem:[%s3 + $0x18] sm:$0xf]
        %v2582 = vld [vmem:[%s3 + $0x1c] sm:$0xf]
        %v2583 = vpack.c.bf16 %v2554, %v2551
        %v2584 = vpack.c.bf16 %v2562, %v2559
        %v2585 = vpack.c.bf16 %v2570, %v2567
        %v2586 = vpack.c.bf16 %v2578, %v2575
        %v2589 = vunpack.c.l.b16 %v2581
        %v2590 = vunpack.c.l.b16 %v2582
        %v2591 = vpack.c.b16 %v2590, %v2589
        %v2594 = vsel %vm736, %v2583, 0
        %v2597 = vsel %vm736, %v2584, 0
        %v2600 = vsel %vm736, %v2585, 0
        %v2603 = vsel %vm736, %v2586, 0
        %2605 = vmatprep.subr.bf16.mxu0 0
        %2606 = vmatpush1.bf16.msra.mxu0 0
        %2607 = vmatprep.subr.bf16.mxu0 0
        %2608 = vmatpush1.bf16.msra.mxu0 0
        %2609 = vmatprep.subr.bf16.mxu0 0
        %2610 = vmatpush1.bf16.msra.mxu0 0
        %2611 = vmatprep.subr.bf16.mxu0 0
        %2612 = vmatpush1.bf16.msra.mxu0 0
        %2613 = vmatprep.subr.bf16.mxu0 0
        %2614 = vmatpush1.bf16.msra.mxu0 0
        %2615 = vmatprep.subr.bf16.mxu0 0
        %2616 = vmatpush1.bf16.msra.mxu0 0
        %2617 = vmatprep.subr.bf16.mxu0 0
        %2618 = vmatpush1.bf16.msra.mxu0 0
        %2619 = vmatprep.subr.bf16.mxu0 0
        %2620 = vmatpush1.bf16.msra.mxu0 %v2591
        %2621 = vmatprep.subr.bf16.mxu0 0
        %2622 = vmatpush2.bf16.msra.mxu0 0
        %2623 = vmatprep.subr.bf16.mxu0 0
        %2624 = vmatpush2.bf16.msra.mxu0 0
        %2625 = vmatprep.subr.bf16.mxu0 0
        %2626 = vmatpush2.bf16.msra.mxu0 0
        %2627 = vmatprep.subr.bf16.mxu0 0
        %2628 = vmatpush2.bf16.msra.mxu0 0
        %2629 = vmatprep.subr.bf16.mxu0 0
        %2630 = vmatpush2.bf16.msra.mxu0 0
        %2631 = vmatprep.subr.bf16.mxu0 0
        %2632 = vmatpush2.bf16.msra.mxu0 0
        %2633 = vmatprep.subr.bf16.mxu0 0
        %2634 = vmatpush2.bf16.msra.mxu0 0
        %2635 = vmatprep.subr.bf16.mxu0 0
        %2636 = vmatpush2.bf16.msra.mxu0 0
        %2637 = vmatprep.mubr.bf16.mxu0 0
        %2638 = vmatmul.mubr.bf16.gmra.mxu0 %v2594
        %v2639 = vpop.f32.mrf.mxu0
        %v2640 = vadd.f32 0.0, %v2639
        %v2641 = vpop.f32.mrf.mxu0
        %v2642 = vpop.f32.mrf.mxu0
        %v2643 = vadd.f32 0.0, %v2642
        %v2644 = vpop.f32.mrf.mxu0
        %2645 = vmatprep.mubr.bf16.mxu0 0
        %2646 = vmatmul.mubr.bf16.gmra.mxu0 %v2597
        %v2647 = vpop.f32.mrf.mxu0
        %v2648 = vadd.f32 0.0, %v2647
        %v2649 = vpop.f32.mrf.mxu0
        %v2650 = vpop.f32.mrf.mxu0
        %v2651 = vadd.f32 0.0, %v2650
        %v2652 = vpop.f32.mrf.mxu0
        %2653 = vmatprep.mubr.bf16.mxu0 0
        %2654 = vmatmul.mubr.bf16.gmra.mxu0 %v2600
        %v2655 = vpop.f32.mrf.mxu0
        %v2656 = vadd.f32 0.0, %v2655
        %v2657 = vpop.f32.mrf.mxu0
        %v2658 = vpop.f32.mrf.mxu0
        %v2659 = vadd.f32 0.0, %v2658
        %v2660 = vpop.f32.mrf.mxu0
        %2661 = vmatprep.mubr.bf16.mxu0 0
        %2662 = vmatmul.mubr.bf16.gmra.mxu0 %v2603
        %v2663 = vpop.f32.mrf.mxu0
        %v2664 = vadd.f32 0.0, %v2663
        %v2665 = vpop.f32.mrf.mxu0
        %v2666 = vpop.f32.mrf.mxu0
        %v2667 = vadd.f32 0.0, %v2666
        %v2668 = vpop.f32.mrf.mxu0
        %2669 = vdwg.mxu0
        %v2670 = vadd.f32 %v2168, %v2640
        %v2671 = vadd.f32 %v2169, %v2643
        %v2672 = vadd.f32 %v2170, %v2648
        %v2673 = vadd.f32 %v2171, %v2651
        %v2674 = vadd.f32 %v2172, %v2656
        %v2675 = vadd.f32 %v2173, %v2659
        %v2676 = vadd.f32 %v2174, %v2664
        %v2677 = vadd.f32 %v2175, %v2667
        %2678 = vxpose.xlu0.b32.start [1/16] %v2670, 128
        %2679 = vxpose.xlu0.b32.cont [2/16] %v2671, 128
        %2680 = vxpose.xlu0.b32.cont [3/16] %v2672, 128
        %2681 = vxpose.xlu0.b32.cont [4/16] %v2673, 128
        %2682 = vxpose.xlu0.b32.cont [5/16] %v2674, 128
        %2683 = vxpose.xlu0.b32.cont [6/16] %v2675, 128
        %2684 = vxpose.xlu0.b32.cont [7/16] %v2676, 128
        %2685 = vxpose.xlu0.b32.cont [8/16] %v2677, 128
        %2686 = vxpose.xlu0.b32.cont [9/16] 0.0, 128
        %2687 = vxpose.xlu0.b32.cont [10/16] 0.0, 128
        %2688 = vxpose.xlu0.b32.cont [11/16] 0.0, 128
        %2689 = vxpose.xlu0.b32.cont [12/16] 0.0, 128
        %2690 = vxpose.xlu0.b32.cont [13/16] 0.0, 128
        %2691 = vxpose.xlu0.b32.cont [14/16] 0.0, 128
        %2692 = vxpose.xlu0.b32.cont [15/16] 0.0, 128
        %2693 = vxpose.xlu0.b32.end [16/16] 0.0, 128
        %v2694 = vpop.trf.xlu0
        %v2695 = vpop.trf.xlu0
        %v2696 = vpop.trf.xlu0
        %v2697 = vpop.trf.xlu0
        %v2698 = vpop.trf.xlu0
        %v2699 = vpop.trf.xlu0
        %v2700 = vpop.trf.xlu0
        %v2701 = vpop.trf.xlu0
        %v2702 = vpop.trf.xlu0
        %v2703 = vpop.trf.xlu0
        %v2704 = vpop.trf.xlu0
        %v2705 = vpop.trf.xlu0
        %v2706 = vpop.trf.xlu0
        %v2707 = vpop.trf.xlu0
        %v2708 = vpop.trf.xlu0
        %v2709 = vpop.trf.xlu0
        %v2710 = vld [vmem:[%s2 + $0x80] sm:$0xf]
        %v2711 = vld [vmem:[%s2 + $0x84] sm:$0xf]
        %v2712 = vld [vmem:[%s2 + $0x88] sm:$0xf]
        %v2713 = vld [vmem:[%s2 + $0x8c] sm:$0xf]
        %v2714 = vld [vmem:[%s2 + $0x90] sm:$0xf]
        %v2715 = vld [vmem:[%s2 + $0x94] sm:$0xf]
        %v2716 = vld [vmem:[%s2 + $0x98] sm:$0xf]
        %v2717 = vld [vmem:[%s2 + $0x9c] sm:$0xf]
        %v2718 = vld [vmem:[%s2 + $0xa0] sm:$0xf]
        %v2719 = vld [vmem:[%s2 + $0xa4] sm:$0xf]
        %v2720 = vld [vmem:[%s2 + $0xa8] sm:$0xf]
        %v2721 = vld [vmem:[%s2 + $0xac] sm:$0xf]
        %v2722 = vld [vmem:[%s2 + $0xb0] sm:$0xf]
        %v2723 = vld [vmem:[%s2 + $0xb4] sm:$0xf]
        %v2724 = vld [vmem:[%s2 + $0xb8] sm:$0xf]
        %v2725 = vld [vmem:[%s2 + $0xbc] sm:$0xf]
        %v2726 = vld [vmem:[%s2 + $0xc0] sm:$0xf]
        %v2727 = vld [vmem:[%s2 + $0xc4] sm:$0xf]
        %v2728 = vld [vmem:[%s2 + $0xc8] sm:$0xf]
        %v2729 = vld [vmem:[%s2 + $0xcc] sm:$0xf]
        %v2730 = vld [vmem:[%s2 + $0xd0] sm:$0xf]
        %v2731 = vld [vmem:[%s2 + $0xd4] sm:$0xf]
        %v2732 = vld [vmem:[%s2 + $0xd8] sm:$0xf]
        %v2733 = vld [vmem:[%s2 + $0xdc] sm:$0xf]
        %v2734 = vld [vmem:[%s2 + $0xe0] sm:$0xf]
        %v2735 = vld [vmem:[%s2 + $0xe4] sm:$0xf]
        %v2736 = vld [vmem:[%s2 + $0xe8] sm:$0xf]
        %v2737 = vld [vmem:[%s2 + $0xec] sm:$0xf]
        %v2738 = vld [vmem:[%s2 + $0xf0] sm:$0xf]
        %v2739 = vld [vmem:[%s2 + $0xf4] sm:$0xf]
        %v2740 = vld [vmem:[%s2 + $0xf8] sm:$0xf]
        %v2741 = vld [vmem:[%s2 + $0xfc] sm:$0xf]
        %v2742 = vpack.c.bf16 %v2695, %v2694
        %v2743 = vpack.c.bf16 %v2697, %v2696
        %v2776 = vunpack.c.l.b16 %v2710
        %v2777 = vunpack.c.l.b16 %v2711
        %v2778 = vunpack.c.l.b16 %v2712
        %v2779 = vunpack.c.l.b16 %v2713
        %v2780 = vunpack.c.l.b16 %v2714
        %v2781 = vunpack.c.l.b16 %v2715
        %v2782 = vunpack.c.l.b16 %v2716
        %v2783 = vunpack.c.l.b16 %v2717
        %v2784 = vunpack.c.l.b16 %v2718
        %v2785 = vunpack.c.l.b16 %v2719
        %v2786 = vunpack.c.l.b16 %v2720
        %v2787 = vunpack.c.l.b16 %v2721
        %v2788 = vunpack.c.l.b16 %v2722
        %v2789 = vunpack.c.l.b16 %v2723
        %v2790 = vunpack.c.l.b16 %v2724
        %v2791 = vunpack.c.l.b16 %v2725
        %v2792 = vunpack.c.l.b16 %v2726
        %v2793 = vunpack.c.l.b16 %v2727
        %v2794 = vunpack.c.l.b16 %v2728
        %v2795 = vunpack.c.l.b16 %v2729
        %v2796 = vunpack.c.l.b16 %v2730
        %v2797 = vunpack.c.l.b16 %v2731
        %v2798 = vunpack.c.l.b16 %v2732
        %v2799 = vunpack.c.l.b16 %v2733
        %v2800 = vunpack.c.l.b16 %v2734
        %v2801 = vunpack.c.l.b16 %v2735
        %v2802 = vunpack.c.l.b16 %v2736
        %v2803 = vunpack.c.l.b16 %v2737
        %v2804 = vunpack.c.l.b16 %v2738
        %v2805 = vunpack.c.l.b16 %v2739
        %v2806 = vunpack.c.l.b16 %v2740
        %v2807 = vunpack.c.l.b16 %v2741
        %v2808 = vpack.c.b16 %v2777, %v2776
        %v2809 = vpack.c.b16 %v2779, %v2778
        %v2810 = vpack.c.b16 %v2781, %v2780
        %v2811 = vpack.c.b16 %v2783, %v2782
        %v2812 = vpack.c.b16 %v2785, %v2784
        %v2813 = vpack.c.b16 %v2787, %v2786
        %v2814 = vpack.c.b16 %v2789, %v2788
        %v2815 = vpack.c.b16 %v2791, %v2790
        %v2816 = vpack.c.b16 %v2793, %v2792
        %v2817 = vpack.c.b16 %v2795, %v2794
        %v2818 = vpack.c.b16 %v2797, %v2796
        %v2819 = vpack.c.b16 %v2799, %v2798
        %v2820 = vpack.c.b16 %v2801, %v2800
        %v2821 = vpack.c.b16 %v2803, %v2802
        %v2822 = vpack.c.b16 %v2805, %v2804
        %v2823 = vpack.c.b16 %v2807, %v2806
        %v2825 = vsel %vm442, %v2808, 0
        %v2828 = vsel %vm442, %v2809, 0
        %v2831 = vsel %vm442, %v2810, 0
        %v2834 = vsel %vm442, %v2811, 0
        %v2837 = vsel %vm442, %v2812, 0
        %v2840 = vsel %vm442, %v2813, 0
        %v2843 = vsel %vm442, %v2814, 0
        %v2846 = vsel %vm442, %v2815, 0
        %v2849 = vsel %vm442, %v2816, 0
        %v2852 = vsel %vm442, %v2817, 0
        %v2855 = vsel %vm442, %v2818, 0
        %v2858 = vsel %vm442, %v2819, 0
        %v2861 = vsel %vm442, %v2820, 0
        %v2864 = vsel %vm442, %v2821, 0
        %v2867 = vsel %vm442, %v2822, 0
        %v2870 = vsel %vm442, %v2823, 0
        %2872 = vmatprep.subr.bf16.mxu0 0
        %2873 = vmatpush1.bf16.msra.mxu0 0
        %2874 = vmatprep.subr.bf16.mxu0 0
        %2875 = vmatpush1.bf16.msra.mxu0 0
        %2876 = vmatprep.subr.bf16.mxu0 0
        %2877 = vmatpush1.bf16.msra.mxu0 0
        %2878 = vmatprep.subr.bf16.mxu0 0
        %2879 = vmatpush1.bf16.msra.mxu0 0
        %2880 = vmatprep.subr.bf16.mxu0 0
        %2881 = vmatpush1.bf16.msra.mxu0 0
        %2882 = vmatprep.subr.bf16.mxu0 0
        %2883 = vmatpush1.bf16.msra.mxu0 0
        %2884 = vmatprep.subr.bf16.mxu0 0
        %2885 = vmatpush1.bf16.msra.mxu0 %v2743
        %2886 = vmatprep.subr.bf16.mxu0 0
        %2887 = vmatpush1.bf16.msra.mxu0 %v2742
        %2888 = vmatprep.subr.bf16.mxu0 0
        %2889 = vmatpush2.bf16.msra.mxu0 0
        %2890 = vmatprep.subr.bf16.mxu0 0
        %2891 = vmatpush2.bf16.msra.mxu0 0
        %2892 = vmatprep.subr.bf16.mxu0 0
        %2893 = vmatpush2.bf16.msra.mxu0 0
        %2894 = vmatprep.subr.bf16.mxu0 0
        %2895 = vmatpush2.bf16.msra.mxu0 0
        %2896 = vmatprep.subr.bf16.mxu0 0
        %2897 = vmatpush2.bf16.msra.mxu0 0
        %2898 = vmatprep.subr.bf16.mxu0 0
        %2899 = vmatpush2.bf16.msra.mxu0 0
        %2900 = vmatprep.subr.bf16.mxu0 0
        %2901 = vmatpush2.bf16.msra.mxu0 0
        %2902 = vmatprep.subr.bf16.mxu0 0
        %2903 = vmatpush2.bf16.msra.mxu0 0
        %2904 = vmatprep.mubr.bf16.mxu0 0
        %2905 = vmatmul.mubr.bf16.gmra.mxu0 %v2825
        %v2906 = vpop.f32.mrf.mxu0
        %v2907 = vadd.f32 0.0, %v2906
        %v2908 = vpop.f32.mrf.mxu0
        %v2909 = vpop.f32.mrf.mxu0
        %v2910 = vadd.f32 0.0, %v2909
        %v2911 = vpop.f32.mrf.mxu0
        %2912 = vmatprep.mubr.bf16.mxu0 0
        %2913 = vmatmul.mubr.bf16.gmra.mxu0 %v2828
        %v2914 = vpop.f32.mrf.mxu0
        %v2915 = vadd.f32 0.0, %v2914
        %v2916 = vpop.f32.mrf.mxu0
        %v2917 = vpop.f32.mrf.mxu0
        %v2918 = vadd.f32 0.0, %v2917
        %v2919 = vpop.f32.mrf.mxu0
        %2920 = vmatprep.mubr.bf16.mxu0 0
        %2921 = vmatmul.mubr.bf16.gmra.mxu0 %v2831
        %v2922 = vpop.f32.mrf.mxu0
        %v2923 = vadd.f32 0.0, %v2922
        %v2924 = vpop.f32.mrf.mxu0
        %v2925 = vpop.f32.mrf.mxu0
        %v2926 = vadd.f32 0.0, %v2925
        %v2927 = vpop.f32.mrf.mxu0
        %2928 = vmatprep.mubr.bf16.mxu0 0
        %2929 = vmatmul.mubr.bf16.gmra.mxu0 %v2834
        %v2930 = vpop.f32.mrf.mxu0
        %v2931 = vadd.f32 0.0, %v2930
        %v2932 = vpop.f32.mrf.mxu0
        %v2933 = vpop.f32.mrf.mxu0
        %v2934 = vadd.f32 0.0, %v2933
        %v2935 = vpop.f32.mrf.mxu0
        %2936 = vmatprep.mubr.bf16.mxu0 0
        %2937 = vmatmul.mubr.bf16.gmra.mxu0 %v2837
        %v2938 = vpop.f32.mrf.mxu0
        %v2939 = vadd.f32 0.0, %v2938
        %v2940 = vpop.f32.mrf.mxu0
        %v2941 = vpop.f32.mrf.mxu0
        %v2942 = vadd.f32 0.0, %v2941
        %v2943 = vpop.f32.mrf.mxu0
        %2944 = vmatprep.mubr.bf16.mxu0 0
        %2945 = vmatmul.mubr.bf16.gmra.mxu0 %v2840
        %v2946 = vpop.f32.mrf.mxu0
        %v2947 = vadd.f32 0.0, %v2946
        %v2948 = vpop.f32.mrf.mxu0
        %v2949 = vpop.f32.mrf.mxu0
        %v2950 = vadd.f32 0.0, %v2949
        %v2951 = vpop.f32.mrf.mxu0
        %2952 = vmatprep.mubr.bf16.mxu0 0
        %2953 = vmatmul.mubr.bf16.gmra.mxu0 %v2843
        %v2954 = vpop.f32.mrf.mxu0
        %v2955 = vadd.f32 0.0, %v2954
        %v2956 = vpop.f32.mrf.mxu0
        %v2957 = vpop.f32.mrf.mxu0
        %v2958 = vadd.f32 0.0, %v2957
        %v2959 = vpop.f32.mrf.mxu0
        %2960 = vmatprep.mubr.bf16.mxu0 0
        %2961 = vmatmul.mubr.bf16.gmra.mxu0 %v2846
        %v2962 = vpop.f32.mrf.mxu0
        %v2963 = vadd.f32 0.0, %v2962
        %v2964 = vpop.f32.mrf.mxu0
        %v2965 = vpop.f32.mrf.mxu0
        %v2966 = vadd.f32 0.0, %v2965
        %v2967 = vpop.f32.mrf.mxu0
        %2968 = vmatprep.mubr.bf16.mxu0 0
        %2969 = vmatmul.mubr.bf16.gmra.mxu0 %v2849
        %v2970 = vpop.f32.mrf.mxu0
        %v2971 = vadd.f32 0.0, %v2970
        %v2972 = vpop.f32.mrf.mxu0
        %v2973 = vpop.f32.mrf.mxu0
        %v2974 = vadd.f32 0.0, %v2973
        %v2975 = vpop.f32.mrf.mxu0
        %2976 = vmatprep.mubr.bf16.mxu0 0
        %2977 = vmatmul.mubr.bf16.gmra.mxu0 %v2852
        %v2978 = vpop.f32.mrf.mxu0
        %v2979 = vadd.f32 0.0, %v2978
        %v2980 = vpop.f32.mrf.mxu0
        %v2981 = vpop.f32.mrf.mxu0
        %v2982 = vadd.f32 0.0, %v2981
        %v2983 = vpop.f32.mrf.mxu0
        %2984 = vmatprep.mubr.bf16.mxu0 0
        %2985 = vmatmul.mubr.bf16.gmra.mxu0 %v2855
        %v2986 = vpop.f32.mrf.mxu0
        %v2987 = vadd.f32 0.0, %v2986
        %v2988 = vpop.f32.mrf.mxu0
        %v2989 = vpop.f32.mrf.mxu0
        %v2990 = vadd.f32 0.0, %v2989
        %v2991 = vpop.f32.mrf.mxu0
        %2992 = vmatprep.mubr.bf16.mxu0 0
        %2993 = vmatmul.mubr.bf16.gmra.mxu0 %v2858
        %v2994 = vpop.f32.mrf.mxu0
        %v2995 = vadd.f32 0.0, %v2994
        %v2996 = vpop.f32.mrf.mxu0
        %v2997 = vpop.f32.mrf.mxu0
        %v2998 = vadd.f32 0.0, %v2997
        %v2999 = vpop.f32.mrf.mxu0
        %3000 = vmatprep.mubr.bf16.mxu0 0
        %3001 = vmatmul.mubr.bf16.gmra.mxu0 %v2861
        %v3002 = vpop.f32.mrf.mxu0
        %v3003 = vadd.f32 0.0, %v3002
        %v3004 = vpop.f32.mrf.mxu0
        %v3005 = vpop.f32.mrf.mxu0
        %v3006 = vadd.f32 0.0, %v3005
        %v3007 = vpop.f32.mrf.mxu0
        %3008 = vmatprep.mubr.bf16.mxu0 0
        %3009 = vmatmul.mubr.bf16.gmra.mxu0 %v2864
        %v3010 = vpop.f32.mrf.mxu0
        %v3011 = vadd.f32 0.0, %v3010
        %v3012 = vpop.f32.mrf.mxu0
        %v3013 = vpop.f32.mrf.mxu0
        %v3014 = vadd.f32 0.0, %v3013
        %v3015 = vpop.f32.mrf.mxu0
        %3016 = vmatprep.mubr.bf16.mxu0 0
        %3017 = vmatmul.mubr.bf16.gmra.mxu0 %v2867
        %v3018 = vpop.f32.mrf.mxu0
        %v3019 = vadd.f32 0.0, %v3018
        %v3020 = vpop.f32.mrf.mxu0
        %v3021 = vpop.f32.mrf.mxu0
        %v3022 = vadd.f32 0.0, %v3021
        %v3023 = vpop.f32.mrf.mxu0
        %3024 = vmatprep.mubr.bf16.mxu0 0
        %3025 = vmatmul.mubr.bf16.gmra.mxu0 %v2870
        %v3026 = vpop.f32.mrf.mxu0
        %v3027 = vadd.f32 0.0, %v3026
        %v3028 = vpop.f32.mrf.mxu0
        %v3029 = vpop.f32.mrf.mxu0
        %v3030 = vadd.f32 0.0, %v3029
        %v3031 = vpop.f32.mrf.mxu0
        %3032 = vdwg.mxu0
        %3033 = vxpose.xlu0.b32.start [1/16] %v2907, 128
        %3034 = vxpose.xlu0.b32.cont [2/16] %v2910, 128
        %3035 = vxpose.xlu0.b32.cont [3/16] %v2915, 128
        %3036 = vxpose.xlu0.b32.cont [4/16] %v2918, 128
        %3037 = vxpose.xlu0.b32.cont [5/16] %v2923, 128
        %3038 = vxpose.xlu0.b32.cont [6/16] %v2926, 128
        %3039 = vxpose.xlu0.b32.cont [7/16] %v2931, 128
        %3040 = vxpose.xlu0.b32.cont [8/16] %v2934, 128
        %3041 = vxpose.xlu0.b32.cont [9/16] 0.0, 128
        %3042 = vxpose.xlu0.b32.cont [10/16] 0.0, 128
        %3043 = vxpose.xlu0.b32.cont [11/16] 0.0, 128
        %3044 = vxpose.xlu0.b32.cont [12/16] 0.0, 128
        %3045 = vxpose.xlu0.b32.cont [13/16] 0.0, 128
        %3046 = vxpose.xlu0.b32.cont [14/16] 0.0, 128
        %3047 = vxpose.xlu0.b32.cont [15/16] 0.0, 128
        %3048 = vxpose.xlu0.b32.end [16/16] 0.0, 128
        %v3049 = vpop.trf.xlu0
        %v3050 = vpop.trf.xlu0
        %v3051 = vpop.trf.xlu0
        %v3052 = vpop.trf.xlu0
        %v3053 = vpop.trf.xlu0
        %v3054 = vpop.trf.xlu0
        %v3055 = vpop.trf.xlu0
        %v3056 = vpop.trf.xlu0
        %v3057 = vpop.trf.xlu0
        %v3058 = vpop.trf.xlu0
        %v3059 = vpop.trf.xlu0
        %v3060 = vpop.trf.xlu0
        %v3061 = vpop.trf.xlu0
        %v3062 = vpop.trf.xlu0
        %v3063 = vpop.trf.xlu0
        %v3064 = vpop.trf.xlu0
        %v3065 = vpack.c.bf16 %v3050, %v3049
        %v3066 = vpack.c.bf16 %v3052, %v3051
        %v3067 = vpack.c.bf16 %v3054, %v3053
        %v3068 = vpack.c.bf16 %v3056, %v3055
        %3071 = vrot.lane.b32.xlu0 %v2971, 64
        %v3072 = vpop.permute.xlu0 %3071
        %3073 = vrot.lane.b32.xlu0 %v2974, 64
        %v3074 = vpop.permute.xlu0 %3073
        %v3077 = vsel %vm696, %v2939, %v3072
        %v3078 = vsel %vm696, %v2942, %v3074
        %v3079 = vpack.c.bf16 %v3078, %v3077
        %3080 = vxpose.xlu0.b32.start [1/16] %v3003, 128
        %3081 = vxpose.xlu0.b32.cont [2/16] %v3006, 128
        %3082 = vxpose.xlu0.b32.cont [3/16] 0.0, 128
        %3083 = vxpose.xlu0.b32.cont [4/16] 0.0, 128
        %3084 = vxpose.xlu0.b32.cont [5/16] 0.0, 128
        %3085 = vxpose.xlu0.b32.cont [6/16] 0.0, 128
        %3086 = vxpose.xlu0.b32.cont [7/16] 0.0, 128
        %3087 = vxpose.xlu0.b32.cont [8/16] 0.0, 128
        %3088 = vxpose.xlu0.b32.cont [9/16] 0.0, 128
        %3089 = vxpose.xlu0.b32.cont [10/16] 0.0, 128
        %3090 = vxpose.xlu0.b32.cont [11/16] 0.0, 128
        %3091 = vxpose.xlu0.b32.cont [12/16] 0.0, 128
        %3092 = vxpose.xlu0.b32.cont [13/16] 0.0, 128
        %3093 = vxpose.xlu0.b32.cont [14/16] 0.0, 128
        %3094 = vxpose.xlu0.b32.cont [15/16] 0.0, 128
        %3095 = vxpose.xlu0.b32.end [16/16] 0.0, 128
        %v3096 = vpop.trf.xlu0
        %v3097 = vpop.trf.xlu0
        %v3098 = vpop.trf.xlu0
        %v3099 = vpop.trf.xlu0
        %v3100 = vpop.trf.xlu0
        %v3101 = vpop.trf.xlu0
        %v3102 = vpop.trf.xlu0
        %v3103 = vpop.trf.xlu0
        %v3104 = vpop.trf.xlu0
        %v3105 = vpop.trf.xlu0
        %v3106 = vpop.trf.xlu0
        %v3107 = vpop.trf.xlu0
        %v3108 = vpop.trf.xlu0
        %v3109 = vpop.trf.xlu0
        %v3110 = vpop.trf.xlu0
        %v3111 = vpop.trf.xlu0
        %v3112 = vpack.c.bf16 %v3097, %v3096
        %v3113 = vpack.c.bf16 %v3099, %v3098
        %v3114 = vpack.c.bf16 %v3101, %v3100
        %v3115 = vpack.c.bf16 %v3103, %v3102
        %v3117 = vsel %vm736, %v3065, 0
        %v3120 = vsel %vm736, %v3066, 0
        %v3123 = vsel %vm736, %v3067, 0
        %v3126 = vsel %vm736, %v3068, 0
        %3128 = vmatprep.subr.bf16.mxu0 0
        %3129 = vmatpush1.bf16.msra.mxu0 0
        %3130 = vmatprep.subr.bf16.mxu0 0
        %3131 = vmatpush1.bf16.msra.mxu0 0
        %3132 = vmatprep.subr.bf16.mxu0 0
        %3133 = vmatpush1.bf16.msra.mxu0 0
        %3134 = vmatprep.subr.bf16.mxu0 0
        %3135 = vmatpush1.bf16.msra.mxu0 0
        %3136 = vmatprep.subr.bf16.mxu0 0
        %3137 = vmatpush1.bf16.msra.mxu0 0
        %3138 = vmatprep.subr.bf16.mxu0 0
        %3139 = vmatpush1.bf16.msra.mxu0 0
        %3140 = vmatprep.subr.bf16.mxu0 0
        %3141 = vmatpush1.bf16.msra.mxu0 0
        %3142 = vmatprep.subr.bf16.mxu0 0
        %3143 = vmatpush1.bf16.msra.mxu0 %v3079
        %3144 = vmatprep.subr.bf16.mxu0 0
        %3145 = vmatpush2.bf16.msra.mxu0 0
        %3146 = vmatprep.subr.bf16.mxu0 0
        %3147 = vmatpush2.bf16.msra.mxu0 0
        %3148 = vmatprep.subr.bf16.mxu0 0
        %3149 = vmatpush2.bf16.msra.mxu0 0
        %3150 = vmatprep.subr.bf16.mxu0 0
        %3151 = vmatpush2.bf16.msra.mxu0 0
        %3152 = vmatprep.subr.bf16.mxu0 0
        %3153 = vmatpush2.bf16.msra.mxu0 0
        %3154 = vmatprep.subr.bf16.mxu0 0
        %3155 = vmatpush2.bf16.msra.mxu0 0
        %3156 = vmatprep.subr.bf16.mxu0 0
        %3157 = vmatpush2.bf16.msra.mxu0 0
        %3158 = vmatprep.subr.bf16.mxu0 0
        %3159 = vmatpush2.bf16.msra.mxu0 0
        %3160 = vmatprep.mubr.bf16.mxu0 0
        %3161 = vmatmul.mubr.bf16.gmra.mxu0 %v3117
        %v3162 = vpop.f32.mrf.mxu0
        %v3163 = vadd.f32 0.0, %v3162
        %v3164 = vpop.f32.mrf.mxu0
        %v3165 = vpop.f32.mrf.mxu0
        %v3166 = vadd.f32 0.0, %v3165
        %v3167 = vpop.f32.mrf.mxu0
        %3168 = vmatprep.mubr.bf16.mxu0 0
        %3169 = vmatmul.mubr.bf16.gmra.mxu0 %v3120
        %v3170 = vpop.f32.mrf.mxu0
        %v3171 = vadd.f32 0.0, %v3170
        %v3172 = vpop.f32.mrf.mxu0
        %v3173 = vpop.f32.mrf.mxu0
        %v3174 = vadd.f32 0.0, %v3173
        %v3175 = vpop.f32.mrf.mxu0
        %3176 = vmatprep.mubr.bf16.mxu0 0
        %3177 = vmatmul.mubr.bf16.gmra.mxu0 %v3123
        %v3178 = vpop.f32.mrf.mxu0
        %v3179 = vadd.f32 0.0, %v3178
        %v3180 = vpop.f32.mrf.mxu0
        %v3181 = vpop.f32.mrf.mxu0
        %v3182 = vadd.f32 0.0, %v3181
        %v3183 = vpop.f32.mrf.mxu0
        %3184 = vmatprep.mubr.bf16.mxu0 0
        %3185 = vmatmul.mubr.bf16.gmra.mxu0 %v3126
        %v3186 = vpop.f32.mrf.mxu0
        %v3187 = vadd.f32 0.0, %v3186
        %v3188 = vpop.f32.mrf.mxu0
        %v3189 = vpop.f32.mrf.mxu0
        %v3190 = vadd.f32 0.0, %v3189
        %v3191 = vpop.f32.mrf.mxu0
        %3192 = vdwg.mxu0
        %v3193 = vmul.f32 %v3163, %v3163
        %v3194 = vmul.f32 %v3166, %v3166
        %v3195 = vmul.f32 %v3171, %v3171
        %v3196 = vmul.f32 %v3174, %v3174
        %v3197 = vmul.f32 %v3179, %v3179
        %v3198 = vmul.f32 %v3182, %v3182
        %v3199 = vmul.f32 %v3187, %v3187
        %v3200 = vmul.f32 %v3190, %v3190
        %3209 = vrot.lane.b32.xlu0 %v3193, 64
        %v3210 = vpop.permute.xlu0 %3209
        %3211 = vrot.lane.b32.xlu0 %v3194, 64
        %v3212 = vpop.permute.xlu0 %3211
        %3213 = vrot.lane.b32.xlu0 %v3195, 64
        %v3214 = vpop.permute.xlu0 %3213
        %3215 = vrot.lane.b32.xlu0 %v3196, 64
        %v3216 = vpop.permute.xlu0 %3215
        %3217 = vrot.lane.b32.xlu0 %v3197, 64
        %v3218 = vpop.permute.xlu0 %3217
        %3219 = vrot.lane.b32.xlu0 %v3198, 64
        %v3220 = vpop.permute.xlu0 %3219
        %3221 = vrot.lane.b32.xlu0 %v3199, 64
        %v3222 = vpop.permute.xlu0 %3221
        %3223 = vrot.lane.b32.xlu0 %v3200, 64
        %v3224 = vpop.permute.xlu0 %3223
        %v3233 = vadd.f32 %v3193, %v3210
        %v3234 = vadd.f32 %v3194, %v3212
        %v3235 = vadd.f32 %v3195, %v3214
        %v3236 = vadd.f32 %v3196, %v3216
        %v3237 = vadd.f32 %v3197, %v3218
        %v3238 = vadd.f32 %v3198, %v3220
        %v3239 = vadd.f32 %v3199, %v3222
        %v3240 = vadd.f32 %v3200, %v3224
        %v3241 = vrsqrt.pop %v3233
        %v3242 = vmul.f32 %v3233, %v3241
        %vm3243 = vcmp.eq.f32.partialorder %v3233, inf
        %v3244 = vsel %vm3243, %v3233, %v3242
        %vm3245 = vcmp.eq.f32.partialorder %v3233, 0.0
        %v3246 = vand.u32 %v3233, 2147483648
        %v3247 = vsel %vm3245, %v3246, %v3244
        %v3248 = vrsqrt.pop %v3234
        %v3249 = vmul.f32 %v3234, %v3248
        %vm3250 = vcmp.eq.f32.partialorder %v3234, inf
        %v3251 = vsel %vm3250, %v3234, %v3249
        %vm3252 = vcmp.eq.f32.partialorder %v3234, 0.0
        %v3253 = vand.u32 %v3234, 2147483648
        %v3254 = vsel %vm3252, %v3253, %v3251
        %v3255 = vrsqrt.pop %v3235
        %v3256 = vmul.f32 %v3235, %v3255
        %vm3257 = vcmp.eq.f32.partialorder %v3235, inf
        %v3258 = vsel %vm3257, %v3235, %v3256
        %vm3259 = vcmp.eq.f32.partialorder %v3235, 0.0
        %v3260 = vand.u32 %v3235, 2147483648
        %v3261 = vsel %vm3259, %v3260, %v3258
        %v3262 = vrsqrt.pop %v3236
        %v3263 = vmul.f32 %v3236, %v3262
        %vm3264 = vcmp.eq.f32.partialorder %v3236, inf
        %v3265 = vsel %vm3264, %v3236, %v3263
        %vm3266 = vcmp.eq.f32.partialorder %v3236, 0.0
        %v3267 = vand.u32 %v3236, 2147483648
        %v3268 = vsel %vm3266, %v3267, %v3265
        %v3269 = vrsqrt.pop %v3237
        %v3270 = vmul.f32 %v3237, %v3269
        %vm3271 = vcmp.eq.f32.partialorder %v3237, inf
        %v3272 = vsel %vm3271, %v3237, %v3270
        %vm3273 = vcmp.eq.f32.partialorder %v3237, 0.0
        %v3274 = vand.u32 %v3237, 2147483648
        %v3275 = vsel %vm3273, %v3274, %v3272
        %v3276 = vrsqrt.pop %v3238
        %v3277 = vmul.f32 %v3238, %v3276
        %vm3278 = vcmp.eq.f32.partialorder %v3238, inf
        %v3279 = vsel %vm3278, %v3238, %v3277
        %vm3280 = vcmp.eq.f32.partialorder %v3238, 0.0
        %v3281 = vand.u32 %v3238, 2147483648
        %v3282 = vsel %vm3280, %v3281, %v3279
        %v3283 = vrsqrt.pop %v3239
        %v3284 = vmul.f32 %v3239, %v3283
        %vm3285 = vcmp.eq.f32.partialorder %v3239, inf
        %v3286 = vsel %vm3285, %v3239, %v3284
        %vm3287 = vcmp.eq.f32.partialorder %v3239, 0.0
        %v3288 = vand.u32 %v3239, 2147483648
        %v3289 = vsel %vm3287, %v3288, %v3286
        %v3290 = vrsqrt.pop %v3240
        %v3291 = vmul.f32 %v3240, %v3290
        %vm3292 = vcmp.eq.f32.partialorder %v3240, inf
        %v3293 = vsel %vm3292, %v3240, %v3291
        %vm3294 = vcmp.eq.f32.partialorder %v3240, 0.0
        %v3295 = vand.u32 %v3240, 2147483648
        %v3296 = vsel %vm3294, %v3295, %v3293
        %v3297 = vsel %vm696, %v3247, -inf
        %3298 = vmax.xlane.f32.xlu0 %v3297
        %v3299 = vpop.xlane.xlu0 %3298
        %v3300 = vsel %vm696, %v3254, -inf
        %3301 = vmax.xlane.f32.xlu0 %v3300
        %v3302 = vpop.xlane.xlu0 %3301
        %v3303 = vsel %vm696, %v3261, -inf
        %3304 = vmax.xlane.f32.xlu0 %v3303
        %v3305 = vpop.xlane.xlu0 %3304
        %v3306 = vsel %vm696, %v3268, -inf
        %3307 = vmax.xlane.f32.xlu0 %v3306
        %v3308 = vpop.xlane.xlu0 %3307
        %v3309 = vsel %vm696, %v3275, -inf
        %3310 = vmax.xlane.f32.xlu0 %v3309
        %v3311 = vpop.xlane.xlu0 %3310
        %v3312 = vsel %vm696, %v3282, -inf
        %3313 = vmax.xlane.f32.xlu0 %v3312
        %v3314 = vpop.xlane.xlu0 %3313
        %v3315 = vsel %vm696, %v3289, -inf
        %3316 = vmax.xlane.f32.xlu0 %v3315
        %v3317 = vpop.xlane.xlu0 %3316
        %v3318 = vsel %vm696, %v3296, -inf
        %3319 = vmax.xlane.f32.xlu0 %v3318
        %v3320 = vpop.xlane.xlu0 %3319
        %v3321 = vsub.f32 %v3247, %v3299
        %v3322 = vsub.f32 %v3254, %v3302
        %v3323 = vsub.f32 %v3261, %v3305
        %v3324 = vsub.f32 %v3268, %v3308
        %v3325 = vsub.f32 %v3275, %v3311
        %v3326 = vsub.f32 %v3282, %v3314
        %v3327 = vsub.f32 %v3289, %v3317
        %v3328 = vsub.f32 %v3296, %v3320
        %v3329 = vmul.f32 %v3321, 1.442695
        %v3330 = vpow.pop %v3329
        %v3331 = vmul.f32 %v3322, 1.442695
        %v3332 = vpow.pop %v3331
        %v3333 = vmul.f32 %v3323, 1.442695
        %v3334 = vpow.pop %v3333
        %v3335 = vmul.f32 %v3324, 1.442695
        %v3336 = vpow.pop %v3335
        %v3337 = vmul.f32 %v3325, 1.442695
        %v3338 = vpow.pop %v3337
        %v3339 = vmul.f32 %v3326, 1.442695
        %v3340 = vpow.pop %v3339
        %v3341 = vmul.f32 %v3327, 1.442695
        %v3342 = vpow.pop %v3341
        %v3343 = vmul.f32 %v3328, 1.442695
        %v3344 = vpow.pop %v3343
        %v3345 = vsel %vm696, %v3330, 0.0
        %3346 = vadd.xlane.f32.xlu0 %v3345
        %v3347 = vpop.xlane.xlu0 %3346
        %v3348 = vsel %vm696, %v3332, 0.0
        %3349 = vadd.xlane.f32.xlu0 %v3348
        %v3350 = vpop.xlane.xlu0 %3349
        %v3351 = vsel %vm696, %v3334, 0.0
        %3352 = vadd.xlane.f32.xlu0 %v3351
        %v3353 = vpop.xlane.xlu0 %3352
        %v3354 = vsel %vm696, %v3336, 0.0
        %3355 = vadd.xlane.f32.xlu0 %v3354
        %v3356 = vpop.xlane.xlu0 %3355
        %v3357 = vsel %vm696, %v3338, 0.0
        %3358 = vadd.xlane.f32.xlu0 %v3357
        %v3359 = vpop.xlane.xlu0 %3358
        %v3360 = vsel %vm696, %v3340, 0.0
        %3361 = vadd.xlane.f32.xlu0 %v3360
        %v3362 = vpop.xlane.xlu0 %3361
        %v3363 = vsel %vm696, %v3342, 0.0
        %3364 = vadd.xlane.f32.xlu0 %v3363
        %v3365 = vpop.xlane.xlu0 %3364
        %v3366 = vsel %vm696, %v3344, 0.0
        %3367 = vadd.xlane.f32.xlu0 %v3366
        %v3368 = vpop.xlane.xlu0 %3367
        %v3369 = vrcp.pop %v3347
        %v3370 = vrcp.pop %v3350
        %v3371 = vrcp.pop %v3353
        %v3372 = vrcp.pop %v3356
        %v3373 = vrcp.pop %v3359
        %v3374 = vrcp.pop %v3362
        %v3375 = vrcp.pop %v3365
        %v3376 = vrcp.pop %v3368
        %v3377 = vmul.f32 %v3330, %v3369
        %v3378 = vmul.f32 %v3332, %v3370
        %v3379 = vmul.f32 %v3334, %v3371
        %v3380 = vmul.f32 %v3336, %v3372
        %v3381 = vmul.f32 %v3338, %v3373
        %v3382 = vmul.f32 %v3340, %v3374
        %v3383 = vmul.f32 %v3342, %v3375
        %v3384 = vmul.f32 %v3344, %v3376
        %v3385 = vpack.c.bf16 %v3378, %v3377
        %v3386 = vpack.c.bf16 %v3380, %v3379
        %v3387 = vpack.c.bf16 %v3382, %v3381
        %v3388 = vpack.c.bf16 %v3384, %v3383
        %v3390 = vsel %vm696, %v3385, 0
        %v3393 = vsel %vm696, %v3386, 0
        %v3396 = vsel %vm696, %v3387, 0
        %v3399 = vsel %vm696, %v3388, 0
        %3401 = vmatprep.subr.bf16.mxu0 0
        %3402 = vmatpush1.bf16.msra.mxu0 0
        %3403 = vmatprep.subr.bf16.mxu0 0
        %3404 = vmatpush1.bf16.msra.mxu0 0
        %3405 = vmatprep.subr.bf16.mxu0 0
        %3406 = vmatpush1.bf16.msra.mxu0 0
        %3407 = vmatprep.subr.bf16.mxu0 0
        %3408 = vmatpush1.bf16.msra.mxu0 0
        %3409 = vmatprep.subr.bf16.mxu0 0
        %3410 = vmatpush1.bf16.msra.mxu0 %v3115
        %3411 = vmatprep.subr.bf16.mxu0 0
        %3412 = vmatpush1.bf16.msra.mxu0 %v3114
        %3413 = vmatprep.subr.bf16.mxu0 0
        %3414 = vmatpush1.bf16.msra.mxu0 %v3113
        %3415 = vmatprep.subr.bf16.mxu0 0
        %3416 = vmatpush1.bf16.msra.mxu0 %v3112
        %3417 = vmatprep.subr.bf16.mxu0 0
        %3418 = vmatpush2.bf16.msra.mxu0 0
        %3419 = vmatprep.subr.bf16.mxu0 0
        %3420 = vmatpush2.bf16.msra.mxu0 0
        %3421 = vmatprep.subr.bf16.mxu0 0
        %3422 = vmatpush2.bf16.msra.mxu0 0
        %3423 = vmatprep.subr.bf16.mxu0 0
        %3424 = vmatpush2.bf16.msra.mxu0 0
        %3425 = vmatprep.subr.bf16.mxu0 0
        %3426 = vmatpush2.bf16.msra.mxu0 0
        %3427 = vmatprep.subr.bf16.mxu0 0
        %3428 = vmatpush2.bf16.msra.mxu0 0
        %3429 = vmatprep.subr.bf16.mxu0 0
        %3430 = vmatpush2.bf16.msra.mxu0 0
        %3431 = vmatprep.subr.bf16.mxu0 0
        %3432 = vmatpush2.bf16.msra.mxu0 0
        %3433 = vmatprep.mubr.bf16.mxu0 0
        %3434 = vmatmul.mubr.bf16.gmra.mxu0 %v3390
        %v3435 = vpop.f32.mrf.mxu0
        %v3436 = vadd.f32 0.0, %v3435
        %v3437 = vpop.f32.mrf.mxu0
        %v3438 = vpop.f32.mrf.mxu0
        %v3439 = vadd.f32 0.0, %v3438
        %v3440 = vpop.f32.mrf.mxu0
        %3441 = vmatprep.mubr.bf16.mxu0 0
        %3442 = vmatmul.mubr.bf16.gmra.mxu0 %v3393
        %v3443 = vpop.f32.mrf.mxu0
        %v3444 = vadd.f32 0.0, %v3443
        %v3445 = vpop.f32.mrf.mxu0
        %v3446 = vpop.f32.mrf.mxu0
        %v3447 = vadd.f32 0.0, %v3446
        %v3448 = vpop.f32.mrf.mxu0
        %3449 = vmatprep.mubr.bf16.mxu0 0
        %3450 = vmatmul.mubr.bf16.gmra.mxu0 %v3396
        %v3451 = vpop.f32.mrf.mxu0
        %v3452 = vadd.f32 0.0, %v3451
        %v3453 = vpop.f32.mrf.mxu0
        %v3454 = vpop.f32.mrf.mxu0
        %v3455 = vadd.f32 0.0, %v3454
        %v3456 = vpop.f32.mrf.mxu0
        %3457 = vmatprep.mubr.bf16.mxu0 0
        %3458 = vmatmul.mubr.bf16.gmra.mxu0 %v3399
        %v3459 = vpop.f32.mrf.mxu0
        %v3460 = vadd.f32 0.0, %v3459
        %v3461 = vpop.f32.mrf.mxu0
        %v3462 = vpop.f32.mrf.mxu0
        %v3463 = vadd.f32 0.0, %v3462
        %v3464 = vpop.f32.mrf.mxu0
        %3465 = vdwg.mxu0
        %v3466 = vld [vmem:[%s3 + $0x20] sm:$0xf]
        %v3467 = vld [vmem:[%s3 + $0x24] sm:$0xf]
        %v3468 = vpack.c.bf16 %v3439, %v3436
        %v3469 = vpack.c.bf16 %v3447, %v3444
        %v3470 = vpack.c.bf16 %v3455, %v3452
        %v3471 = vpack.c.bf16 %v3463, %v3460
        %3474 = vrot.lane.b32.xlu0 %v2979, 64
        %v3475 = vpop.permute.xlu0 %3474
        %3476 = vrot.lane.b32.xlu0 %v2982, 64
        %v3477 = vpop.permute.xlu0 %3476
        %v3480 = vsel %vm696, %v2947, %v3475
        %v3481 = vsel %vm696, %v2950, %v3477
        %v3482 = vpack.c.bf16 %v3481, %v3480
        %3483 = vxpose.xlu0.b32.start [1/16] %v3011, 128
        %3484 = vxpose.xlu0.b32.cont [2/16] %v3014, 128
        %3485 = vxpose.xlu0.b32.cont [3/16] 0.0, 128
        %3486 = vxpose.xlu0.b32.cont [4/16] 0.0, 128
        %3487 = vxpose.xlu0.b32.cont [5/16] 0.0, 128
        %3488 = vxpose.xlu0.b32.cont [6/16] 0.0, 128
        %3489 = vxpose.xlu0.b32.cont [7/16] 0.0, 128
        %3490 = vxpose.xlu0.b32.cont [8/16] 0.0, 128
        %3491 = vxpose.xlu0.b32.cont [9/16] 0.0, 128
        %3492 = vxpose.xlu0.b32.cont [10/16] 0.0, 128
        %3493 = vxpose.xlu0.b32.cont [11/16] 0.0, 128
        %3494 = vxpose.xlu0.b32.cont [12/16] 0.0, 128
        %3495 = vxpose.xlu0.b32.cont [13/16] 0.0, 128
        %3496 = vxpose.xlu0.b32.cont [14/16] 0.0, 128
        %3497 = vxpose.xlu0.b32.cont [15/16] 0.0, 128
        %3498 = vxpose.xlu0.b32.end [16/16] 0.0, 128
        %v3499 = vpop.trf.xlu0
        %v3500 = vpop.trf.xlu0
        %v3501 = vpop.trf.xlu0
        %v3502 = vpop.trf.xlu0
        %v3503 = vpop.trf.xlu0
        %v3504 = vpop.trf.xlu0
        %v3505 = vpop.trf.xlu0
        %v3506 = vpop.trf.xlu0
        %v3507 = vpop.trf.xlu0
        %v3508 = vpop.trf.xlu0
        %v3509 = vpop.trf.xlu0
        %v3510 = vpop.trf.xlu0
        %v3511 = vpop.trf.xlu0
        %v3512 = vpop.trf.xlu0
        %v3513 = vpop.trf.xlu0
        %v3514 = vpop.trf.xlu0
        %v3515 = vpack.c.bf16 %v3500, %v3499
        %v3516 = vpack.c.bf16 %v3502, %v3501
        %v3517 = vpack.c.bf16 %v3504, %v3503
        %v3518 = vpack.c.bf16 %v3506, %v3505
        %3523 = vrot.lane.b32.xlu0 %v3065, 112
        %v3524 = vpop.permute.xlu0 %3523
        %3525 = vrot.lane.b32.xlu0 %v3066, 112
        %v3526 = vpop.permute.xlu0 %3525
        %3527 = vrot.lane.b32.xlu0 %v3067, 112
        %v3528 = vpop.permute.xlu0 %3527
        %3529 = vrot.lane.b32.xlu0 %v3068, 112
        %v3530 = vpop.permute.xlu0 %3529
        %v3532 = vsel %vm736, %v3524, 0
        %v3535 = vsel %vm736, %v3526, 0
        %v3538 = vsel %vm736, %v3528, 0
        %v3541 = vsel %vm736, %v3530, 0
        %3543 = vmatprep.subr.bf16.mxu0 0
        %3544 = vmatpush1.bf16.msra.mxu0 0
        %3545 = vmatprep.subr.bf16.mxu0 0
        %3546 = vmatpush1.bf16.msra.mxu0 0
        %3547 = vmatprep.subr.bf16.mxu0 0
        %3548 = vmatpush1.bf16.msra.mxu0 0
        %3549 = vmatprep.subr.bf16.mxu0 0
        %3550 = vmatpush1.bf16.msra.mxu0 0
        %3551 = vmatprep.subr.bf16.mxu0 0
        %3552 = vmatpush1.bf16.msra.mxu0 0
        %3553 = vmatprep.subr.bf16.mxu0 0
        %3554 = vmatpush1.bf16.msra.mxu0 0
        %3555 = vmatprep.subr.bf16.mxu0 0
        %3556 = vmatpush1.bf16.msra.mxu0 0
        %3557 = vmatprep.subr.bf16.mxu0 0
        %3558 = vmatpush1.bf16.msra.mxu0 %v3482
        %3559 = vmatprep.subr.bf16.mxu0 0
        %3560 = vmatpush2.bf16.msra.mxu0 0
        %3561 = vmatprep.subr.bf16.mxu0 0
        %3562 = vmatpush2.bf16.msra.mxu0 0
        %3563 = vmatprep.subr.bf16.mxu0 0
        %3564 = vmatpush2.bf16.msra.mxu0 0
        %3565 = vmatprep.subr.bf16.mxu0 0
        %3566 = vmatpush2.bf16.msra.mxu0 0
        %3567 = vmatprep.subr.bf16.mxu0 0
        %3568 = vmatpush2.bf16.msra.mxu0 0
        %3569 = vmatprep.subr.bf16.mxu0 0
        %3570 = vmatpush2.bf16.msra.mxu0 0
        %3571 = vmatprep.subr.bf16.mxu0 0
        %3572 = vmatpush2.bf16.msra.mxu0 0
        %3573 = vmatprep.subr.bf16.mxu0 0
        %3574 = vmatpush2.bf16.msra.mxu0 0
        %3575 = vmatprep.mubr.bf16.mxu0 0
        %3576 = vmatmul.mubr.bf16.gmra.mxu0 %v3532
        %v3577 = vpop.f32.mrf.mxu0
        %v3578 = vadd.f32 0.0, %v3577
        %v3579 = vpop.f32.mrf.mxu0
        %v3580 = vpop.f32.mrf.mxu0
        %v3581 = vadd.f32 0.0, %v3580
        %v3582 = vpop.f32.mrf.mxu0
        %3583 = vmatprep.mubr.bf16.mxu0 0
        %3584 = vmatmul.mubr.bf16.gmra.mxu0 %v3535
        %v3585 = vpop.f32.mrf.mxu0
        %v3586 = vadd.f32 0.0, %v3585
        %v3587 = vpop.f32.mrf.mxu0
        %v3588 = vpop.f32.mrf.mxu0
        %v3589 = vadd.f32 0.0, %v3588
        %v3590 = vpop.f32.mrf.mxu0
        %3591 = vmatprep.mubr.bf16.mxu0 0
        %3592 = vmatmul.mubr.bf16.gmra.mxu0 %v3538
        %v3593 = vpop.f32.mrf.mxu0
        %v3594 = vadd.f32 0.0, %v3593
        %v3595 = vpop.f32.mrf.mxu0
        %v3596 = vpop.f32.mrf.mxu0
        %v3597 = vadd.f32 0.0, %v3596
        %v3598 = vpop.f32.mrf.mxu0
        %3599 = vmatprep.mubr.bf16.mxu0 0
        %3600 = vmatmul.mubr.bf16.gmra.mxu0 %v3541
        %v3601 = vpop.f32.mrf.mxu0
        %v3602 = vadd.f32 0.0, %v3601
        %v3603 = vpop.f32.mrf.mxu0
        %v3604 = vpop.f32.mrf.mxu0
        %v3605 = vadd.f32 0.0, %v3604
        %v3606 = vpop.f32.mrf.mxu0
        %3607 = vdwg.mxu0
        %v3608 = vmul.f32 %v3578, %v3578
        %v3609 = vmul.f32 %v3581, %v3581
        %v3610 = vmul.f32 %v3586, %v3586
        %v3611 = vmul.f32 %v3589, %v3589
        %v3612 = vmul.f32 %v3594, %v3594
        %v3613 = vmul.f32 %v3597, %v3597
        %v3614 = vmul.f32 %v3602, %v3602
        %v3615 = vmul.f32 %v3605, %v3605
        %3624 = vrot.lane.b32.xlu0 %v3608, 64
        %v3625 = vpop.permute.xlu0 %3624
        %3626 = vrot.lane.b32.xlu0 %v3609, 64
        %v3627 = vpop.permute.xlu0 %3626
        %3628 = vrot.lane.b32.xlu0 %v3610, 64
        %v3629 = vpop.permute.xlu0 %3628
        %3630 = vrot.lane.b32.xlu0 %v3611, 64
        %v3631 = vpop.permute.xlu0 %3630
        %3632 = vrot.lane.b32.xlu0 %v3612, 64
        %v3633 = vpop.permute.xlu0 %3632
        %3634 = vrot.lane.b32.xlu0 %v3613, 64
        %v3635 = vpop.permute.xlu0 %3634
        %3636 = vrot.lane.b32.xlu0 %v3614, 64
        %v3637 = vpop.permute.xlu0 %3636
        %3638 = vrot.lane.b32.xlu0 %v3615, 64
        %v3639 = vpop.permute.xlu0 %3638
        %v3648 = vadd.f32 %v3608, %v3625
        %v3649 = vadd.f32 %v3609, %v3627
        %v3650 = vadd.f32 %v3610, %v3629
        %v3651 = vadd.f32 %v3611, %v3631
        %v3652 = vadd.f32 %v3612, %v3633
        %v3653 = vadd.f32 %v3613, %v3635
        %v3654 = vadd.f32 %v3614, %v3637
        %v3655 = vadd.f32 %v3615, %v3639
        %v3656 = vrsqrt.pop %v3648
        %v3657 = vmul.f32 %v3648, %v3656
        %vm3658 = vcmp.eq.f32.partialorder %v3648, inf
        %v3659 = vsel %vm3658, %v3648, %v3657
        %vm3660 = vcmp.eq.f32.partialorder %v3648, 0.0
        %v3661 = vand.u32 %v3648, 2147483648
        %v3662 = vsel %vm3660, %v3661, %v3659
        %v3663 = vrsqrt.pop %v3649
        %v3664 = vmul.f32 %v3649, %v3663
        %vm3665 = vcmp.eq.f32.partialorder %v3649, inf
        %v3666 = vsel %vm3665, %v3649, %v3664
        %vm3667 = vcmp.eq.f32.partialorder %v3649, 0.0
        %v3668 = vand.u32 %v3649, 2147483648
        %v3669 = vsel %vm3667, %v3668, %v3666
        %v3670 = vrsqrt.pop %v3650
        %v3671 = vmul.f32 %v3650, %v3670
        %vm3672 = vcmp.eq.f32.partialorder %v3650, inf
        %v3673 = vsel %vm3672, %v3650, %v3671
        %vm3674 = vcmp.eq.f32.partialorder %v3650, 0.0
        %v3675 = vand.u32 %v3650, 2147483648
        %v3676 = vsel %vm3674, %v3675, %v3673
        %v3677 = vrsqrt.pop %v3651
        %v3678 = vmul.f32 %v3651, %v3677
        %vm3679 = vcmp.eq.f32.partialorder %v3651, inf
        %v3680 = vsel %vm3679, %v3651, %v3678
        %vm3681 = vcmp.eq.f32.partialorder %v3651, 0.0
        %v3682 = vand.u32 %v3651, 2147483648
        %v3683 = vsel %vm3681, %v3682, %v3680
        %v3684 = vrsqrt.pop %v3652
        %v3685 = vmul.f32 %v3652, %v3684
        %vm3686 = vcmp.eq.f32.partialorder %v3652, inf
        %v3687 = vsel %vm3686, %v3652, %v3685
        %vm3688 = vcmp.eq.f32.partialorder %v3652, 0.0
        %v3689 = vand.u32 %v3652, 2147483648
        %v3690 = vsel %vm3688, %v3689, %v3687
        %v3691 = vrsqrt.pop %v3653
        %v3692 = vmul.f32 %v3653, %v3691
        %vm3693 = vcmp.eq.f32.partialorder %v3653, inf
        %v3694 = vsel %vm3693, %v3653, %v3692
        %vm3695 = vcmp.eq.f32.partialorder %v3653, 0.0
        %v3696 = vand.u32 %v3653, 2147483648
        %v3697 = vsel %vm3695, %v3696, %v3694
        %v3698 = vrsqrt.pop %v3654
        %v3699 = vmul.f32 %v3654, %v3698
        %vm3700 = vcmp.eq.f32.partialorder %v3654, inf
        %v3701 = vsel %vm3700, %v3654, %v3699
        %vm3702 = vcmp.eq.f32.partialorder %v3654, 0.0
        %v3703 = vand.u32 %v3654, 2147483648
        %v3704 = vsel %vm3702, %v3703, %v3701
        %v3705 = vrsqrt.pop %v3655
        %v3706 = vmul.f32 %v3655, %v3705
        %vm3707 = vcmp.eq.f32.partialorder %v3655, inf
        %v3708 = vsel %vm3707, %v3655, %v3706
        %vm3709 = vcmp.eq.f32.partialorder %v3655, 0.0
        %v3710 = vand.u32 %v3655, 2147483648
        %v3711 = vsel %vm3709, %v3710, %v3708
        %v3712 = vsel %vm696, %v3662, -inf
        %3713 = vmax.xlane.f32.xlu0 %v3712
        %v3714 = vpop.xlane.xlu0 %3713
        %v3715 = vsel %vm696, %v3669, -inf
        %3716 = vmax.xlane.f32.xlu0 %v3715
        %v3717 = vpop.xlane.xlu0 %3716
        %v3718 = vsel %vm696, %v3676, -inf
        %3719 = vmax.xlane.f32.xlu0 %v3718
        %v3720 = vpop.xlane.xlu0 %3719
        %v3721 = vsel %vm696, %v3683, -inf
        %3722 = vmax.xlane.f32.xlu0 %v3721
        %v3723 = vpop.xlane.xlu0 %3722
        %v3724 = vsel %vm696, %v3690, -inf
        %3725 = vmax.xlane.f32.xlu0 %v3724
        %v3726 = vpop.xlane.xlu0 %3725
        %v3727 = vsel %vm696, %v3697, -inf
        %3728 = vmax.xlane.f32.xlu0 %v3727
        %v3729 = vpop.xlane.xlu0 %3728
        %v3730 = vsel %vm696, %v3704, -inf
        %3731 = vmax.xlane.f32.xlu0 %v3730
        %v3732 = vpop.xlane.xlu0 %3731
        %v3733 = vsel %vm696, %v3711, -inf
        %3734 = vmax.xlane.f32.xlu0 %v3733
        %v3735 = vpop.xlane.xlu0 %3734
        %v3736 = vsub.f32 %v3662, %v3714
        %v3737 = vsub.f32 %v3669, %v3717
        %v3738 = vsub.f32 %v3676, %v3720
        %v3739 = vsub.f32 %v3683, %v3723
        %v3740 = vsub.f32 %v3690, %v3726
        %v3741 = vsub.f32 %v3697, %v3729
        %v3742 = vsub.f32 %v3704, %v3732
        %v3743 = vsub.f32 %v3711, %v3735
        %v3744 = vmul.f32 %v3736, 1.442695
        %v3745 = vpow.pop %v3744
        %v3746 = vmul.f32 %v3737, 1.442695
        %v3747 = vpow.pop %v3746
        %v3748 = vmul.f32 %v3738, 1.442695
        %v3749 = vpow.pop %v3748
        %v3750 = vmul.f32 %v3739, 1.442695
        %v3751 = vpow.pop %v3750
        %v3752 = vmul.f32 %v3740, 1.442695
        %v3753 = vpow.pop %v3752
        %v3754 = vmul.f32 %v3741, 1.442695
        %v3755 = vpow.pop %v3754
        %v3756 = vmul.f32 %v3742, 1.442695
        %v3757 = vpow.pop %v3756
        %v3758 = vmul.f32 %v3743, 1.442695
        %v3759 = vpow.pop %v3758
        %v3760 = vsel %vm696, %v3745, 0.0
        %3761 = vadd.xlane.f32.xlu0 %v3760
        %v3762 = vpop.xlane.xlu0 %3761
        %v3763 = vsel %vm696, %v3747, 0.0
        %3764 = vadd.xlane.f32.xlu0 %v3763
        %v3765 = vpop.xlane.xlu0 %3764
        %v3766 = vsel %vm696, %v3749, 0.0
        %3767 = vadd.xlane.f32.xlu0 %v3766
        %v3768 = vpop.xlane.xlu0 %3767
        %v3769 = vsel %vm696, %v3751, 0.0
        %3770 = vadd.xlane.f32.xlu0 %v3769
        %v3771 = vpop.xlane.xlu0 %3770
        %v3772 = vsel %vm696, %v3753, 0.0
        %3773 = vadd.xlane.f32.xlu0 %v3772
        %v3774 = vpop.xlane.xlu0 %3773
        %v3775 = vsel %vm696, %v3755, 0.0
        %3776 = vadd.xlane.f32.xlu0 %v3775
        %v3777 = vpop.xlane.xlu0 %3776
        %v3778 = vsel %vm696, %v3757, 0.0
        %3779 = vadd.xlane.f32.xlu0 %v3778
        %v3780 = vpop.xlane.xlu0 %3779
        %v3781 = vsel %vm696, %v3759, 0.0
        %3782 = vadd.xlane.f32.xlu0 %v3781
        %v3783 = vpop.xlane.xlu0 %3782
        %v3784 = vrcp.pop %v3762
        %v3785 = vrcp.pop %v3765
        %v3786 = vrcp.pop %v3768
        %v3787 = vrcp.pop %v3771
        %v3788 = vrcp.pop %v3774
        %v3789 = vrcp.pop %v3777
        %v3790 = vrcp.pop %v3780
        %v3791 = vrcp.pop %v3783
        %v3792 = vmul.f32 %v3745, %v3784
        %v3793 = vmul.f32 %v3747, %v3785
        %v3794 = vmul.f32 %v3749, %v3786
        %v3795 = vmul.f32 %v3751, %v3787
        %v3796 = vmul.f32 %v3753, %v3788
        %v3797 = vmul.f32 %v3755, %v3789
        %v3798 = vmul.f32 %v3757, %v3790
        %v3799 = vmul.f32 %v3759, %v3791
        %v3800 = vpack.c.bf16 %v3793, %v3792
        %v3801 = vpack.c.bf16 %v3795, %v3794
        %v3802 = vpack.c.bf16 %v3797, %v3796
        %v3803 = vpack.c.bf16 %v3799, %v3798
        %v3805 = vsel %vm696, %v3800, 0
        %v3808 = vsel %vm696, %v3801, 0
        %v3811 = vsel %vm696, %v3802, 0
        %v3814 = vsel %vm696, %v3803, 0
        %3816 = vmatprep.subr.bf16.mxu0 0
        %3817 = vmatpush1.bf16.msra.mxu0 0
        %3818 = vmatprep.subr.bf16.mxu0 0
        %3819 = vmatpush1.bf16.msra.mxu0 0
        %3820 = vmatprep.subr.bf16.mxu0 0
        %3821 = vmatpush1.bf16.msra.mxu0 0
        %3822 = vmatprep.subr.bf16.mxu0 0
        %3823 = vmatpush1.bf16.msra.mxu0 0
        %3824 = vmatprep.subr.bf16.mxu0 0
        %3825 = vmatpush1.bf16.msra.mxu0 %v3518
        %3826 = vmatprep.subr.bf16.mxu0 0
        %3827 = vmatpush1.bf16.msra.mxu0 %v3517
        %3828 = vmatprep.subr.bf16.mxu0 0
        %3829 = vmatpush1.bf16.msra.mxu0 %v3516
        %3830 = vmatprep.subr.bf16.mxu0 0
        %3831 = vmatpush1.bf16.msra.mxu0 %v3515
        %3832 = vmatprep.subr.bf16.mxu0 0
        %3833 = vmatpush2.bf16.msra.mxu0 0
        %3834 = vmatprep.subr.bf16.mxu0 0
        %3835 = vmatpush2.bf16.msra.mxu0 0
        %3836 = vmatprep.subr.bf16.mxu0 0
        %3837 = vmatpush2.bf16.msra.mxu0 0
        %3838 = vmatprep.subr.bf16.mxu0 0
        %3839 = vmatpush2.bf16.msra.mxu0 0
        %3840 = vmatprep.subr.bf16.mxu0 0
        %3841 = vmatpush2.bf16.msra.mxu0 0
        %3842 = vmatprep.subr.bf16.mxu0 0
        %3843 = vmatpush2.bf16.msra.mxu0 0
        %3844 = vmatprep.subr.bf16.mxu0 0
        %3845 = vmatpush2.bf16.msra.mxu0 0
        %3846 = vmatprep.subr.bf16.mxu0 0
        %3847 = vmatpush2.bf16.msra.mxu0 0
        %3848 = vmatprep.mubr.bf16.mxu0 0
        %3849 = vmatmul.mubr.bf16.gmra.mxu0 %v3805
        %v3850 = vpop.f32.mrf.mxu0
        %v3851 = vadd.f32 0.0, %v3850
        %v3852 = vpop.f32.mrf.mxu0
        %v3853 = vpop.f32.mrf.mxu0
        %v3854 = vadd.f32 0.0, %v3853
        %v3855 = vpop.f32.mrf.mxu0
        %3856 = vmatprep.mubr.bf16.mxu0 0
        %3857 = vmatmul.mubr.bf16.gmra.mxu0 %v3808
        %v3858 = vpop.f32.mrf.mxu0
        %v3859 = vadd.f32 0.0, %v3858
        %v3860 = vpop.f32.mrf.mxu0
        %v3861 = vpop.f32.mrf.mxu0
        %v3862 = vadd.f32 0.0, %v3861
        %v3863 = vpop.f32.mrf.mxu0
        %3864 = vmatprep.mubr.bf16.mxu0 0
        %3865 = vmatmul.mubr.bf16.gmra.mxu0 %v3811
        %v3866 = vpop.f32.mrf.mxu0
        %v3867 = vadd.f32 0.0, %v3866
        %v3868 = vpop.f32.mrf.mxu0
        %v3869 = vpop.f32.mrf.mxu0
        %v3870 = vadd.f32 0.0, %v3869
        %v3871 = vpop.f32.mrf.mxu0
        %3872 = vmatprep.mubr.bf16.mxu0 0
        %3873 = vmatmul.mubr.bf16.gmra.mxu0 %v3814
        %v3874 = vpop.f32.mrf.mxu0
        %v3875 = vadd.f32 0.0, %v3874
        %v3876 = vpop.f32.mrf.mxu0
        %v3877 = vpop.f32.mrf.mxu0
        %v3878 = vadd.f32 0.0, %v3877
        %v3879 = vpop.f32.mrf.mxu0
        %3880 = vdwg.mxu0
        %v3881 = vld [vmem:[%s3 + $0x28] sm:$0xf]
        %v3882 = vld [vmem:[%s3 + $0x2c] sm:$0xf]
        %v3883 = vpack.c.bf16 %v3854, %v3851
        %v3884 = vpack.c.bf16 %v3862, %v3859
        %v3885 = vpack.c.bf16 %v3870, %v3867
        %v3886 = vpack.c.bf16 %v3878, %v3875
        %v3889 = vunpack.c.l.b16 %v3881
        %v3890 = vunpack.c.l.b16 %v3882
        %v3891 = vpack.c.b16 %v3890, %v3889
        %v3894 = vsel %vm736, %v3883, 0
        %v3897 = vsel %vm736, %v3884, 0
        %v3900 = vsel %vm736, %v3885, 0
        %v3903 = vsel %vm736, %v3886, 0
        %3905 = vmatprep.subr.bf16.mxu0 0
        %3906 = vmatpush1.bf16.msra.mxu0 0
        %3907 = vmatprep.subr.bf16.mxu0 0
        %3908 = vmatpush1.bf16.msra.mxu0 0
        %3909 = vmatprep.subr.bf16.mxu0 0
        %3910 = vmatpush1.bf16.msra.mxu0 0
        %3911 = vmatprep.subr.bf16.mxu0 0
        %3912 = vmatpush1.bf16.msra.mxu0 0
        %3913 = vmatprep.subr.bf16.mxu0 0
        %3914 = vmatpush1.bf16.msra.mxu0 0
        %3915 = vmatprep.subr.bf16.mxu0 0
        %3916 = vmatpush1.bf16.msra.mxu0 0
        %3917 = vmatprep.subr.bf16.mxu0 0
        %3918 = vmatpush1.bf16.msra.mxu0 0
        %3919 = vmatprep.subr.bf16.mxu0 0
        %3920 = vmatpush1.bf16.msra.mxu0 %v3891
        %3921 = vmatprep.subr.bf16.mxu0 0
        %3922 = vmatpush2.bf16.msra.mxu0 0
        %3923 = vmatprep.subr.bf16.mxu0 0
        %3924 = vmatpush2.bf16.msra.mxu0 0
        %3925 = vmatprep.subr.bf16.mxu0 0
        %3926 = vmatpush2.bf16.msra.mxu0 0
        %3927 = vmatprep.subr.bf16.mxu0 0
        %3928 = vmatpush2.bf16.msra.mxu0 0
        %3929 = vmatprep.subr.bf16.mxu0 0
        %3930 = vmatpush2.bf16.msra.mxu0 0
        %3931 = vmatprep.subr.bf16.mxu0 0
        %3932 = vmatpush2.bf16.msra.mxu0 0
        %3933 = vmatprep.subr.bf16.mxu0 0
        %3934 = vmatpush2.bf16.msra.mxu0 0
        %3935 = vmatprep.subr.bf16.mxu0 0
        %3936 = vmatpush2.bf16.msra.mxu0 0
        %3937 = vmatprep.mubr.bf16.mxu0 0
        %3938 = vmatmul.mubr.bf16.gmra.mxu0 %v3894
        %v3939 = vpop.f32.mrf.mxu0
        %v3940 = vadd.f32 0.0, %v3939
        %v3941 = vpop.f32.mrf.mxu0
        %v3942 = vpop.f32.mrf.mxu0
        %v3943 = vadd.f32 0.0, %v3942
        %v3944 = vpop.f32.mrf.mxu0
        %3945 = vmatprep.mubr.bf16.mxu0 0
        %3946 = vmatmul.mubr.bf16.gmra.mxu0 %v3897
        %v3947 = vpop.f32.mrf.mxu0
        %v3948 = vadd.f32 0.0, %v3947
        %v3949 = vpop.f32.mrf.mxu0
        %v3950 = vpop.f32.mrf.mxu0
        %v3951 = vadd.f32 0.0, %v3950
        %v3952 = vpop.f32.mrf.mxu0
        %3953 = vmatprep.mubr.bf16.mxu0 0
        %3954 = vmatmul.mubr.bf16.gmra.mxu0 %v3900
        %v3955 = vpop.f32.mrf.mxu0
        %v3956 = vadd.f32 0.0, %v3955
        %v3957 = vpop.f32.mrf.mxu0
        %v3958 = vpop.f32.mrf.mxu0
        %v3959 = vadd.f32 0.0, %v3958
        %v3960 = vpop.f32.mrf.mxu0
        %3961 = vmatprep.mubr.bf16.mxu0 0
        %3962 = vmatmul.mubr.bf16.gmra.mxu0 %v3903
        %v3963 = vpop.f32.mrf.mxu0
        %v3964 = vadd.f32 0.0, %v3963
        %v3965 = vpop.f32.mrf.mxu0
        %v3966 = vpop.f32.mrf.mxu0
        %v3967 = vadd.f32 0.0, %v3966
        %v3968 = vpop.f32.mrf.mxu0
        %3969 = vdwg.mxu0
        %v3972 = vunpack.c.l.b16 %v3466
        %v3973 = vunpack.c.l.b16 %v3467
        %v3974 = vpack.c.b16 %v3973, %v3972
        %v3977 = vsel %vm736, %v3468, 0
        %v3980 = vsel %vm736, %v3469, 0
        %v3983 = vsel %vm736, %v3470, 0
        %v3986 = vsel %vm736, %v3471, 0
        %3988 = vmatprep.subr.bf16.mxu0 0
        %3989 = vmatpush1.bf16.msra.mxu0 0
        %3990 = vmatprep.subr.bf16.mxu0 0
        %3991 = vmatpush1.bf16.msra.mxu0 0
        %3992 = vmatprep.subr.bf16.mxu0 0
        %3993 = vmatpush1.bf16.msra.mxu0 0
        %3994 = vmatprep.subr.bf16.mxu0 0
        %3995 = vmatpush1.bf16.msra.mxu0 0
        %3996 = vmatprep.subr.bf16.mxu0 0
        %3997 = vmatpush1.bf16.msra.mxu0 0
        %3998 = vmatprep.subr.bf16.mxu0 0
        %3999 = vmatpush1.bf16.msra.mxu0 0
        %4000 = vmatprep.subr.bf16.mxu0 0
        %4001 = vmatpush1.bf16.msra.mxu0 0
        %4002 = vmatprep.subr.bf16.mxu0 0
        %4003 = vmatpush1.bf16.msra.mxu0 %v3974
        %4004 = vmatprep.subr.bf16.mxu0 0
        %4005 = vmatpush2.bf16.msra.mxu0 0
        %4006 = vmatprep.subr.bf16.mxu0 0
        %4007 = vmatpush2.bf16.msra.mxu0 0
        %4008 = vmatprep.subr.bf16.mxu0 0
        %4009 = vmatpush2.bf16.msra.mxu0 0
        %4010 = vmatprep.subr.bf16.mxu0 0
        %4011 = vmatpush2.bf16.msra.mxu0 0
        %4012 = vmatprep.subr.bf16.mxu0 0
        %4013 = vmatpush2.bf16.msra.mxu0 0
        %4014 = vmatprep.subr.bf16.mxu0 0
        %4015 = vmatpush2.bf16.msra.mxu0 0
        %4016 = vmatprep.subr.bf16.mxu0 0
        %4017 = vmatpush2.bf16.msra.mxu0 0
        %4018 = vmatprep.subr.bf16.mxu0 0
        %4019 = vmatpush2.bf16.msra.mxu0 0
        %4020 = vmatprep.mubr.bf16.mxu0 0
        %4021 = vmatmul.mubr.bf16.gmra.mxu0 %v3977
        %v4022 = vpop.f32.mrf.mxu0
        %v4023 = vadd.f32 %v3940, %v4022
        %v4024 = vpop.f32.mrf.mxu0
        %v4025 = vpop.f32.mrf.mxu0
        %v4026 = vadd.f32 %v3943, %v4025
        %v4027 = vpop.f32.mrf.mxu0
        %4028 = vmatprep.mubr.bf16.mxu0 0
        %4029 = vmatmul.mubr.bf16.gmra.mxu0 %v3980
        %v4030 = vpop.f32.mrf.mxu0
        %v4031 = vadd.f32 %v3948, %v4030
        %v4032 = vpop.f32.mrf.mxu0
        %v4033 = vpop.f32.mrf.mxu0
        %v4034 = vadd.f32 %v3951, %v4033
        %v4035 = vpop.f32.mrf.mxu0
        %4036 = vmatprep.mubr.bf16.mxu0 0
        %4037 = vmatmul.mubr.bf16.gmra.mxu0 %v3983
        %v4038 = vpop.f32.mrf.mxu0
        %v4039 = vadd.f32 %v3956, %v4038
        %v4040 = vpop.f32.mrf.mxu0
        %v4041 = vpop.f32.mrf.mxu0
        %v4042 = vadd.f32 %v3959, %v4041
        %v4043 = vpop.f32.mrf.mxu0
        %4044 = vmatprep.mubr.bf16.mxu0 0
        %4045 = vmatmul.mubr.bf16.gmra.mxu0 %v3986
        %v4046 = vpop.f32.mrf.mxu0
        %v4047 = vadd.f32 %v3964, %v4046
        %v4048 = vpop.f32.mrf.mxu0
        %v4049 = vpop.f32.mrf.mxu0
        %v4050 = vadd.f32 %v3967, %v4049
        %v4051 = vpop.f32.mrf.mxu0
        %4052 = vdwg.mxu0
        %4055 = vrot.lane.b32.xlu0 %v2987, 64
        %v4056 = vpop.permute.xlu0 %4055
        %4057 = vrot.lane.b32.xlu0 %v2990, 64
        %v4058 = vpop.permute.xlu0 %4057
        %v4061 = vsel %vm696, %v2955, %v4056
        %v4062 = vsel %vm696, %v2958, %v4058
        %v4063 = vpack.c.bf16 %v4062, %v4061
        %4064 = vxpose.xlu0.b32.start [1/16] %v3019, 128
        %4065 = vxpose.xlu0.b32.cont [2/16] %v3022, 128
        %4066 = vxpose.xlu0.b32.cont [3/16] 0.0, 128
        %4067 = vxpose.xlu0.b32.cont [4/16] 0.0, 128
        %4068 = vxpose.xlu0.b32.cont [5/16] 0.0, 128
        %4069 = vxpose.xlu0.b32.cont [6/16] 0.0, 128
        %4070 = vxpose.xlu0.b32.cont [7/16] 0.0, 128
        %4071 = vxpose.xlu0.b32.cont [8/16] 0.0, 128
        %4072 = vxpose.xlu0.b32.cont [9/16] 0.0, 128
        %4073 = vxpose.xlu0.b32.cont [10/16] 0.0, 128
        %4074 = vxpose.xlu0.b32.cont [11/16] 0.0, 128
        %4075 = vxpose.xlu0.b32.cont [12/16] 0.0, 128
        %4076 = vxpose.xlu0.b32.cont [13/16] 0.0, 128
        %4077 = vxpose.xlu0.b32.cont [14/16] 0.0, 128
        %4078 = vxpose.xlu0.b32.cont [15/16] 0.0, 128
        %4079 = vxpose.xlu0.b32.end [16/16] 0.0, 128
        %v4080 = vpop.trf.xlu0
        %v4081 = vpop.trf.xlu0
        %v4082 = vpop.trf.xlu0
        %v4083 = vpop.trf.xlu0
        %v4084 = vpop.trf.xlu0
        %v4085 = vpop.trf.xlu0
        %v4086 = vpop.trf.xlu0
        %v4087 = vpop.trf.xlu0
        %v4088 = vpop.trf.xlu0
        %v4089 = vpop.trf.xlu0
        %v4090 = vpop.trf.xlu0
        %v4091 = vpop.trf.xlu0
        %v4092 = vpop.trf.xlu0
        %v4093 = vpop.trf.xlu0
        %v4094 = vpop.trf.xlu0
        %v4095 = vpop.trf.xlu0
        %v4096 = vpack.c.bf16 %v4081, %v4080
        %v4097 = vpack.c.bf16 %v4083, %v4082
        %v4098 = vpack.c.bf16 %v4085, %v4084
        %v4099 = vpack.c.bf16 %v4087, %v4086
        %4100 = vrot.lane.b32.xlu0 %v3065, 96
        %v4101 = vpop.permute.xlu0 %4100
        %4102 = vrot.lane.b32.xlu0 %v3066, 96
        %v4103 = vpop.permute.xlu0 %4102
        %4104 = vrot.lane.b32.xlu0 %v3067, 96
        %v4105 = vpop.permute.xlu0 %4104
        %4106 = vrot.lane.b32.xlu0 %v3068, 96
        %v4107 = vpop.permute.xlu0 %4106
        %v4109 = vsel %vm736, %v4101, 0
        %v4112 = vsel %vm736, %v4103, 0
        %v4115 = vsel %vm736, %v4105, 0
        %v4118 = vsel %vm736, %v4107, 0
        %4120 = vmatprep.subr.bf16.mxu0 0
        %4121 = vmatpush1.bf16.msra.mxu0 0
        %4122 = vmatprep.subr.bf16.mxu0 0
        %4123 = vmatpush1.bf16.msra.mxu0 0
        %4124 = vmatprep.subr.bf16.mxu0 0
        %4125 = vmatpush1.bf16.msra.mxu0 0
        %4126 = vmatprep.subr.bf16.mxu0 0
        %4127 = vmatpush1.bf16.msra.mxu0 0
        %4128 = vmatprep.subr.bf16.mxu0 0
        %4129 = vmatpush1.bf16.msra.mxu0 0
        %4130 = vmatprep.subr.bf16.mxu0 0
        %4131 = vmatpush1.bf16.msra.mxu0 0
        %4132 = vmatprep.subr.bf16.mxu0 0
        %4133 = vmatpush1.bf16.msra.mxu0 0
        %4134 = vmatprep.subr.bf16.mxu0 0
        %4135 = vmatpush1.bf16.msra.mxu0 %v4063
        %4136 = vmatprep.subr.bf16.mxu0 0
        %4137 = vmatpush2.bf16.msra.mxu0 0
        %4138 = vmatprep.subr.bf16.mxu0 0
        %4139 = vmatpush2.bf16.msra.mxu0 0
        %4140 = vmatprep.subr.bf16.mxu0 0
        %4141 = vmatpush2.bf16.msra.mxu0 0
        %4142 = vmatprep.subr.bf16.mxu0 0
        %4143 = vmatpush2.bf16.msra.mxu0 0
        %4144 = vmatprep.subr.bf16.mxu0 0
        %4145 = vmatpush2.bf16.msra.mxu0 0
        %4146 = vmatprep.subr.bf16.mxu0 0
        %4147 = vmatpush2.bf16.msra.mxu0 0
        %4148 = vmatprep.subr.bf16.mxu0 0
        %4149 = vmatpush2.bf16.msra.mxu0 0
        %4150 = vmatprep.subr.bf16.mxu0 0
        %4151 = vmatpush2.bf16.msra.mxu0 0
        %4152 = vmatprep.mubr.bf16.mxu0 0
        %4153 = vmatmul.mubr.bf16.gmra.mxu0 %v4109
        %v4154 = vpop.f32.mrf.mxu0
        %v4155 = vadd.f32 0.0, %v4154
        %v4156 = vpop.f32.mrf.mxu0
        %v4157 = vpop.f32.mrf.mxu0
        %v4158 = vadd.f32 0.0, %v4157
        %v4159 = vpop.f32.mrf.mxu0
        %4160 = vmatprep.mubr.bf16.mxu0 0
        %4161 = vmatmul.mubr.bf16.gmra.mxu0 %v4112
        %v4162 = vpop.f32.mrf.mxu0
        %v4163 = vadd.f32 0.0, %v4162
        %v4164 = vpop.f32.mrf.mxu0
        %v4165 = vpop.f32.mrf.mxu0
        %v4166 = vadd.f32 0.0, %v4165
        %v4167 = vpop.f32.mrf.mxu0
        %4168 = vmatprep.mubr.bf16.mxu0 0
        %4169 = vmatmul.mubr.bf16.gmra.mxu0 %v4115
        %v4170 = vpop.f32.mrf.mxu0
        %v4171 = vadd.f32 0.0, %v4170
        %v4172 = vpop.f32.mrf.mxu0
        %v4173 = vpop.f32.mrf.mxu0
        %v4174 = vadd.f32 0.0, %v4173
        %v4175 = vpop.f32.mrf.mxu0
        %4176 = vmatprep.mubr.bf16.mxu0 0
        %4177 = vmatmul.mubr.bf16.gmra.mxu0 %v4118
        %v4178 = vpop.f32.mrf.mxu0
        %v4179 = vadd.f32 0.0, %v4178
        %v4180 = vpop.f32.mrf.mxu0
        %v4181 = vpop.f32.mrf.mxu0
        %v4182 = vadd.f32 0.0, %v4181
        %v4183 = vpop.f32.mrf.mxu0
        %4184 = vdwg.mxu0
        %v4185 = vmul.f32 %v4155, %v4155
        %v4186 = vmul.f32 %v4158, %v4158
        %v4187 = vmul.f32 %v4163, %v4163
        %v4188 = vmul.f32 %v4166, %v4166
        %v4189 = vmul.f32 %v4171, %v4171
        %v4190 = vmul.f32 %v4174, %v4174
        %v4191 = vmul.f32 %v4179, %v4179
        %v4192 = vmul.f32 %v4182, %v4182
        %4201 = vrot.lane.b32.xlu0 %v4185, 64
        %v4202 = vpop.permute.xlu0 %4201
        %4203 = vrot.lane.b32.xlu0 %v4186, 64
        %v4204 = vpop.permute.xlu0 %4203
        %4205 = vrot.lane.b32.xlu0 %v4187, 64
        %v4206 = vpop.permute.xlu0 %4205
        %4207 = vrot.lane.b32.xlu0 %v4188, 64
        %v4208 = vpop.permute.xlu0 %4207
        %4209 = vrot.lane.b32.xlu0 %v4189, 64
        %v4210 = vpop.permute.xlu0 %4209
        %4211 = vrot.lane.b32.xlu0 %v4190, 64
        %v4212 = vpop.permute.xlu0 %4211
        %4213 = vrot.lane.b32.xlu0 %v4191, 64
        %v4214 = vpop.permute.xlu0 %4213
        %4215 = vrot.lane.b32.xlu0 %v4192, 64
        %v4216 = vpop.permute.xlu0 %4215
        %v4225 = vadd.f32 %v4185, %v4202
        %v4226 = vadd.f32 %v4186, %v4204
        %v4227 = vadd.f32 %v4187, %v4206
        %v4228 = vadd.f32 %v4188, %v4208
        %v4229 = vadd.f32 %v4189, %v4210
        %v4230 = vadd.f32 %v4190, %v4212
        %v4231 = vadd.f32 %v4191, %v4214
        %v4232 = vadd.f32 %v4192, %v4216
        %v4233 = vrsqrt.pop %v4225
        %v4234 = vmul.f32 %v4225, %v4233
        %vm4235 = vcmp.eq.f32.partialorder %v4225, inf
        %v4236 = vsel %vm4235, %v4225, %v4234
        %vm4237 = vcmp.eq.f32.partialorder %v4225, 0.0
        %v4238 = vand.u32 %v4225, 2147483648
        %v4239 = vsel %vm4237, %v4238, %v4236
        %v4240 = vrsqrt.pop %v4226
        %v4241 = vmul.f32 %v4226, %v4240
        %vm4242 = vcmp.eq.f32.partialorder %v4226, inf
        %v4243 = vsel %vm4242, %v4226, %v4241
        %vm4244 = vcmp.eq.f32.partialorder %v4226, 0.0
        %v4245 = vand.u32 %v4226, 2147483648
        %v4246 = vsel %vm4244, %v4245, %v4243
        %v4247 = vrsqrt.pop %v4227
        %v4248 = vmul.f32 %v4227, %v4247
        %vm4249 = vcmp.eq.f32.partialorder %v4227, inf
        %v4250 = vsel %vm4249, %v4227, %v4248
        %vm4251 = vcmp.eq.f32.partialorder %v4227, 0.0
        %v4252 = vand.u32 %v4227, 2147483648
        %v4253 = vsel %vm4251, %v4252, %v4250
        %v4254 = vrsqrt.pop %v4228
        %v4255 = vmul.f32 %v4228, %v4254
        %vm4256 = vcmp.eq.f32.partialorder %v4228, inf
        %v4257 = vsel %vm4256, %v4228, %v4255
        %vm4258 = vcmp.eq.f32.partialorder %v4228, 0.0
        %v4259 = vand.u32 %v4228, 2147483648
        %v4260 = vsel %vm4258, %v4259, %v4257
        %v4261 = vrsqrt.pop %v4229
        %v4262 = vmul.f32 %v4229, %v4261
        %vm4263 = vcmp.eq.f32.partialorder %v4229, inf
        %v4264 = vsel %vm4263, %v4229, %v4262
        %vm4265 = vcmp.eq.f32.partialorder %v4229, 0.0
        %v4266 = vand.u32 %v4229, 2147483648
        %v4267 = vsel %vm4265, %v4266, %v4264
        %v4268 = vrsqrt.pop %v4230
        %v4269 = vmul.f32 %v4230, %v4268
        %vm4270 = vcmp.eq.f32.partialorder %v4230, inf
        %v4271 = vsel %vm4270, %v4230, %v4269
        %vm4272 = vcmp.eq.f32.partialorder %v4230, 0.0
        %v4273 = vand.u32 %v4230, 2147483648
        %v4274 = vsel %vm4272, %v4273, %v4271
        %v4275 = vrsqrt.pop %v4231
        %v4276 = vmul.f32 %v4231, %v4275
        %vm4277 = vcmp.eq.f32.partialorder %v4231, inf
        %v4278 = vsel %vm4277, %v4231, %v4276
        %vm4279 = vcmp.eq.f32.partialorder %v4231, 0.0
        %v4280 = vand.u32 %v4231, 2147483648
        %v4281 = vsel %vm4279, %v4280, %v4278
        %v4282 = vrsqrt.pop %v4232
        %v4283 = vmul.f32 %v4232, %v4282
        %vm4284 = vcmp.eq.f32.partialorder %v4232, inf
        %v4285 = vsel %vm4284, %v4232, %v4283
        %vm4286 = vcmp.eq.f32.partialorder %v4232, 0.0
        %v4287 = vand.u32 %v4232, 2147483648
        %v4288 = vsel %vm4286, %v4287, %v4285
        %v4289 = vsel %vm696, %v4239, -inf
        %4290 = vmax.xlane.f32.xlu0 %v4289
        %v4291 = vpop.xlane.xlu0 %4290
        %v4292 = vsel %vm696, %v4246, -inf
        %4293 = vmax.xlane.f32.xlu0 %v4292
        %v4294 = vpop.xlane.xlu0 %4293
        %v4295 = vsel %vm696, %v4253, -inf
        %4296 = vmax.xlane.f32.xlu0 %v4295
        %v4297 = vpop.xlane.xlu0 %4296
        %v4298 = vsel %vm696, %v4260, -inf
        %4299 = vmax.xlane.f32.xlu0 %v4298
        %v4300 = vpop.xlane.xlu0 %4299
        %v4301 = vsel %vm696, %v4267, -inf
        %4302 = vmax.xlane.f32.xlu0 %v4301
        %v4303 = vpop.xlane.xlu0 %4302
        %v4304 = vsel %vm696, %v4274, -inf
        %4305 = vmax.xlane.f32.xlu0 %v4304
        %v4306 = vpop.xlane.xlu0 %4305
        %v4307 = vsel %vm696, %v4281, -inf
        %4308 = vmax.xlane.f32.xlu0 %v4307
        %v4309 = vpop.xlane.xlu0 %4308
        %v4310 = vsel %vm696, %v4288, -inf
        %4311 = vmax.xlane.f32.xlu0 %v4310
        %v4312 = vpop.xlane.xlu0 %4311
        %v4313 = vsub.f32 %v4239, %v4291
        %v4314 = vsub.f32 %v4246, %v4294
        %v4315 = vsub.f32 %v4253, %v4297
        %v4316 = vsub.f32 %v4260, %v4300
        %v4317 = vsub.f32 %v4267, %v4303
        %v4318 = vsub.f32 %v4274, %v4306
        %v4319 = vsub.f32 %v4281, %v4309
        %v4320 = vsub.f32 %v4288, %v4312
        %v4321 = vmul.f32 %v4313, 1.442695
        %v4322 = vpow.pop %v4321
        %v4323 = vmul.f32 %v4314, 1.442695
        %v4324 = vpow.pop %v4323
        %v4325 = vmul.f32 %v4315, 1.442695
        %v4326 = vpow.pop %v4325
        %v4327 = vmul.f32 %v4316, 1.442695
        %v4328 = vpow.pop %v4327
        %v4329 = vmul.f32 %v4317, 1.442695
        %v4330 = vpow.pop %v4329
        %v4331 = vmul.f32 %v4318, 1.442695
        %v4332 = vpow.pop %v4331
        %v4333 = vmul.f32 %v4319, 1.442695
        %v4334 = vpow.pop %v4333
        %v4335 = vmul.f32 %v4320, 1.442695
        %v4336 = vpow.pop %v4335
        %v4337 = vsel %vm696, %v4322, 0.0
        %4338 = vadd.xlane.f32.xlu0 %v4337
        %v4339 = vpop.xlane.xlu0 %4338
        %v4340 = vsel %vm696, %v4324, 0.0
        %4341 = vadd.xlane.f32.xlu0 %v4340
        %v4342 = vpop.xlane.xlu0 %4341
        %v4343 = vsel %vm696, %v4326, 0.0
        %4344 = vadd.xlane.f32.xlu0 %v4343
        %v4345 = vpop.xlane.xlu0 %4344
        %v4346 = vsel %vm696, %v4328, 0.0
        %4347 = vadd.xlane.f32.xlu0 %v4346
        %v4348 = vpop.xlane.xlu0 %4347
        %v4349 = vsel %vm696, %v4330, 0.0
        %4350 = vadd.xlane.f32.xlu0 %v4349
        %v4351 = vpop.xlane.xlu0 %4350
        %v4352 = vsel %vm696, %v4332, 0.0
        %4353 = vadd.xlane.f32.xlu0 %v4352
        %v4354 = vpop.xlane.xlu0 %4353
        %v4355 = vsel %vm696, %v4334, 0.0
        %4356 = vadd.xlane.f32.xlu0 %v4355
        %v4357 = vpop.xlane.xlu0 %4356
        %v4358 = vsel %vm696, %v4336, 0.0
        %4359 = vadd.xlane.f32.xlu0 %v4358
        %v4360 = vpop.xlane.xlu0 %4359
        %v4361 = vrcp.pop %v4339
        %v4362 = vrcp.pop %v4342
        %v4363 = vrcp.pop %v4345
        %v4364 = vrcp.pop %v4348
        %v4365 = vrcp.pop %v4351
        %v4366 = vrcp.pop %v4354
        %v4367 = vrcp.pop %v4357
        %v4368 = vrcp.pop %v4360
        %v4369 = vmul.f32 %v4322, %v4361
        %v4370 = vmul.f32 %v4324, %v4362
        %v4371 = vmul.f32 %v4326, %v4363
        %v4372 = vmul.f32 %v4328, %v4364
        %v4373 = vmul.f32 %v4330, %v4365
        %v4374 = vmul.f32 %v4332, %v4366
        %v4375 = vmul.f32 %v4334, %v4367
        %v4376 = vmul.f32 %v4336, %v4368
        %v4377 = vpack.c.bf16 %v4370, %v4369
        %v4378 = vpack.c.bf16 %v4372, %v4371
        %v4379 = vpack.c.bf16 %v4374, %v4373
        %v4380 = vpack.c.bf16 %v4376, %v4375
        %v4382 = vsel %vm696, %v4377, 0
        %v4385 = vsel %vm696, %v4378, 0
        %v4388 = vsel %vm696, %v4379, 0
        %v4391 = vsel %vm696, %v4380, 0
        %4393 = vmatprep.subr.bf16.mxu0 0
        %4394 = vmatpush1.bf16.msra.mxu0 0
        %4395 = vmatprep.subr.bf16.mxu0 0
        %4396 = vmatpush1.bf16.msra.mxu0 0
        %4397 = vmatprep.subr.bf16.mxu0 0
        %4398 = vmatpush1.bf16.msra.mxu0 0
        %4399 = vmatprep.subr.bf16.mxu0 0
        %4400 = vmatpush1.bf16.msra.mxu0 0
        %4401 = vmatprep.subr.bf16.mxu0 0
        %4402 = vmatpush1.bf16.msra.mxu0 %v4099
        %4403 = vmatprep.subr.bf16.mxu0 0
        %4404 = vmatpush1.bf16.msra.mxu0 %v4098
        %4405 = vmatprep.subr.bf16.mxu0 0
        %4406 = vmatpush1.bf16.msra.mxu0 %v4097
        %4407 = vmatprep.subr.bf16.mxu0 0
        %4408 = vmatpush1.bf16.msra.mxu0 %v4096
        %4409 = vmatprep.subr.bf16.mxu0 0
        %4410 = vmatpush2.bf16.msra.mxu0 0
        %4411 = vmatprep.subr.bf16.mxu0 0
        %4412 = vmatpush2.bf16.msra.mxu0 0
        %4413 = vmatprep.subr.bf16.mxu0 0
        %4414 = vmatpush2.bf16.msra.mxu0 0
        %4415 = vmatprep.subr.bf16.mxu0 0
        %4416 = vmatpush2.bf16.msra.mxu0 0
        %4417 = vmatprep.subr.bf16.mxu0 0
        %4418 = vmatpush2.bf16.msra.mxu0 0
        %4419 = vmatprep.subr.bf16.mxu0 0
        %4420 = vmatpush2.bf16.msra.mxu0 0
        %4421 = vmatprep.subr.bf16.mxu0 0
        %4422 = vmatpush2.bf16.msra.mxu0 0
        %4423 = vmatprep.subr.bf16.mxu0 0
        %4424 = vmatpush2.bf16.msra.mxu0 0
        %4425 = vmatprep.mubr.bf16.mxu0 0
        %4426 = vmatmul.mubr.bf16.gmra.mxu0 %v4382
        %v4427 = vpop.f32.mrf.mxu0
        %v4428 = vadd.f32 0.0, %v4427
        %v4429 = vpop.f32.mrf.mxu0
        %v4430 = vpop.f32.mrf.mxu0
        %v4431 = vadd.f32 0.0, %v4430
        %v4432 = vpop.f32.mrf.mxu0
        %4433 = vmatprep.mubr.bf16.mxu0 0
        %4434 = vmatmul.mubr.bf16.gmra.mxu0 %v4385
        %v4435 = vpop.f32.mrf.mxu0
        %v4436 = vadd.f32 0.0, %v4435
        %v4437 = vpop.f32.mrf.mxu0
        %v4438 = vpop.f32.mrf.mxu0
        %v4439 = vadd.f32 0.0, %v4438
        %v4440 = vpop.f32.mrf.mxu0
        %4441 = vmatprep.mubr.bf16.mxu0 0
        %4442 = vmatmul.mubr.bf16.gmra.mxu0 %v4388
        %v4443 = vpop.f32.mrf.mxu0
        %v4444 = vadd.f32 0.0, %v4443
        %v4445 = vpop.f32.mrf.mxu0
        %v4446 = vpop.f32.mrf.mxu0
        %v4447 = vadd.f32 0.0, %v4446
        %v4448 = vpop.f32.mrf.mxu0
        %4449 = vmatprep.mubr.bf16.mxu0 0
        %4450 = vmatmul.mubr.bf16.gmra.mxu0 %v4391
        %v4451 = vpop.f32.mrf.mxu0
        %v4452 = vadd.f32 0.0, %v4451
        %v4453 = vpop.f32.mrf.mxu0
        %v4454 = vpop.f32.mrf.mxu0
        %v4455 = vadd.f32 0.0, %v4454
        %v4456 = vpop.f32.mrf.mxu0
        %4457 = vdwg.mxu0
        %v4458 = vld [vmem:[%s3 + $0x30] sm:$0xf]
        %v4459 = vld [vmem:[%s3 + $0x34] sm:$0xf]
        %v4460 = vpack.c.bf16 %v4431, %v4428
        %v4461 = vpack.c.bf16 %v4439, %v4436
        %v4462 = vpack.c.bf16 %v4447, %v4444
        %v4463 = vpack.c.bf16 %v4455, %v4452
        %v4466 = vunpack.c.l.b16 %v4458
        %v4467 = vunpack.c.l.b16 %v4459
        %v4468 = vpack.c.b16 %v4467, %v4466
        %v4471 = vsel %vm736, %v4460, 0
        %v4474 = vsel %vm736, %v4461, 0
        %v4477 = vsel %vm736, %v4462, 0
        %v4480 = vsel %vm736, %v4463, 0
        %4482 = vmatprep.subr.bf16.mxu0 0
        %4483 = vmatpush1.bf16.msra.mxu0 0
        %4484 = vmatprep.subr.bf16.mxu0 0
        %4485 = vmatpush1.bf16.msra.mxu0 0
        %4486 = vmatprep.subr.bf16.mxu0 0
        %4487 = vmatpush1.bf16.msra.mxu0 0
        %4488 = vmatprep.subr.bf16.mxu0 0
        %4489 = vmatpush1.bf16.msra.mxu0 0
        %4490 = vmatprep.subr.bf16.mxu0 0
        %4491 = vmatpush1.bf16.msra.mxu0 0
        %4492 = vmatprep.subr.bf16.mxu0 0
        %4493 = vmatpush1.bf16.msra.mxu0 0
        %4494 = vmatprep.subr.bf16.mxu0 0
        %4495 = vmatpush1.bf16.msra.mxu0 0
        %4496 = vmatprep.subr.bf16.mxu0 0
        %4497 = vmatpush1.bf16.msra.mxu0 %v4468
        %4498 = vmatprep.subr.bf16.mxu0 0
        %4499 = vmatpush2.bf16.msra.mxu0 0
        %4500 = vmatprep.subr.bf16.mxu0 0
        %4501 = vmatpush2.bf16.msra.mxu0 0
        %4502 = vmatprep.subr.bf16.mxu0 0
        %4503 = vmatpush2.bf16.msra.mxu0 0
        %4504 = vmatprep.subr.bf16.mxu0 0
        %4505 = vmatpush2.bf16.msra.mxu0 0
        %4506 = vmatprep.subr.bf16.mxu0 0
        %4507 = vmatpush2.bf16.msra.mxu0 0
        %4508 = vmatprep.subr.bf16.mxu0 0
        %4509 = vmatpush2.bf16.msra.mxu0 0
        %4510 = vmatprep.subr.bf16.mxu0 0
        %4511 = vmatpush2.bf16.msra.mxu0 0
        %4512 = vmatprep.subr.bf16.mxu0 0
        %4513 = vmatpush2.bf16.msra.mxu0 0
        %4514 = vmatprep.mubr.bf16.mxu0 0
        %4515 = vmatmul.mubr.bf16.gmra.mxu0 %v4471
        %v4516 = vpop.f32.mrf.mxu0
        %v4517 = vadd.f32 0.0, %v4516
        %v4518 = vpop.f32.mrf.mxu0
        %v4519 = vpop.f32.mrf.mxu0
        %v4520 = vadd.f32 0.0, %v4519
        %v4521 = vpop.f32.mrf.mxu0
        %4522 = vmatprep.mubr.bf16.mxu0 0
        %4523 = vmatmul.mubr.bf16.gmra.mxu0 %v4474
        %v4524 = vpop.f32.mrf.mxu0
        %v4525 = vadd.f32 0.0, %v4524
        %v4526 = vpop.f32.mrf.mxu0
        %v4527 = vpop.f32.mrf.mxu0
        %v4528 = vadd.f32 0.0, %v4527
        %v4529 = vpop.f32.mrf.mxu0
        %4530 = vmatprep.mubr.bf16.mxu0 0
        %4531 = vmatmul.mubr.bf16.gmra.mxu0 %v4477
        %v4532 = vpop.f32.mrf.mxu0
        %v4533 = vadd.f32 0.0, %v4532
        %v4534 = vpop.f32.mrf.mxu0
        %v4535 = vpop.f32.mrf.mxu0
        %v4536 = vadd.f32 0.0, %v4535
        %v4537 = vpop.f32.mrf.mxu0
        %4538 = vmatprep.mubr.bf16.mxu0 0
        %4539 = vmatmul.mubr.bf16.gmra.mxu0 %v4480
        %v4540 = vpop.f32.mrf.mxu0
        %v4541 = vadd.f32 0.0, %v4540
        %v4542 = vpop.f32.mrf.mxu0
        %v4543 = vpop.f32.mrf.mxu0
        %v4544 = vadd.f32 0.0, %v4543
        %v4545 = vpop.f32.mrf.mxu0
        %4546 = vdwg.mxu0
        %v4547 = vadd.f32 %v4023, %v4517
        %v4548 = vadd.f32 %v4026, %v4520
        %v4549 = vadd.f32 %v4031, %v4525
        %v4550 = vadd.f32 %v4034, %v4528
        %v4551 = vadd.f32 %v4039, %v4533
        %v4552 = vadd.f32 %v4042, %v4536
        %v4553 = vadd.f32 %v4047, %v4541
        %v4554 = vadd.f32 %v4050, %v4544
        %4557 = vrot.lane.b32.xlu0 %v2995, 64
        %v4558 = vpop.permute.xlu0 %4557
        %4559 = vrot.lane.b32.xlu0 %v2998, 64
        %v4560 = vpop.permute.xlu0 %4559
        %v4563 = vsel %vm696, %v2963, %v4558
        %v4564 = vsel %vm696, %v2966, %v4560
        %v4565 = vpack.c.bf16 %v4564, %v4563
        %4566 = vxpose.xlu0.b32.start [1/16] %v3027, 128
        %4567 = vxpose.xlu0.b32.cont [2/16] %v3030, 128
        %4568 = vxpose.xlu0.b32.cont [3/16] 0.0, 128
        %4569 = vxpose.xlu0.b32.cont [4/16] 0.0, 128
        %4570 = vxpose.xlu0.b32.cont [5/16] 0.0, 128
        %4571 = vxpose.xlu0.b32.cont [6/16] 0.0, 128
        %4572 = vxpose.xlu0.b32.cont [7/16] 0.0, 128
        %4573 = vxpose.xlu0.b32.cont [8/16] 0.0, 128
        %4574 = vxpose.xlu0.b32.cont [9/16] 0.0, 128
        %4575 = vxpose.xlu0.b32.cont [10/16] 0.0, 128
        %4576 = vxpose.xlu0.b32.cont [11/16] 0.0, 128
        %4577 = vxpose.xlu0.b32.cont [12/16] 0.0, 128
        %4578 = vxpose.xlu0.b32.cont [13/16] 0.0, 128
        %4579 = vxpose.xlu0.b32.cont [14/16] 0.0, 128
        %4580 = vxpose.xlu0.b32.cont [15/16] 0.0, 128
        %4581 = vxpose.xlu0.b32.end [16/16] 0.0, 128
        %v4582 = vpop.trf.xlu0
        %v4583 = vpop.trf.xlu0
        %v4584 = vpop.trf.xlu0
        %v4585 = vpop.trf.xlu0
        %v4586 = vpop.trf.xlu0
        %v4587 = vpop.trf.xlu0
        %v4588 = vpop.trf.xlu0
        %v4589 = vpop.trf.xlu0
        %v4590 = vpop.trf.xlu0
        %v4591 = vpop.trf.xlu0
        %v4592 = vpop.trf.xlu0
        %v4593 = vpop.trf.xlu0
        %v4594 = vpop.trf.xlu0
        %v4595 = vpop.trf.xlu0
        %v4596 = vpop.trf.xlu0
        %v4597 = vpop.trf.xlu0
        %v4598 = vpack.c.bf16 %v4583, %v4582
        %v4599 = vpack.c.bf16 %v4585, %v4584
        %v4600 = vpack.c.bf16 %v4587, %v4586
        %v4601 = vpack.c.bf16 %v4589, %v4588
        %4602 = vrot.lane.b32.xlu0 %v3065, 80
        %v4603 = vpop.permute.xlu0 %4602
        %4604 = vrot.lane.b32.xlu0 %v3066, 80
        %v4605 = vpop.permute.xlu0 %4604
        %4606 = vrot.lane.b32.xlu0 %v3067, 80
        %v4607 = vpop.permute.xlu0 %4606
        %4608 = vrot.lane.b32.xlu0 %v3068, 80
        %v4609 = vpop.permute.xlu0 %4608
        %v4611 = vsel %vm736, %v4603, 0
        %v4614 = vsel %vm736, %v4605, 0
        %v4617 = vsel %vm736, %v4607, 0
        %v4620 = vsel %vm736, %v4609, 0
        %4622 = vmatprep.subr.bf16.mxu0 0
        %4623 = vmatpush1.bf16.msra.mxu0 0
        %4624 = vmatprep.subr.bf16.mxu0 0
        %4625 = vmatpush1.bf16.msra.mxu0 0
        %4626 = vmatprep.subr.bf16.mxu0 0
        %4627 = vmatpush1.bf16.msra.mxu0 0
        %4628 = vmatprep.subr.bf16.mxu0 0
        %4629 = vmatpush1.bf16.msra.mxu0 0
        %4630 = vmatprep.subr.bf16.mxu0 0
        %4631 = vmatpush1.bf16.msra.mxu0 0
        %4632 = vmatprep.subr.bf16.mxu0 0
        %4633 = vmatpush1.bf16.msra.mxu0 0
        %4634 = vmatprep.subr.bf16.mxu0 0
        %4635 = vmatpush1.bf16.msra.mxu0 0
        %4636 = vmatprep.subr.bf16.mxu0 0
        %4637 = vmatpush1.bf16.msra.mxu0 %v4565
        %4638 = vmatprep.subr.bf16.mxu0 0
        %4639 = vmatpush2.bf16.msra.mxu0 0
        %4640 = vmatprep.subr.bf16.mxu0 0
        %4641 = vmatpush2.bf16.msra.mxu0 0
        %4642 = vmatprep.subr.bf16.mxu0 0
        %4643 = vmatpush2.bf16.msra.mxu0 0
        %4644 = vmatprep.subr.bf16.mxu0 0
        %4645 = vmatpush2.bf16.msra.mxu0 0
        %4646 = vmatprep.subr.bf16.mxu0 0
        %4647 = vmatpush2.bf16.msra.mxu0 0
        %4648 = vmatprep.subr.bf16.mxu0 0
        %4649 = vmatpush2.bf16.msra.mxu0 0
        %4650 = vmatprep.subr.bf16.mxu0 0
        %4651 = vmatpush2.bf16.msra.mxu0 0
        %4652 = vmatprep.subr.bf16.mxu0 0
        %4653 = vmatpush2.bf16.msra.mxu0 0
        %4654 = vmatprep.mubr.bf16.mxu0 0
        %4655 = vmatmul.mubr.bf16.gmra.mxu0 %v4611
        %v4656 = vpop.f32.mrf.mxu0
        %v4657 = vadd.f32 0.0, %v4656
        %v4658 = vpop.f32.mrf.mxu0
        %v4659 = vpop.f32.mrf.mxu0
        %v4660 = vadd.f32 0.0, %v4659
        %v4661 = vpop.f32.mrf.mxu0
        %4662 = vmatprep.mubr.bf16.mxu0 0
        %4663 = vmatmul.mubr.bf16.gmra.mxu0 %v4614
        %v4664 = vpop.f32.mrf.mxu0
        %v4665 = vadd.f32 0.0, %v4664
        %v4666 = vpop.f32.mrf.mxu0
        %v4667 = vpop.f32.mrf.mxu0
        %v4668 = vadd.f32 0.0, %v4667
        %v4669 = vpop.f32.mrf.mxu0
        %4670 = vmatprep.mubr.bf16.mxu0 0
        %4671 = vmatmul.mubr.bf16.gmra.mxu0 %v4617
        %v4672 = vpop.f32.mrf.mxu0
        %v4673 = vadd.f32 0.0, %v4672
        %v4674 = vpop.f32.mrf.mxu0
        %v4675 = vpop.f32.mrf.mxu0
        %v4676 = vadd.f32 0.0, %v4675
        %v4677 = vpop.f32.mrf.mxu0
        %4678 = vmatprep.mubr.bf16.mxu0 0
        %4679 = vmatmul.mubr.bf16.gmra.mxu0 %v4620
        %v4680 = vpop.f32.mrf.mxu0
        %v4681 = vadd.f32 0.0, %v4680
        %v4682 = vpop.f32.mrf.mxu0
        %v4683 = vpop.f32.mrf.mxu0
        %v4684 = vadd.f32 0.0, %v4683
        %v4685 = vpop.f32.mrf.mxu0
        %4686 = vdwg.mxu0
        %v4687 = vmul.f32 %v4657, %v4657
        %v4688 = vmul.f32 %v4660, %v4660
        %v4689 = vmul.f32 %v4665, %v4665
        %v4690 = vmul.f32 %v4668, %v4668
        %v4691 = vmul.f32 %v4673, %v4673
        %v4692 = vmul.f32 %v4676, %v4676
        %v4693 = vmul.f32 %v4681, %v4681
        %v4694 = vmul.f32 %v4684, %v4684
        %4703 = vrot.lane.b32.xlu0 %v4687, 64
        %v4704 = vpop.permute.xlu0 %4703
        %4705 = vrot.lane.b32.xlu0 %v4688, 64
        %v4706 = vpop.permute.xlu0 %4705
        %4707 = vrot.lane.b32.xlu0 %v4689, 64
        %v4708 = vpop.permute.xlu0 %4707
        %4709 = vrot.lane.b32.xlu0 %v4690, 64
        %v4710 = vpop.permute.xlu0 %4709
        %4711 = vrot.lane.b32.xlu0 %v4691, 64
        %v4712 = vpop.permute.xlu0 %4711
        %4713 = vrot.lane.b32.xlu0 %v4692, 64
        %v4714 = vpop.permute.xlu0 %4713
        %4715 = vrot.lane.b32.xlu0 %v4693, 64
        %v4716 = vpop.permute.xlu0 %4715
        %4717 = vrot.lane.b32.xlu0 %v4694, 64
        %v4718 = vpop.permute.xlu0 %4717
        %v4727 = vadd.f32 %v4687, %v4704
        %v4728 = vadd.f32 %v4688, %v4706
        %v4729 = vadd.f32 %v4689, %v4708
        %v4730 = vadd.f32 %v4690, %v4710
        %v4731 = vadd.f32 %v4691, %v4712
        %v4732 = vadd.f32 %v4692, %v4714
        %v4733 = vadd.f32 %v4693, %v4716
        %v4734 = vadd.f32 %v4694, %v4718
        %v4735 = vrsqrt.pop %v4727
        %v4736 = vmul.f32 %v4727, %v4735
        %vm4737 = vcmp.eq.f32.partialorder %v4727, inf
        %v4738 = vsel %vm4737, %v4727, %v4736
        %vm4739 = vcmp.eq.f32.partialorder %v4727, 0.0
        %v4740 = vand.u32 %v4727, 2147483648
        %v4741 = vsel %vm4739, %v4740, %v4738
        %v4742 = vrsqrt.pop %v4728
        %v4743 = vmul.f32 %v4728, %v4742
        %vm4744 = vcmp.eq.f32.partialorder %v4728, inf
        %v4745 = vsel %vm4744, %v4728, %v4743
        %vm4746 = vcmp.eq.f32.partialorder %v4728, 0.0
        %v4747 = vand.u32 %v4728, 2147483648
        %v4748 = vsel %vm4746, %v4747, %v4745
        %v4749 = vrsqrt.pop %v4729
        %v4750 = vmul.f32 %v4729, %v4749
        %vm4751 = vcmp.eq.f32.partialorder %v4729, inf
        %v4752 = vsel %vm4751, %v4729, %v4750
        %vm4753 = vcmp.eq.f32.partialorder %v4729, 0.0
        %v4754 = vand.u32 %v4729, 2147483648
        %v4755 = vsel %vm4753, %v4754, %v4752
        %v4756 = vrsqrt.pop %v4730
        %v4757 = vmul.f32 %v4730, %v4756
        %vm4758 = vcmp.eq.f32.partialorder %v4730, inf
        %v4759 = vsel %vm4758, %v4730, %v4757
        %vm4760 = vcmp.eq.f32.partialorder %v4730, 0.0
        %v4761 = vand.u32 %v4730, 2147483648
        %v4762 = vsel %vm4760, %v4761, %v4759
        %v4763 = vrsqrt.pop %v4731
        %v4764 = vmul.f32 %v4731, %v4763
        %vm4765 = vcmp.eq.f32.partialorder %v4731, inf
        %v4766 = vsel %vm4765, %v4731, %v4764
        %vm4767 = vcmp.eq.f32.partialorder %v4731, 0.0
        %v4768 = vand.u32 %v4731, 2147483648
        %v4769 = vsel %vm4767, %v4768, %v4766
        %v4770 = vrsqrt.pop %v4732
        %v4771 = vmul.f32 %v4732, %v4770
        %vm4772 = vcmp.eq.f32.partialorder %v4732, inf
        %v4773 = vsel %vm4772, %v4732, %v4771
        %vm4774 = vcmp.eq.f32.partialorder %v4732, 0.0
        %v4775 = vand.u32 %v4732, 2147483648
        %v4776 = vsel %vm4774, %v4775, %v4773
        %v4777 = vrsqrt.pop %v4733
        %v4778 = vmul.f32 %v4733, %v4777
        %vm4779 = vcmp.eq.f32.partialorder %v4733, inf
        %v4780 = vsel %vm4779, %v4733, %v4778
        %vm4781 = vcmp.eq.f32.partialorder %v4733, 0.0
        %v4782 = vand.u32 %v4733, 2147483648
        %v4783 = vsel %vm4781, %v4782, %v4780
        %v4784 = vrsqrt.pop %v4734
        %v4785 = vmul.f32 %v4734, %v4784
        %vm4786 = vcmp.eq.f32.partialorder %v4734, inf
        %v4787 = vsel %vm4786, %v4734, %v4785
        %vm4788 = vcmp.eq.f32.partialorder %v4734, 0.0
        %v4789 = vand.u32 %v4734, 2147483648
        %v4790 = vsel %vm4788, %v4789, %v4787
        %v4791 = vsel %vm696, %v4741, -inf
        %4792 = vmax.xlane.f32.xlu0 %v4791
        %v4793 = vpop.xlane.xlu0 %4792
        %v4794 = vsel %vm696, %v4748, -inf
        %4795 = vmax.xlane.f32.xlu0 %v4794
        %v4796 = vpop.xlane.xlu0 %4795
        %v4797 = vsel %vm696, %v4755, -inf
        %4798 = vmax.xlane.f32.xlu0 %v4797
        %v4799 = vpop.xlane.xlu0 %4798
        %v4800 = vsel %vm696, %v4762, -inf
        %4801 = vmax.xlane.f32.xlu0 %v4800
        %v4802 = vpop.xlane.xlu0 %4801
        %v4803 = vsel %vm696, %v4769, -inf
        %4804 = vmax.xlane.f32.xlu0 %v4803
        %v4805 = vpop.xlane.xlu0 %4804
        %v4806 = vsel %vm696, %v4776, -inf
        %4807 = vmax.xlane.f32.xlu0 %v4806
        %v4808 = vpop.xlane.xlu0 %4807
        %v4809 = vsel %vm696, %v4783, -inf
        %4810 = vmax.xlane.f32.xlu0 %v4809
        %v4811 = vpop.xlane.xlu0 %4810
        %v4812 = vsel %vm696, %v4790, -inf
        %4813 = vmax.xlane.f32.xlu0 %v4812
        %v4814 = vpop.xlane.xlu0 %4813
        %v4815 = vsub.f32 %v4741, %v4793
        %v4816 = vsub.f32 %v4748, %v4796
        %v4817 = vsub.f32 %v4755, %v4799
        %v4818 = vsub.f32 %v4762, %v4802
        %v4819 = vsub.f32 %v4769, %v4805
        %v4820 = vsub.f32 %v4776, %v4808
        %v4821 = vsub.f32 %v4783, %v4811
        %v4822 = vsub.f32 %v4790, %v4814
        %v4823 = vmul.f32 %v4815, 1.442695
        %v4824 = vpow.pop %v4823
        %v4825 = vmul.f32 %v4816, 1.442695
        %v4826 = vpow.pop %v4825
        %v4827 = vmul.f32 %v4817, 1.442695
        %v4828 = vpow.pop %v4827
        %v4829 = vmul.f32 %v4818, 1.442695
        %v4830 = vpow.pop %v4829
        %v4831 = vmul.f32 %v4819, 1.442695
        %v4832 = vpow.pop %v4831
        %v4833 = vmul.f32 %v4820, 1.442695
        %v4834 = vpow.pop %v4833
        %v4835 = vmul.f32 %v4821, 1.442695
        %v4836 = vpow.pop %v4835
        %v4837 = vmul.f32 %v4822, 1.442695
        %v4838 = vpow.pop %v4837
        %v4839 = vsel %vm696, %v4824, 0.0
        %4840 = vadd.xlane.f32.xlu0 %v4839
        %v4841 = vpop.xlane.xlu0 %4840
        %v4842 = vsel %vm696, %v4826, 0.0
        %4843 = vadd.xlane.f32.xlu0 %v4842
        %v4844 = vpop.xlane.xlu0 %4843
        %v4845 = vsel %vm696, %v4828, 0.0
        %4846 = vadd.xlane.f32.xlu0 %v4845
        %v4847 = vpop.xlane.xlu0 %4846
        %v4848 = vsel %vm696, %v4830, 0.0
        %4849 = vadd.xlane.f32.xlu0 %v4848
        %v4850 = vpop.xlane.xlu0 %4849
        %v4851 = vsel %vm696, %v4832, 0.0
        %4852 = vadd.xlane.f32.xlu0 %v4851
        %v4853 = vpop.xlane.xlu0 %4852
        %v4854 = vsel %vm696, %v4834, 0.0
        %4855 = vadd.xlane.f32.xlu0 %v4854
        %v4856 = vpop.xlane.xlu0 %4855
        %v4857 = vsel %vm696, %v4836, 0.0
        %4858 = vadd.xlane.f32.xlu0 %v4857
        %v4859 = vpop.xlane.xlu0 %4858
        %v4860 = vsel %vm696, %v4838, 0.0
        %4861 = vadd.xlane.f32.xlu0 %v4860
        %v4862 = vpop.xlane.xlu0 %4861
        %v4863 = vrcp.pop %v4841
        %v4864 = vrcp.pop %v4844
        %v4865 = vrcp.pop %v4847
        %v4866 = vrcp.pop %v4850
        %v4867 = vrcp.pop %v4853
        %v4868 = vrcp.pop %v4856
        %v4869 = vrcp.pop %v4859
        %v4870 = vrcp.pop %v4862
        %v4871 = vmul.f32 %v4824, %v4863
        %v4872 = vmul.f32 %v4826, %v4864
        %v4873 = vmul.f32 %v4828, %v4865
        %v4874 = vmul.f32 %v4830, %v4866
        %v4875 = vmul.f32 %v4832, %v4867
        %v4876 = vmul.f32 %v4834, %v4868
        %v4877 = vmul.f32 %v4836, %v4869
        %v4878 = vmul.f32 %v4838, %v4870
        %v4879 = vpack.c.bf16 %v4872, %v4871
        %v4880 = vpack.c.bf16 %v4874, %v4873
        %v4881 = vpack.c.bf16 %v4876, %v4875
        %v4882 = vpack.c.bf16 %v4878, %v4877
        %v4884 = vsel %vm696, %v4879, 0
        %v4887 = vsel %vm696, %v4880, 0
        %v4890 = vsel %vm696, %v4881, 0
        %v4893 = vsel %vm696, %v4882, 0
        %4895 = vmatprep.subr.bf16.mxu0 0
        %4896 = vmatpush1.bf16.msra.mxu0 0
        %4897 = vmatprep.subr.bf16.mxu0 0
        %4898 = vmatpush1.bf16.msra.mxu0 0
        %4899 = vmatprep.subr.bf16.mxu0 0
        %4900 = vmatpush1.bf16.msra.mxu0 0
        %4901 = vmatprep.subr.bf16.mxu0 0
        %4902 = vmatpush1.bf16.msra.mxu0 0
        %4903 = vmatprep.subr.bf16.mxu0 0
        %4904 = vmatpush1.bf16.msra.mxu0 %v4601
        %4905 = vmatprep.subr.bf16.mxu0 0
        %4906 = vmatpush1.bf16.msra.mxu0 %v4600
        %4907 = vmatprep.subr.bf16.mxu0 0
        %4908 = vmatpush1.bf16.msra.mxu0 %v4599
        %4909 = vmatprep.subr.bf16.mxu0 0
        %4910 = vmatpush1.bf16.msra.mxu0 %v4598
        %4911 = vmatprep.subr.bf16.mxu0 0
        %4912 = vmatpush2.bf16.msra.mxu0 0
        %4913 = vmatprep.subr.bf16.mxu0 0
        %4914 = vmatpush2.bf16.msra.mxu0 0
        %4915 = vmatprep.subr.bf16.mxu0 0
        %4916 = vmatpush2.bf16.msra.mxu0 0
        %4917 = vmatprep.subr.bf16.mxu0 0
        %4918 = vmatpush2.bf16.msra.mxu0 0
        %4919 = vmatprep.subr.bf16.mxu0 0
        %4920 = vmatpush2.bf16.msra.mxu0 0
        %4921 = vmatprep.subr.bf16.mxu0 0
        %4922 = vmatpush2.bf16.msra.mxu0 0
        %4923 = vmatprep.subr.bf16.mxu0 0
        %4924 = vmatpush2.bf16.msra.mxu0 0
        %4925 = vmatprep.subr.bf16.mxu0 0
        %4926 = vmatpush2.bf16.msra.mxu0 0
        %4927 = vmatprep.mubr.bf16.mxu0 0
        %4928 = vmatmul.mubr.bf16.gmra.mxu0 %v4884
        %v4929 = vpop.f32.mrf.mxu0
        %v4930 = vadd.f32 0.0, %v4929
        %v4931 = vpop.f32.mrf.mxu0
        %v4932 = vpop.f32.mrf.mxu0
        %v4933 = vadd.f32 0.0, %v4932
        %v4934 = vpop.f32.mrf.mxu0
        %4935 = vmatprep.mubr.bf16.mxu0 0
        %4936 = vmatmul.mubr.bf16.gmra.mxu0 %v4887
        %v4937 = vpop.f32.mrf.mxu0
        %v4938 = vadd.f32 0.0, %v4937
        %v4939 = vpop.f32.mrf.mxu0
        %v4940 = vpop.f32.mrf.mxu0
        %v4941 = vadd.f32 0.0, %v4940
        %v4942 = vpop.f32.mrf.mxu0
        %4943 = vmatprep.mubr.bf16.mxu0 0
        %4944 = vmatmul.mubr.bf16.gmra.mxu0 %v4890
        %v4945 = vpop.f32.mrf.mxu0
        %v4946 = vadd.f32 0.0, %v4945
        %v4947 = vpop.f32.mrf.mxu0
        %v4948 = vpop.f32.mrf.mxu0
        %v4949 = vadd.f32 0.0, %v4948
        %v4950 = vpop.f32.mrf.mxu0
        %4951 = vmatprep.mubr.bf16.mxu0 0
        %4952 = vmatmul.mubr.bf16.gmra.mxu0 %v4893
        %v4953 = vpop.f32.mrf.mxu0
        %v4954 = vadd.f32 0.0, %v4953
        %v4955 = vpop.f32.mrf.mxu0
        %v4956 = vpop.f32.mrf.mxu0
        %v4957 = vadd.f32 0.0, %v4956
        %v4958 = vpop.f32.mrf.mxu0
        %4959 = vdwg.mxu0
        %v4960 = vld [vmem:[%s3 + $0x38] sm:$0xf]
        %v4961 = vld [vmem:[%s3 + $0x3c] sm:$0xf]
        %v4962 = vpack.c.bf16 %v4933, %v4930
        %v4963 = vpack.c.bf16 %v4941, %v4938
        %v4964 = vpack.c.bf16 %v4949, %v4946
        %v4965 = vpack.c.bf16 %v4957, %v4954
        %v4968 = vunpack.c.l.b16 %v4960
        %v4969 = vunpack.c.l.b16 %v4961
        %v4970 = vpack.c.b16 %v4969, %v4968
        %v4973 = vsel %vm736, %v4962, 0
        %v4976 = vsel %vm736, %v4963, 0
        %v4979 = vsel %vm736, %v4964, 0
        %v4982 = vsel %vm736, %v4965, 0
        %4984 = vmatprep.subr.bf16.mxu0 0
        %4985 = vmatpush1.bf16.msra.mxu0 0
        %4986 = vmatprep.subr.bf16.mxu0 0
        %4987 = vmatpush1.bf16.msra.mxu0 0
        %4988 = vmatprep.subr.bf16.mxu0 0
        %4989 = vmatpush1.bf16.msra.mxu0 0
        %4990 = vmatprep.subr.bf16.mxu0 0
        %4991 = vmatpush1.bf16.msra.mxu0 0
        %4992 = vmatprep.subr.bf16.mxu0 0
        %4993 = vmatpush1.bf16.msra.mxu0 0
        %4994 = vmatprep.subr.bf16.mxu0 0
        %4995 = vmatpush1.bf16.msra.mxu0 0
        %4996 = vmatprep.subr.bf16.mxu0 0
        %4997 = vmatpush1.bf16.msra.mxu0 0
        %4998 = vmatprep.subr.bf16.mxu0 0
        %4999 = vmatpush1.bf16.msra.mxu0 %v4970
        %5000 = vmatprep.subr.bf16.mxu0 0
        %5001 = vmatpush2.bf16.msra.mxu0 0
        %5002 = vmatprep.subr.bf16.mxu0 0
        %5003 = vmatpush2.bf16.msra.mxu0 0
        %5004 = vmatprep.subr.bf16.mxu0 0
        %5005 = vmatpush2.bf16.msra.mxu0 0
        %5006 = vmatprep.subr.bf16.mxu0 0
        %5007 = vmatpush2.bf16.msra.mxu0 0
        %5008 = vmatprep.subr.bf16.mxu0 0
        %5009 = vmatpush2.bf16.msra.mxu0 0
        %5010 = vmatprep.subr.bf16.mxu0 0
        %5011 = vmatpush2.bf16.msra.mxu0 0
        %5012 = vmatprep.subr.bf16.mxu0 0
        %5013 = vmatpush2.bf16.msra.mxu0 0
        %5014 = vmatprep.subr.bf16.mxu0 0
        %5015 = vmatpush2.bf16.msra.mxu0 0
        %5016 = vmatprep.mubr.bf16.mxu0 0
        %5017 = vmatmul.mubr.bf16.gmra.mxu0 %v4973
        %v5018 = vpop.f32.mrf.mxu0
        %v5019 = vadd.f32 0.0, %v5018
        %v5020 = vpop.f32.mrf.mxu0
        %v5021 = vpop.f32.mrf.mxu0
        %v5022 = vadd.f32 0.0, %v5021
        %v5023 = vpop.f32.mrf.mxu0
        %5024 = vmatprep.mubr.bf16.mxu0 0
        %5025 = vmatmul.mubr.bf16.gmra.mxu0 %v4976
        %v5026 = vpop.f32.mrf.mxu0
        %v5027 = vadd.f32 0.0, %v5026
        %v5028 = vpop.f32.mrf.mxu0
        %v5029 = vpop.f32.mrf.mxu0
        %v5030 = vadd.f32 0.0, %v5029
        %v5031 = vpop.f32.mrf.mxu0
        %5032 = vmatprep.mubr.bf16.mxu0 0
        %5033 = vmatmul.mubr.bf16.gmra.mxu0 %v4979
        %v5034 = vpop.f32.mrf.mxu0
        %v5035 = vadd.f32 0.0, %v5034
        %v5036 = vpop.f32.mrf.mxu0
        %v5037 = vpop.f32.mrf.mxu0
        %v5038 = vadd.f32 0.0, %v5037
        %v5039 = vpop.f32.mrf.mxu0
        %5040 = vmatprep.mubr.bf16.mxu0 0
        %5041 = vmatmul.mubr.bf16.gmra.mxu0 %v4982
        %v5042 = vpop.f32.mrf.mxu0
        %v5043 = vadd.f32 0.0, %v5042
        %v5044 = vpop.f32.mrf.mxu0
        %v5045 = vpop.f32.mrf.mxu0
        %v5046 = vadd.f32 0.0, %v5045
        %v5047 = vpop.f32.mrf.mxu0
        %5048 = vdwg.mxu0
        %v5049 = vadd.f32 %v4547, %v5019
        %v5050 = vadd.f32 %v4548, %v5022
        %v5051 = vadd.f32 %v4549, %v5027
        %v5052 = vadd.f32 %v4550, %v5030
        %v5053 = vadd.f32 %v4551, %v5035
        %v5054 = vadd.f32 %v4552, %v5038
        %v5055 = vadd.f32 %v4553, %v5043
        %v5056 = vadd.f32 %v4554, %v5046
        %v5057 = vld [vmem:[%s4] sm:$0xff]
        %v5058 = vld [vmem:[%s4 + $0x8] sm:$0x3]
        %5060 = vset.pattern.permute.xlu0 32
        %5061 = vperm.xlu0 %5060, %v5057
        %v5062 = vpop.permute.xlu0 %5061
        %5065 = vset.pattern.permute.xlu0 32
        %5066 = vperm.xlu0 %5065, %v5058
        %v5067 = vpop.permute.xlu0 %5066
        %v5069 = vsel %vm442, %v5057, 0
        %v5071 = vsel %vm442, %v5058, 0
        %v5074 = vsel %vm442, %v5049, 0
        %v5077 = vsel %vm442, %v5050, 0
        %v5080 = vsel %vm442, %v5051, 0
        %v5083 = vsel %vm442, %v5052, 0
        %v5086 = vsel %vm442, %v5053, 0
        %v5089 = vsel %vm442, %v5054, 0
        %v5092 = vsel %vm442, %v5055, 0
        %v5095 = vsel %vm442, %v5056, 0
        %5097 = vmatprep.subr.mxu0 0.0
        %5098 = vmatpush1.xpose.msra.mxu0 0.0
        %5099 = vmatprep.subr.mxu0 0.0
        %5100 = vmatpush1.xpose.msra.mxu0 0.0
        %5101 = vmatprep.subr.mxu0 0.0
        %5102 = vmatpush1.xpose.msra.mxu0 0.0
        %5103 = vmatprep.subr.mxu0 0.0
        %5104 = vmatpush1.xpose.msra.mxu0 0.0
        %5105 = vmatprep.subr.mxu0 0.0
        %5106 = vmatpush1.xpose.msra.mxu0 0.0
        %5107 = vmatprep.subr.mxu0 0.0
        %5108 = vmatpush1.xpose.msra.mxu0 0.0
        %5109 = vmatprep.subr.mxu0 0.0
        %5110 = vmatpush1.xpose.msra.mxu0 0.0
        %5111 = vmatprep.subr.mxu0 0.0
        %5112 = vmatpush1.xpose.msra.mxu0 0.0
        %5113 = vmatprep.subr.mxu0 0.0
        %5114 = vmatpush1.xpose.msra.mxu0 %v5095
        %5115 = vmatprep.subr.mxu0 0.0
        %5116 = vmatpush1.xpose.msra.mxu0 %v5092
        %5117 = vmatprep.subr.mxu0 0.0
        %5118 = vmatpush1.xpose.msra.mxu0 %v5089
        %5119 = vmatprep.subr.mxu0 0.0
        %5120 = vmatpush1.xpose.msra.mxu0 %v5086
        %5121 = vmatprep.subr.mxu0 0.0
        %5122 = vmatpush1.xpose.msra.mxu0 %v5083
        %5123 = vmatprep.subr.mxu0 0.0
        %5124 = vmatpush1.xpose.msra.mxu0 %v5080
        %5125 = vmatprep.subr.mxu0 0.0
        %5126 = vmatpush1.xpose.msra.mxu0 %v5077
        %5127 = vmatprep.subr.mxu0 0.0
        %5128 = vmatpush1.xpose.msra.mxu0 %v5074
        %5129 = vmatprep.subr.mxu0 0.0
        %5130 = vmatpush2.xpose.msra.mxu0 0.0
        %5131 = vmatprep.subr.mxu0 0.0
        %5132 = vmatpush2.xpose.msra.mxu0 0.0
        %5133 = vmatprep.subr.mxu0 0.0
        %5134 = vmatpush2.xpose.msra.mxu0 0.0
        %5135 = vmatprep.subr.mxu0 0.0
        %5136 = vmatpush2.xpose.msra.mxu0 0.0
        %5137 = vmatprep.subr.mxu0 0.0
        %5138 = vmatpush2.xpose.msra.mxu0 0.0
        %5139 = vmatprep.subr.mxu0 0.0
        %5140 = vmatpush2.xpose.msra.mxu0 0.0
        %5141 = vmatprep.subr.mxu0 0.0
        %5142 = vmatpush2.xpose.msra.mxu0 0.0
        %5143 = vmatprep.subr.mxu0 0.0
        %5144 = vmatpush2.xpose.msra.mxu0 0.0
        %5145 = vmatprep.subr.mxu0 0.0
        %5146 = vmatpush2.xpose.msra.mxu0 0.0
        %5147 = vmatprep.subr.mxu0 0.0
        %5148 = vmatpush2.xpose.msra.mxu0 0.0
        %5149 = vmatprep.subr.mxu0 0.0
        %5150 = vmatpush2.xpose.msra.mxu0 0.0
        %5151 = vmatprep.subr.mxu0 0.0
        %5152 = vmatpush2.xpose.msra.mxu0 0.0
        %5153 = vmatprep.subr.mxu0 0.0
        %5154 = vmatpush2.xpose.msra.mxu0 0.0
        %5155 = vmatprep.subr.mxu0 0.0
        %5156 = vmatpush2.xpose.msra.mxu0 0.0
        %5157 = vmatprep.subr.mxu0 0.0
        %5158 = vmatpush2.xpose.msra.mxu0 0.0
        %5159 = vmatprep.subr.mxu0 0.0
        %5160 = vmatpush2.xpose.msra.mxu0 0.0
        %5161 = vmatprep.mubr.f32.mxu0 0.0
        %5162 = vmatmul.mubr.f32.gmra.mxu0 %v5069
        %v5163 = vpop.f32.mrf.mxu0
        %v5164 = vadd.f32 %v5062, %v5163
        %v5165 = vpop.f32.mrf.mxu0
        %5166 = vmatprep.mubr.f32.mxu0 0.0
        %5167 = vmatmul.mubr.f32.gmra.mxu0 %v5071
        %v5168 = vpop.f32.mrf.mxu0
        %v5169 = vadd.f32 %v5067, %v5168
        %v5170 = vpop.f32.mrf.mxu0
        %5171 = vdwg.mxu0
        %vm5172 = vcmask 516096
        %v5173 = vsel %vm5172, %v5164, -inf
        %5174 = vmax.xlane.f32.xlu0 %v5173
        %v5175 = vpop.xlane.xlu0 %5174
        %v5176 = vsub.f32 %v5164, %v5175
        %v5177 = vmul.f32 %v5176, 1.442695
        %v5178 = vpow.pop %v5177
        %v5179 = vsel %vm5172, %v5178, 0.0
        %5180 = vadd.xlane.f32.xlu0 %v5179
        %v5181 = vpop.xlane.xlu0 %5180
        %v5182 = vrcp.pop %v5181
        %v5183 = vmul.f32 %v5178, %v5182
        %v5185 = vsel %vm696, %v5183, 0
        %v5187 = vsel %vm696, %v220, 0
        %5189 = vmatprep.subr.mxu0 0.0
        %5190 = vmatpush1.xpose.msra.mxu0 0.0
        %5191 = vmatprep.subr.mxu0 0.0
        %5192 = vmatpush1.xpose.msra.mxu0 0.0
        %5193 = vmatprep.subr.mxu0 0.0
        %5194 = vmatpush1.xpose.msra.mxu0 0.0
        %5195 = vmatprep.subr.mxu0 0.0
        %5196 = vmatpush1.xpose.msra.mxu0 0.0
        %5197 = vmatprep.subr.mxu0 0.0
        %5198 = vmatpush1.xpose.msra.mxu0 0.0
        %5199 = vmatprep.subr.mxu0 0.0
        %5200 = vmatpush1.xpose.msra.mxu0 0.0
        %5201 = vmatprep.subr.mxu0 0.0
        %5202 = vmatpush1.xpose.msra.mxu0 0.0
        %5203 = vmatprep.subr.mxu0 0.0
        %5204 = vmatpush1.xpose.msra.mxu0 0.0
        %5205 = vmatprep.subr.mxu0 0.0
        %5206 = vmatpush1.xpose.msra.mxu0 0.0
        %5207 = vmatprep.subr.mxu0 0.0
        %5208 = vmatpush1.xpose.msra.mxu0 0.0
        %5209 = vmatprep.subr.mxu0 0.0
        %5210 = vmatpush1.xpose.msra.mxu0 0.0
        %5211 = vmatprep.subr.mxu0 0.0
        %5212 = vmatpush1.xpose.msra.mxu0 0.0
        %5213 = vmatprep.subr.mxu0 0.0
        %5214 = vmatpush1.xpose.msra.mxu0 0.0
        %5215 = vmatprep.subr.mxu0 0.0
        %5216 = vmatpush1.xpose.msra.mxu0 0.0
        %5217 = vmatprep.subr.mxu0 0.0
        %5218 = vmatpush1.xpose.msra.mxu0 0.0
        %5219 = vmatprep.subr.mxu0 0.0
        %5220 = vmatpush1.xpose.msra.mxu0 %v5187
        %5221 = vmatprep.subr.mxu0 0.0
        %5222 = vmatpush2.xpose.msra.mxu0 0.0
        %5223 = vmatprep.subr.mxu0 0.0
        %5224 = vmatpush2.xpose.msra.mxu0 0.0
        %5225 = vmatprep.subr.mxu0 0.0
        %5226 = vmatpush2.xpose.msra.mxu0 0.0
        %5227 = vmatprep.subr.mxu0 0.0
        %5228 = vmatpush2.xpose.msra.mxu0 0.0
        %5229 = vmatprep.subr.mxu0 0.0
        %5230 = vmatpush2.xpose.msra.mxu0 0.0
        %5231 = vmatprep.subr.mxu0 0.0
        %5232 = vmatpush2.xpose.msra.mxu0 0.0
        %5233 = vmatprep.subr.mxu0 0.0
        %5234 = vmatpush2.xpose.msra.mxu0 0.0
        %5235 = vmatprep.subr.mxu0 0.0
        %5236 = vmatpush2.xpose.msra.mxu0 0.0
        %5237 = vmatprep.subr.mxu0 0.0
        %5238 = vmatpush2.xpose.msra.mxu0 0.0
        %5239 = vmatprep.subr.mxu0 0.0
        %5240 = vmatpush2.xpose.msra.mxu0 0.0
        %5241 = vmatprep.subr.mxu0 0.0
        %5242 = vmatpush2.xpose.msra.mxu0 0.0
        %5243 = vmatprep.subr.mxu0 0.0
        %5244 = vmatpush2.xpose.msra.mxu0 0.0
        %5245 = vmatprep.subr.mxu0 0.0
        %5246 = vmatpush2.xpose.msra.mxu0 0.0
        %5247 = vmatprep.subr.mxu0 0.0
        %5248 = vmatpush2.xpose.msra.mxu0 0.0
        %5249 = vmatprep.subr.mxu0 0.0
        %5250 = vmatpush2.xpose.msra.mxu0 0.0
        %5251 = vmatprep.subr.mxu0 0.0
        %5252 = vmatpush2.xpose.msra.mxu0 0.0
        %5253 = vmatprep.mubr.f32.mxu0 0.0
        %5254 = vmatmul.mubr.f32.gmra.mxu0 %v5185
        %v5255 = vpop.f32.mrf.mxu0
        %v5256 = vadd.f32 0.0, %v5255
        %v5257 = vpop.f32.mrf.mxu0
        %5258 = vdwg.mxu0
        %5260 = vset.pattern.permute.xlu0 0
        %5261 = vperm.xlu0 %5260, %v5256
        %v5262 = vpop.permute.xlu0 %5261
        %v5264 = vsub.f32 %v220, %v5262
        %v5265 = vmul.f32 %v5264, %v5264
        %v5266 = vadd.f32 %v5265, 0.0
        %5267 = vset.pattern.permute.xlu0 1
        %5268 = vperm.xlu0 %5267, %v5256
        %v5269 = vpop.permute.xlu0 %5268
        %v5270 = vrot.slane %v5269, 7
        %v5272 = vsub.f32 %v220, %v5270
        %v5273 = vmul.f32 %v5272, %v5272
        %v5275 = vrot.slane %v5273, 1
        %v5277 = vadd.f32 %v5266, %v5275
        %5278 = vset.pattern.permute.xlu0 2
        %5279 = vperm.xlu0 %5278, %v5256
        %v5280 = vpop.permute.xlu0 %5279
        %v5281 = vrot.slane %v5280, 6
        %v5283 = vsub.f32 %v220, %v5281
        %v5284 = vmul.f32 %v5283, %v5283
        %v5286 = vrot.slane %v5284, 2
        %v5288 = vadd.f32 %v5277, %v5286
        %vm5289 = vcmp.lt.f32.partialorder %v5288, 0.0004
        %v5290 = vsel %vm5289, 1, 0
        %v5291 = vcvt.s32.f32 %v5290
        %v5292 = vsel %vm5172, %v5291, 0.0
        %5293 = vadd.xlane.f32.xlu0 %v5292
        %v5294 = vpop.xlane.xlu0 %5293
        %vm5297 = vcmask 1046528
        %v5298 = vrot.slane %v5164, 1
        %v5299 = vrot.slane %v5169, 1
        %v5300 = vsel %vm5297, %v5298, %v5299
        %v5302 = vsel %vm696, %v5291, 0
        %v5304 = vsel %vm696, %v5300, 0
        %v5306 = vsel %vm696, %v5299, 0
        %5308 = vmatprep.subr.mxu0 0.0
        %5309 = vmatpush1.xpose.msra.mxu0 0.0
        %5310 = vmatprep.subr.mxu0 0.0
        %5311 = vmatpush1.xpose.msra.mxu0 0.0
        %5312 = vmatprep.subr.mxu0 0.0
        %5313 = vmatpush1.xpose.msra.mxu0 0.0
        %5314 = vmatprep.subr.mxu0 0.0
        %5315 = vmatpush1.xpose.msra.mxu0 0.0
        %5316 = vmatprep.subr.mxu0 0.0
        %5317 = vmatpush1.xpose.msra.mxu0 0.0
        %5318 = vmatprep.subr.mxu0 0.0
        %5319 = vmatpush1.xpose.msra.mxu0 0.0
        %5320 = vmatprep.subr.mxu0 0.0
        %5321 = vmatpush1.xpose.msra.mxu0 0.0
        %5322 = vmatprep.subr.mxu0 0.0
        %5323 = vmatpush1.xpose.msra.mxu0 0.0
        %5324 = vmatprep.subr.mxu0 0.0
        %5325 = vmatpush1.xpose.msra.mxu0 0.0
        %5326 = vmatprep.subr.mxu0 0.0
        %5327 = vmatpush1.xpose.msra.mxu0 0.0
        %5328 = vmatprep.subr.mxu0 0.0
        %5329 = vmatpush1.xpose.msra.mxu0 0.0
        %5330 = vmatprep.subr.mxu0 0.0
        %5331 = vmatpush1.xpose.msra.mxu0 0.0
        %5332 = vmatprep.subr.mxu0 0.0
        %5333 = vmatpush1.xpose.msra.mxu0 0.0
        %5334 = vmatprep.subr.mxu0 0.0
        %5335 = vmatpush1.xpose.msra.mxu0 0.0
        %5336 = vmatprep.subr.mxu0 0.0
        %5337 = vmatpush1.xpose.msra.mxu0 %v5306
        %5338 = vmatprep.subr.mxu0 0.0
        %5339 = vmatpush1.xpose.msra.mxu0 %v5304
        %5340 = vmatprep.subr.mxu0 0.0
        %5341 = vmatpush2.xpose.msra.mxu0 0.0
        %5342 = vmatprep.subr.mxu0 0.0
        %5343 = vmatpush2.xpose.msra.mxu0 0.0
        %5344 = vmatprep.subr.mxu0 0.0
        %5345 = vmatpush2.xpose.msra.mxu0 0.0
        %5346 = vmatprep.subr.mxu0 0.0
        %5347 = vmatpush2.xpose.msra.mxu0 0.0
        %5348 = vmatprep.subr.mxu0 0.0
        %5349 = vmatpush2.xpose.msra.mxu0 0.0
        %5350 = vmatprep.subr.mxu0 0.0
        %5351 = vmatpush2.xpose.msra.mxu0 0.0
        %5352 = vmatprep.subr.mxu0 0.0
        %5353 = vmatpush2.xpose.msra.mxu0 0.0
        %5354 = vmatprep.subr.mxu0 0.0
        %5355 = vmatpush2.xpose.msra.mxu0 0.0
        %5356 = vmatprep.subr.mxu0 0.0
        %5357 = vmatpush2.xpose.msra.mxu0 0.0
        %5358 = vmatprep.subr.mxu0 0.0
        %5359 = vmatpush2.xpose.msra.mxu0 0.0
        %5360 = vmatprep.subr.mxu0 0.0
        %5361 = vmatpush2.xpose.msra.mxu0 0.0
        %5362 = vmatprep.subr.mxu0 0.0
        %5363 = vmatpush2.xpose.msra.mxu0 0.0
        %5364 = vmatprep.subr.mxu0 0.0
        %5365 = vmatpush2.xpose.msra.mxu0 0.0
        %5366 = vmatprep.subr.mxu0 0.0
        %5367 = vmatpush2.xpose.msra.mxu0 0.0
        %5368 = vmatprep.subr.mxu0 0.0
        %5369 = vmatpush2.xpose.msra.mxu0 0.0
        %5370 = vmatprep.subr.mxu0 0.0
        %5371 = vmatpush2.xpose.msra.mxu0 0.0
        %5372 = vmatprep.mubr.f32.mxu0 0.0
        %5373 = vmatmul.mubr.f32.gmra.mxu0 %v5302
        %v5374 = vpop.f32.mrf.mxu0
        %v5375 = vadd.f32 0.0, %v5374
        %v5376 = vpop.f32.mrf.mxu0
        %5377 = vdwg.mxu0
        %v5379 = vsel %vm696, 1.0, 0
        %5381 = vmatprep.subr.mxu0 0.0
        %5382 = vmatpush1.xpose.msra.mxu0 0.0
        %5383 = vmatprep.subr.mxu0 0.0
        %5384 = vmatpush1.xpose.msra.mxu0 0.0
        %5385 = vmatprep.subr.mxu0 0.0
        %5386 = vmatpush1.xpose.msra.mxu0 0.0
        %5387 = vmatprep.subr.mxu0 0.0
        %5388 = vmatpush1.xpose.msra.mxu0 0.0
        %5389 = vmatprep.subr.mxu0 0.0
        %5390 = vmatpush1.xpose.msra.mxu0 0.0
        %5391 = vmatprep.subr.mxu0 0.0
        %5392 = vmatpush1.xpose.msra.mxu0 0.0
        %5393 = vmatprep.subr.mxu0 0.0
        %5394 = vmatpush1.xpose.msra.mxu0 0.0
        %5395 = vmatprep.subr.mxu0 0.0
        %5396 = vmatpush1.xpose.msra.mxu0 0.0
        %5397 = vmatprep.subr.mxu0 0.0
        %5398 = vmatpush1.xpose.msra.mxu0 0.0
        %5399 = vmatprep.subr.mxu0 0.0
        %5400 = vmatpush1.xpose.msra.mxu0 0.0
        %5401 = vmatprep.subr.mxu0 0.0
        %5402 = vmatpush1.xpose.msra.mxu0 0.0
        %5403 = vmatprep.subr.mxu0 0.0
        %5404 = vmatpush1.xpose.msra.mxu0 0.0
        %5405 = vmatprep.subr.mxu0 0.0
        %5406 = vmatpush1.xpose.msra.mxu0 0.0
        %5407 = vmatprep.subr.mxu0 0.0
        %5408 = vmatpush1.xpose.msra.mxu0 0.0
        %5409 = vmatprep.subr.mxu0 0.0
        %5410 = vmatpush1.xpose.msra.mxu0 %v5306
        %5411 = vmatprep.subr.mxu0 0.0
        %5412 = vmatpush1.xpose.msra.mxu0 %v5304
        %5413 = vmatprep.subr.mxu0 0.0
        %5414 = vmatpush2.xpose.msra.mxu0 0.0
        %5415 = vmatprep.subr.mxu0 0.0
        %5416 = vmatpush2.xpose.msra.mxu0 0.0
        %5417 = vmatprep.subr.mxu0 0.0
        %5418 = vmatpush2.xpose.msra.mxu0 0.0
        %5419 = vmatprep.subr.mxu0 0.0
        %5420 = vmatpush2.xpose.msra.mxu0 0.0
        %5421 = vmatprep.subr.mxu0 0.0
        %5422 = vmatpush2.xpose.msra.mxu0 0.0
        %5423 = vmatprep.subr.mxu0 0.0
        %5424 = vmatpush2.xpose.msra.mxu0 0.0
        %5425 = vmatprep.subr.mxu0 0.0
        %5426 = vmatpush2.xpose.msra.mxu0 0.0
        %5427 = vmatprep.subr.mxu0 0.0
        %5428 = vmatpush2.xpose.msra.mxu0 0.0
        %5429 = vmatprep.subr.mxu0 0.0
        %5430 = vmatpush2.xpose.msra.mxu0 0.0
        %5431 = vmatprep.subr.mxu0 0.0
        %5432 = vmatpush2.xpose.msra.mxu0 0.0
        %5433 = vmatprep.subr.mxu0 0.0
        %5434 = vmatpush2.xpose.msra.mxu0 0.0
        %5435 = vmatprep.subr.mxu0 0.0
        %5436 = vmatpush2.xpose.msra.mxu0 0.0
        %5437 = vmatprep.subr.mxu0 0.0
        %5438 = vmatpush2.xpose.msra.mxu0 0.0
        %5439 = vmatprep.subr.mxu0 0.0
        %5440 = vmatpush2.xpose.msra.mxu0 0.0
        %5441 = vmatprep.subr.mxu0 0.0
        %5442 = vmatpush2.xpose.msra.mxu0 0.0
        %5443 = vmatprep.subr.mxu0 0.0
        %5444 = vmatpush2.xpose.msra.mxu0 0.0
        %5445 = vmatprep.mubr.f32.mxu0 0.0
        %5446 = vmatmul.mubr.f32.gmra.mxu0 %v5379
        %v5447 = vpop.f32.mrf.mxu0
        %v5448 = vadd.f32 0.0, %v5447
        %v5449 = vpop.f32.mrf.mxu0
        %5450 = vdwg.mxu0
        %v5451 = vmul.f32 %v5448, 0.015625
        %v5452 = vmax.f32 %v5294, 1.0
        %v5453 = vrcp.pop %v5452
        %v5454 = vmul.f32 %v5375, %v5453
        %vm5455 = vcmp.gt.f32.partialorder %v5294, 0.0
        %v5456 = vsel %vm5455, 1, 0
        %vm5457 = vcmp.eq.s32.totalorder %v5456, 1
        %v5458 = vsel %vm5457, %v5454, %v5451
        %vm5459 = vcmask 16384
        %5460 = vst.msk [vmem:[%s214] sm:$0x1] %vm5459, %v5256
        %v5461 = vmul.f32 %v5458, %v5458
        %v5462 = vsel %vm5459, %v5461, 0.0
        %5463 = vadd.xlane.f32.xlu0 %v5462
        %v5464 = vpop.xlane.xlu0 %5463
        %v5465 = vrsqrt.pop %v5464
        %v5466 = vmul.f32 %v5464, %v5465
        %vm5467 = vcmp.eq.f32.partialorder %v5464, inf
        %v5468 = vsel %vm5467, %v5464, %v5466
        %vm5469 = vcmp.eq.f32.partialorder %v5464, 0.0
        %v5470 = vand.u32 %v5464, 2147483648
        %v5471 = vsel %vm5469, %v5470, %v5468
        %v5472 = vadd.f32 %v5471, 1e-08
        %v5473 = vrcp.pop %v5472
        %v5474 = vmul.f32 %v5458, %v5473
        %5476 = vrot.lane.b32.xlu0 %v5474, 3
        %v5477 = vpop.permute.xlu0 %5476
        %vm5479 = vcmask 40984
        %5480 = vst.msk [vmem:[%s214] sm:$0x1] %vm5479, %v5477
        %5482 = vrot.lane.b32.xlu0 %v5461, 125
        %v5483 = vpop.permute.xlu0 %5482
        %v5485 = vsel %vm5459, %v5483, 0.0
        %5486 = vadd.xlane.f32.xlu0 %v5485
        %v5487 = vpop.xlane.xlu0 %5486
        %v5488 = vrsqrt.pop %v5487
        %v5489 = vmul.f32 %v5487, %v5488
        %vm5490 = vcmp.eq.f32.partialorder %v5487, inf
        %v5491 = vsel %vm5490, %v5487, %v5489
        %vm5492 = vcmp.eq.f32.partialorder %v5487, 0.0
        %v5493 = vand.u32 %v5487, 2147483648
        %v5494 = vsel %vm5492, %v5493, %v5491
        %v5495 = vadd.f32 %v5494, 1e-08
        %v5496 = vrcp.pop %v5495
        %v5497 = vmul.f32 %v5458, %v5496
        %5499 = vrot.lane.b32.xlu0 %v5497, 3
        %v5500 = vpop.permute.xlu0 %5499
        %vm5502 = vcmask 65584
        %5503 = vst.msk [vmem:[%s214] sm:$0x1] %vm5502, %v5500
        %5504 = vrot.lane.b32.xlu0 %v5461, 122
        %v5505 = vpop.permute.xlu0 %5504
        %v5507 = vsel %vm5459, %v5505, 0.0
        %5508 = vadd.xlane.f32.xlu0 %v5507
        %v5509 = vpop.xlane.xlu0 %5508
        %v5510 = vrsqrt.pop %v5509
        %v5511 = vmul.f32 %v5509, %v5510
        %vm5512 = vcmp.eq.f32.partialorder %v5509, inf
        %v5513 = vsel %vm5512, %v5509, %v5511
        %vm5514 = vcmp.eq.f32.partialorder %v5509, 0.0
        %v5515 = vand.u32 %v5509, 2147483648
        %v5516 = vsel %vm5514, %v5515, %v5513
        %v5517 = vadd.f32 %v5516, 1e-08
        %v5518 = vrcp.pop %v5517
        %v5519 = vmul.f32 %v5458, %v5518
        %5521 = vrot.lane.b32.xlu0 %v5519, 3
        %v5522 = vpop.permute.xlu0 %5521
        %vm5524 = vcmask 90184
        %5525 = vst.msk [vmem:[%s214] sm:$0x1] %vm5524, %v5522
        %vm5526 = vcmask 122976
        %5527 = vst.msk [vmem:[%s214] sm:$0x1] %vm5526, 0.0
        %s5528 = sand.u32 %s137, 1
        %s5529 = scalar_lea.sflag [#allocation3], %s5528
        %s5530 = sand.u32 %s137, 1
        %s5531 = scalar_lea.vmem [#allocation2], %s5530
        // Predicated region
        $region41: #{tpu_custom_call.1} parent=39 // pred_check
          %p5532 = pneg %p147
        $region42: #{tpu_custom_call.1} parent=39 // pred_check_branch
          %5534 = sbr.rel (%p5532) target = $region44
        $region43: #{tpu_custom_call.1} parent=39 // pred_region
          %s5536 = ssub.s32 16, 16
          %5537 = vsyncadd %s5529, %s5536
          %s5538 = smul.addr %s19, 16
          %s5539 = scalar_lea.hbm %s5, %s5538
          %s5541 = sshll.u32 %s5531, 4
          %s5542 = int_to_ptr.vmem [resolvable:$true] %s5541
          %5544 = dma.vmem_to_hbm [thread:$0]  %s5542, 16, %s5539, %s5529
        $region44: #{tpu_custom_call.1} parent=39 // pred_fallthru
          _
      $region40: #{tpu_custom_call.1} parent=5 // pred_fallthru
        _
      %p5545 = scmp.le.s32.totalorder 2, %s14
      // Predicated region
      $region45: #{tpu_custom_call.1} parent=5 // pred_check
        %p5546 = pneg %p5545
      $region46: #{tpu_custom_call.1} parent=5 // pred_check_branch
        %5548 = sbr.rel (%p5546) target = $region48
      $region47: #{tpu_custom_call.1} parent=5 // pred_region
        %s5549 = ssub.s32 %s14, 2
        // Predicated region
        $region49: #{tpu_custom_call.1} parent=47 // pred_check
          %p5550 = pneg %p153
        $region50: #{tpu_custom_call.1} parent=47 // pred_check_branch
          %5552 = sbr.rel (%p5550) target = $region52
        $region51: #{tpu_custom_call.1} parent=47 // pred_region
          %s5553 = sand.u32 %s138, 1
          %s5554 = scalar_lea.sflag [#allocation3], %s5553
          %s5555 = sand.u32 %s138, 1
          %s5556 = scalar_lea.vmem [#allocation2], %s5555
          %5557 = dma.done %s5554, 16
        $region52: #{tpu_custom_call.1} parent=47 // pred_fallthru
          _
      $region48: #{tpu_custom_call.1} parent=5 // pred_fallthru
        _
    $region6: #{tpu_custom_call.1} parent=1 // loop_footer
      %s18 = sadd.s32 1, %s14
    $region7: #{tpu_custom_call.1} parent=1 // loop_footer_branch
      %13 = sbr.rel target = $region3
    $region8: #{tpu_custom_call.1} parent=1 // loop_exit
      _
    %5558 = vsyncpa [#allocation3], 1
    %s5559 = scalar_lea.sflag [#allocation3], 1
    %5560 = vsyncpa %s5559, 1

</llo_original>
